<compile_context>
chip_gen: v6e
topology: v6e:2x2x1
jax: 0.10.0
libtpu: 0.0.40
codegen_flags: <defaults>
</compile_context>

<pallas_src>
import functools

import jax
import jax.numpy as jnp
from jax import lax
from jax.experimental import pallas as pl
from jax.experimental.pallas import tpu as pltpu

# Scoped VMEM budget: conservative for every generation (v7x = 64 MiB physical
# per TensorCore); the largest double-buffered working set here is ~20 MiB.
_VMEM_LIMIT = 32 * 1024 * 1024

# Large finite negative value used to mask padded KV positions and to init the
# running max (finite, so exp(mask - m) underflows to 0 instead of NaN).
_MASK_VALUE = -0.7 * float(jnp.finfo(jnp.float32).max)

_HI = lax.Precision.HIGHEST


def _round_up(x: int, m: int) -> int:
    return ((x + m - 1) // m) * m


def _choose_tile(dim: int, preferred: int, quantum: int) -> int:
    """Tile for one matmul dim: the whole (short) dim, a single quantum-padded
    tile, or the largest candidate <= `preferred` whose padding waste stays
    under ~12.5% of the dim.  Always (8,128)-legal after padding."""
    if dim <= quantum:
        return dim                      # full short dim: always a legal block
    if dim <= preferred:
        return _round_up(dim, quantum)  # one padded tile
    tile = preferred
    while tile > 128 and (_round_up(dim, tile) - dim) * 8 > dim:
        tile //= 2
    return tile


def _seq_tile(n: int) -> int:
    """Attention q/kv tile along the (padded) sequence axis."""
    if n <= 384:                        # a single padded tile covers the sequence
        return _round_up(n, 16)
    tile = 256
    while tile > 128 and (_round_up(n, tile) - n) * 16 > n:
        tile //= 2
    return tile


# ---------------------------------------------------------------------------
# Tiled matmul (QKV projections and output projection)
# ---------------------------------------------------------------------------

def _make_matmul_kernel(has_bias, mxu_dtype, acc_into_out):
    """Grid = (M/tm, N/tn, K/tk); K is the innermost "arbitrary" axis."""

    def kernel(*refs):
        if has_bias:
            x_ref, w_ref, b_ref, o_ref = refs[0], refs[1], refs[2], refs[3]
        else:
            x_ref, w_ref, o_ref = refs[0], refs[1], refs[2]
            b_ref = None
        # f32 outputs accumulate straight into the (K-resident) output block.
        acc_ref = o_ref if acc_into_out else refs[-1]

        @pl.when(pl.program_id(2) == 0)
        def _init():
            acc_ref[...] = jnp.zeros_like(acc_ref)

        a = x_ref[...]
        w = w_ref[...]
        if mxu_dtype is not None:
            # bf16 operands -> full-rate MXU on every generation; f32 accumulate.
            acc_ref[...] += jnp.dot(a.astype(mxu_dtype), w.astype(mxu_dtype),
                                    preferred_element_type=jnp.float32)
        else:
            # Exact path: full-precision f32 contraction.
            acc_ref[...] += jnp.dot(a, w, preferred_element_type=jnp.float32,
                                    precision=_HI)

        if (not acc_into_out) or has_bias:
            @pl.when(pl.program_id(2) == pl.num_programs(2) - 1)
            def _finalize():
                acc = acc_ref[...]
                if has_bias:
                    acc = acc + b_ref[...].astype(jnp.float32)
                o_ref[...] = acc.astype(o_ref.dtype)

    return kernel


def pallas_matmul(x, w, b=None, *, out_dtype=None, mxu_dtype=None,
                  tm=512, tn=512, tk=512):
    """x: [M, K] @ w: [K, N] (+ optional bias [1, N]) -> [M, N].

    Dims are padded up to tile multiples (zeros are exact for the K reduction;
    padded rows/cols are sliced off), so any shape gets 128/512-class tiles.
    """
    M, K = x.shape
    K2, N = w.shape
    assert K == K2, (K, K2)
    out_dtype = jnp.dtype(out_dtype) if out_dtype is not None else jnp.dtype(x.dtype)

    tm = _choose_tile(M, tm, 16)    # second-minor dims: 16-quantum (bf16 safe)
    tn = _choose_tile(N, tn, 128)   # minor dims: 128-quantum (lane tiling)
    tk = _choose_tile(K, tk, 128)
    m_pad, k_pad, n_pad = _round_up(M, tm), _round_up(K, tk), _round_up(N, tn)

    if (m_pad, k_pad) != (M, K):
        x = jnp.pad(x, ((0, m_pad - M), (0, k_pad - K)))
    if (k_pad, n_pad) != (K, N):
        w = jnp.pad(w, ((0, k_pad - K), (0, n_pad - N)))
    if b is not None and n_pad != N:
        b = jnp.pad(b, ((0, 0), (0, n_pad - N)))

    acc_into_out = out_dtype == jnp.dtype(jnp.float32)
    kernel = _make_matmul_kernel(b is not None, mxu_dtype, acc_into_out)

    in_specs = [pl.BlockSpec((tm, tk), lambda i, j, k: (i, k)),
                pl.BlockSpec((tk, tn), lambda i, j, k: (k, j))]
    args = [x, w]
    if b is not None:
        in_specs.append(pl.BlockSpec((1, tn), lambda i, j, k: (0, j)))
        args.append(b)

    scratch = [] if acc_into_out else [pltpu.VMEM((tm, tn), jnp.float32)]

    cost = pl.CostEstimate(
        flops=2 * m_pad * n_pad * k_pad,
        transcendentals=0,
        bytes_accessed=(m_pad * k_pad * x.dtype.itemsize
                        + k_pad * n_pad * w.dtype.itemsize
                        + m_pad * n_pad * out_dtype.itemsize))

    out = pl.pallas_call(
        kernel,
        out_shape=jax.ShapeDtypeStruct((m_pad, n_pad), out_dtype),
        grid_spec=pltpu.PrefetchScalarGridSpec(
            num_scalar_prefetch=0,
            grid=(m_pad // tm, n_pad // tn, k_pad // tk),
            in_specs=in_specs,
            out_specs=pl.BlockSpec((tm, tn), lambda i, j, k: (i, j)),
            scratch_shapes=scratch),
        compiler_params=pltpu.CompilerParams(
            dimension_semantics=("parallel", "parallel", "arbitrary"),
            vmem_limit_bytes=_VMEM_LIMIT),
        cost_estimate=cost,
    )(*args)

    if (m_pad, n_pad) != (M, N):
        out = out[:M, :N]
    return out


# ---------------------------------------------------------------------------
# Flash attention: heads packed along channels, online softmax over KV tiles
# ---------------------------------------------------------------------------

def _flash_attn_kernel(q_ref, k_ref, v_ref, o_ref, m_scr, l_scr, acc_scr, *,
                       num_heads, head_dim, n_valid, kv_tile, needs_mask):
    """Blocks: q/o (1, tq, C), k/v (1, tkv, C); grid = (B, Nq, Nkv) with the KV
    axis innermost ("arbitrary").  Heads live in contiguous channel slices, so
    the output block is written lane-dense in [B, N, C] layout (no transposes).
    The softmax scale is already folded into the q projection weights."""
    ki = pl.program_id(2)

    @pl.when(ki == 0)
    def _init():
        m_scr[...] = jnp.full_like(m_scr, _MASK_VALUE)
        l_scr[...] = jnp.zeros_like(l_scr)
        acc_scr[...] = jnp.zeros_like(acc_scr)

    q = q_ref[0]          # (tq,  C)
    k = k_ref[0]          # (tkv, C)
    v = v_ref[0]          # (tkv, C)
    prec = _HI if q.dtype == jnp.float32 else None

    if needs_mask:        # mask padded key/value positions (hoisted out of the head loop)
        col = lax.broadcasted_iota(jnp.int32, (1, kv_tile), 1) + ki * kv_tile
        kv_valid = col < n_valid                            # (1, tkv)

    for h in range(num_heads):                              # static unroll
        c0, c1 = h * head_dim, (h + 1) * head_dim
        # s[i, j] = sum_d q[i, d] * k[j, d]   (no explicit transpose)
        s = lax.dot_general(q[:, c0:c1], k[:, c0:c1],
                            (((1,), (1,)), ((), ())),
                            preferred_element_type=jnp.float32,
                            precision=prec)                 # (tq, tkv)
        if needs_mask:
            s = jnp.where(kv_valid, s, _MASK_VALUE)

        m_prev = m_scr[:, h:h + 1]                          # (tq, 1)
        m_new = jnp.maximum(m_prev, jnp.max(s, axis=-1, keepdims=True))
        alpha = jnp.exp(m_prev - m_new)
        p = jnp.exp(s - m_new)

        l_scr[:, h:h + 1] = alpha * l_scr[:, h:h + 1] + jnp.sum(
            p, axis=-1, keepdims=True)
        pv = lax.dot_general(p.astype(v.dtype), v[:, c0:c1],
                             (((1,), (0,)), ((), ())),
                             preferred_element_type=jnp.float32,
                             precision=prec)                # (tq, Dh)
        acc_scr[:, c0:c1] = alpha * acc_scr[:, c0:c1] + pv
        m_scr[:, h:h + 1] = m_new

    @pl.when(ki == pl.num_programs(2) - 1)
    def _store():
        for h in range(num_heads):
            c0, c1 = h * head_dim, (h + 1) * head_dim
            # Exact division (finalize-only) instead of an approx reciprocal.
            o_ref[0, :, c0:c1] = (acc_scr[:, c0:c1] / l_scr[:, h:h + 1]
                                  ).astype(o_ref.dtype)


def pallas_attention(q, k, v, *, num_heads, n_valid, tq, tkv):
    """q, k, v: [B, Npad, C] (heads packed along C) -> [B, Npad, C].

    Only positions < n_valid are attended to; padded rows produce finite
    garbage that the caller slices off.
    """
    # TODO(synk): attn_bias is not supported (the module's default is None).
    B, n_pad, C = q.shape
    H = num_heads
    Dh = C // H
    assert n_pad % tq == 0 and n_pad % tkv == 0

    kernel = functools.partial(
        _flash_attn_kernel, num_heads=H, head_dim=Dh, n_valid=n_valid,
        kv_tile=tkv, needs_mask=(n_pad != n_valid))

    cost = pl.CostEstimate(
        flops=4 * B * H * n_pad * n_pad * Dh,
        transcendentals=B * H * n_pad * n_pad,
        bytes_accessed=4 * B * n_pad * C * q.dtype.itemsize)

    return pl.pallas_call(
        kernel,
        out_shape=jax.ShapeDtypeStruct((B, n_pad, C), q.dtype),
        grid_spec=pltpu.PrefetchScalarGridSpec(
            num_scalar_prefetch=0,
            grid=(B, n_pad // tq, n_pad // tkv),
            in_specs=[
                pl.BlockSpec((1, tq, C), lambda b, qi, ki: (b, qi, 0)),
                pl.BlockSpec((1, tkv, C), lambda b, qi, ki: (b, ki, 0)),
                pl.BlockSpec((1, tkv, C), lambda b, qi, ki: (b, ki, 0)),
            ],
            out_specs=pl.BlockSpec((1, tq, C), lambda b, qi, ki: (b, qi, 0)),
            scratch_shapes=[
                pltpu.VMEM((tq, H), jnp.float32),    # running max (per head)
                pltpu.VMEM((tq, H), jnp.float32),    # running sum (per head)
                pltpu.VMEM((tq, C), jnp.float32),    # output accumulator
            ]),
        compiler_params=pltpu.CompilerParams(
            dimension_semantics=("parallel", "parallel", "arbitrary"),
            vmem_limit_bytes=_VMEM_LIMIT),
        cost_estimate=cost,
    )(q, k, v)


# ---------------------------------------------------------------------------
# MemEffAttention forward (hot path entirely in Pallas; no wrapper transposes)
# ---------------------------------------------------------------------------

def mem_eff_attention_forward(x, params, num_heads, *, interm_dtype=jnp.bfloat16):
    """x: [B, N, C] -> [B, N, C].

    interm_dtype=jnp.bfloat16 (default): bf16 MXU operands / bf16 q,k,v,o
    intermediates with f32 accumulation.  interm_dtype=None: exact f32 path.
    """
    B, N, C = x.shape
    H = num_heads
    assert C % H == 0, "dim must be divisible by num_heads"

    tq = tkv = _seq_tile(N)
    n_pad = _round_up(N, tq)
    if n_pad != N:
        x = jnp.pad(x, ((0, 0), (0, n_pad - N), (0, 0)))
    x2d = x.reshape(B * n_pad, C)

    interm = (jnp.dtype(interm_dtype) if interm_dtype is not None
              else jnp.dtype(x.dtype))

    # QKV projections (qkv_bias=False).  The softmax scale is folded into w_q
    # at parameter-prep time, so there is no separate scaling pass over q.
    q = pallas_matmul(x2d, params["w_q"], out_dtype=interm, mxu_dtype=interm_dtype)
    k = pallas_matmul(x2d, params["w_k"], out_dtype=interm, mxu_dtype=interm_dtype)
    v = pallas_matmul(x2d, params["w_v"], out_dtype=interm, mxu_dtype=interm_dtype)

    # Flash attention on [B, n_pad, C]; output is already [B, n_pad, C].
    o = pallas_attention(q.reshape(B, n_pad, C), k.reshape(B, n_pad, C),
                         v.reshape(B, n_pad, C),
                         num_heads=H, n_valid=N, tq=tq, tkv=tkv)

    # Output projection (proj_bias=True); attn/proj dropouts are identity (p=0).
    y = pallas_matmul(o.reshape(B * n_pad, C), params["w_proj"], params["b_proj"],
                      out_dtype=x.dtype, mxu_dtype=interm_dtype)
    y = y.reshape(B, n_pad, C)
    if n_pad != N:
        y = y[:, :N, :]
    return y


def init_torch_params(key, dim):
    """Deterministic synthetic weights in PyTorch nn.Linear layout."""
    k1, k2, k3 = jax.random.split(key, 3)
    W_qkv = jax.random.normal(k1, (3 * dim, dim), jnp.float32) * (dim ** -0.5)
    W_proj = jax.random.normal(k2, (dim, dim), jnp.float32) * (dim ** -0.5)
    b_proj = jax.random.normal(k3, (dim,), jnp.float32) * 0.02
    return {"W_qkv": W_qkv, "W_proj": W_proj, "b_proj": b_proj}


def prepare_params(torch_params, num_heads):
    """torch-layout weights -> kernel layout: transposed to (in, out), q/k/v
    split, and the softmax scale folded into the q projection (free)."""
    W_qkv = torch_params["W_qkv"]
    W_proj = torch_params["W_proj"]
    b_proj = torch_params["b_proj"]
    C = W_proj.shape[0]
    scale = (C // num_heads) ** -0.5
    return {
        "w_q": W_qkv[:C].T * scale,
        "w_k": W_qkv[C:2 * C].T,
        "w_v": W_qkv[2 * C:].T,
        "w_proj": W_proj.T,
        "b_proj": b_proj.reshape(1, C),
    }


# ---------------------------------------------------------------------------
# Pure-JAX reference (mirrors the PyTorch module) for sanity checking
# ---------------------------------------------------------------------------

def reference_forward(x, torch_params, num_heads):
    B, N, C = x.shape
    H = num_heads
    Dh = C // H
    scale = Dh ** -0.5
    qkv = jnp.einsum("bnc,dc->bnd", x, torch_params["W_qkv"], precision=_HI)
    qkv = qkv.reshape(B, N, 3, H, Dh)
    q = jnp.transpose(qkv[:, :, 0], (0, 2, 1, 3))
    k = jnp.transpose(qkv[:, :, 1], (0, 2, 1, 3))
    v = jnp.transpose(qkv[:, :, 2], (0, 2, 1, 3))
    s = jnp.einsum("bhnd,bhmd->bhnm", q, k, precision=_HI) * scale
    p = jax.nn.softmax(s, axis=-1)
    o = jnp.einsum("bhnm,bhmd->bhnd", p, v, precision=_HI)
    o = jnp.transpose(o, (0, 2, 1, 3)).reshape(B, N, C)
    y = jnp.einsum("bnc,dc->bnd", o, torch_params["W_proj"], precision=_HI)
    return y + torch_params["b_proj"]


if __name__ == "__main__":
    key = jax.random.PRNGKey(0)
    fwd = jax.jit(mem_eff_attention_forward,
                  static_argnames=("num_heads", "interm_dtype"))

    # (B, N, C, num_heads, interm_dtype, tolerance)
    cases = [
        # Tiny case on the default bf16 performance path: exercises sequence
        # padding + KV masking.  bf16 operands -> bf16-level tolerance.
        (2, 10, 32, 8, jnp.bfloat16, 5e-2),
        # Larger sequence on the exact-f32 path: multiple q/kv tiles exercise
        # the online softmax across grid steps with a tight tolerance.
        (1, 520, 64, 4, None, 2e-3),
    ]

    for (B, N, C, H, interm, tol) in cases:
        key, kx, kp = jax.random.split(key, 3)
        x = jax.random.normal(kx, (B, N, C), jnp.float32)
        torch_params = init_torch_params(kp, C)
        params = prepare_params(torch_params, H)

        out = jax.block_until_ready(
            fwd(x, params, num_heads=H, interm_dtype=interm))
        ref = reference_forward(x, torch_params, H)

        assert out.shape == (B, N, C), (out.shape, (B, N, C))
        out32 = out.astype(jnp.float32)
        err = float(jnp.max(jnp.abs(out32 - ref)))
        assert jnp.allclose(out32, ref, atol=tol, rtol=tol), (
            f"mismatch B={B} N={N} C={C} H={H} interm={interm}: "
            f"max abs err {err}")

    print("KERNEL_OK")
</pallas_src>

<mosaic_0001>
module attributes {stable_mosaic.version = 11 : i64} {
  func.func @kernel(%arg0: i32, %arg1: i32, %arg2: i32, %arg3: memref<32x32xf32, #tpu.memory_space<vmem>>, %arg4: memref<32x32xf32, #tpu.memory_space<vmem>>, %arg5: memref<32x32xbf16, #tpu.memory_space<vmem>>, %arg6: memref<32x32xf32, #tpu.memory_space<vmem>>) attributes {dimension_semantics = [#tpu.dimension_semantics<parallel>, #tpu.dimension_semantics<parallel>, #tpu.dimension_semantics<arbitrary>], iteration_bounds = array<i64: 1, 1, 1>, scalar_prefetch = 0 : i64, scratch_operands = 1 : i64, tpu.core_type = #tpu.core_type<tc>, window_params = [{transform_indices = @transform_0, window_bounds = array<i64: 32, 32>}, {transform_indices = @transform_1, window_bounds = array<i64: 32, 32>}, {transform_indices = @transform_2, window_bounds = array<i64: 32, 32>}]} {
    %c0_i32 = arith.constant 0 : i32
    %0 = arith.cmpi eq, %arg2, %c0_i32 : i32
    %1 = arith.extui %0 : i1 to i32
    %c0_i32_0 = arith.constant 0 : i32
    %2 = arith.cmpi ne, %1, %c0_i32_0 : i32
    scf.if %2 {
      %cst_10 = arith.constant 0.000000e+00 : f32
      %14 = vector.broadcast %cst_10 : f32 to vector<32x32xf32>
      %c0_11 = arith.constant 0 : index
      %c0_12 = arith.constant 0 : index
      %15 = vector.load %arg6[%c0_11, %c0_12] : memref<32x32xf32, #tpu.memory_space<vmem>>, vector<32x32xf32>
      tpu.vector_store %arg6[%c0_11, %c0_12], %14 {strides = array<i32>} : memref<32x32xf32, #tpu.memory_space<vmem>>, vector<32x32xf32>,
    } else {
    }
    %c0 = arith.constant 0 : index
    %c0_1 = arith.constant 0 : index
    %3 = vector.load %arg3[%c0, %c0_1] : memref<32x32xf32, #tpu.memory_space<vmem>>, vector<32x32xf32>
    %c0_2 = arith.constant 0 : index
    %c0_3 = arith.constant 0 : index
    %4 = vector.load %arg4[%c0_2, %c0_3] : memref<32x32xf32, #tpu.memory_space<vmem>>, vector<32x32xf32>
    %c0_4 = arith.constant 0 : index
    %c0_5 = arith.constant 0 : index
    %5 = vector.load %arg6[%c0_4, %c0_5] : memref<32x32xf32, #tpu.memory_space<vmem>>, vector<32x32xf32>
    %6 = arith.truncf %3 : vector<32x32xf32> to vector<32x32xbf16>
    %7 = arith.truncf %4 : vector<32x32xf32> to vector<32x32xbf16>
    %cst = arith.constant dense<0.000000e+00> : vector<32x32xf32>
    %8 = tpu.matmul %6, %7, %cst {dimension_numbers = #tpu.dot_dimension_numbers<[1], [0], [0], [1], [0, 0, 1, 1], [], []>} : vector<32x32xbf16>, vector<32x32xbf16>, vector<32x32xf32> -> vector<32x32xf32>
    %9 = arith.addf %5, %8 : vector<32x32xf32>
    %c0_6 = arith.constant 0 : index
    %c0_7 = arith.constant 0 : index
    %10 = vector.load %arg6[%c0_6, %c0_7] : memref<32x32xf32, #tpu.memory_space<vmem>>, vector<32x32xf32>
    tpu.vector_store %arg6[%c0_6, %c0_7], %9 {strides = array<i32>} : memref<32x32xf32, #tpu.memory_space<vmem>>, vector<32x32xf32>,
    %c0_i32_8 = arith.constant 0 : i32
    %11 = arith.cmpi eq, %arg2, %c0_i32_8 : i32
    %12 = arith.extui %11 : i1 to i32
    %c0_i32_9 = arith.constant 0 : i32
    %13 = arith.cmpi ne, %12, %c0_i32_9 : i32
    scf.if %13 {
      %c0_10 = arith.constant 0 : index
      %c0_11 = arith.constant 0 : index
      %14 = vector.load %arg6[%c0_10, %c0_11] : memref<32x32xf32, #tpu.memory_space<vmem>>, vector<32x32xf32>
      %15 = arith.truncf %14 : vector<32x32xf32> to vector<32x32xbf16>
      %c0_12 = arith.constant 0 : index
      %c0_13 = arith.constant 0 : index
      %16 = vector.load %arg5[%c0_12, %c0_13] : memref<32x32xbf16, #tpu.memory_space<vmem>>, vector<32x32xbf16>
      tpu.vector_store %arg5[%c0_12, %c0_13], %15 {strides = array<i32>} : memref<32x32xbf16, #tpu.memory_space<vmem>>, vector<32x32xbf16>,
    } else {
    }
    return
  }
  func.func @transform_0(%arg0: i32, %arg1: i32, %arg2: i32) -> (i32, i32) {
    %c0_i32 = arith.constant 0 : i32
    return %arg0, %arg2 : i32, i32
  }
  func.func @transform_1(%arg0: i32, %arg1: i32, %arg2: i32) -> (i32, i32) {
    %c0_i32 = arith.constant 0 : i32
    return %arg2, %arg1 : i32, i32
  }
  func.func @transform_2(%arg0: i32, %arg1: i32, %arg2: i32) -> (i32, i32) {
    %c0_i32 = arith.constant 0 : i32
    return %arg0, %arg1 : i32, i32
  }
}

module attributes {stable_mosaic.version = 11 : i64} {
  func.func @_flash_attn_kernel(%arg0: i32, %arg1: i32, %arg2: i32, %arg3: memref<1x16x32xbf16, #tpu.memory_space<vmem>>, %arg4: memref<1x16x32xbf16, #tpu.memory_space<vmem>>, %arg5: memref<1x16x32xbf16, #tpu.memory_space<vmem>>, %arg6: memref<1x16x32xbf16, #tpu.memory_space<vmem>>, %arg7: memref<16x8xf32, #tpu.memory_space<vmem>>, %arg8: memref<16x8xf32, #tpu.memory_space<vmem>>, %arg9: memref<16x32xf32, #tpu.memory_space<vmem>>) attributes {dimension_semantics = [#tpu.dimension_semantics<parallel>, #tpu.dimension_semantics<parallel>, #tpu.dimension_semantics<arbitrary>], iteration_bounds = array<i64: 2, 1, 1>, scalar_prefetch = 0 : i64, scratch_operands = 3 : i64, tpu.core_type = #tpu.core_type<tc>, window_params = [{transform_indices = @transform_0, window_bounds = array<i64: 1, 16, 32>}, {transform_indices = @transform_1, window_bounds = array<i64: 1, 16, 32>}, {transform_indices = @transform_2, window_bounds = array<i64: 1, 16, 32>}, {transform_indices = @transform_3, window_bounds = array<i64: 1, 16, 32>}]} {
    %c0_i32 = arith.constant 0 : i32
    %0 = arith.cmpi eq, %arg2, %c0_i32 : i32
    %1 = arith.extui %0 : i1 to i32
    %c0_i32_0 = arith.constant 0 : i32
    %2 = arith.cmpi ne, %1, %c0_i32_0 : i32
    scf.if %2 {
      %cst_133 = arith.constant -2.38197633E+38 : f32
      %266 = vector.broadcast %cst_133 : f32 to vector<16x8xf32>
      %c0_134 = arith.constant 0 : index
      %c0_135 = arith.constant 0 : index
      %267 = vector.load %arg7[%c0_134, %c0_135] : memref<16x8xf32, #tpu.memory_space<vmem>>, vector<16x8xf32>
      tpu.vector_store %arg7[%c0_134, %c0_135], %266 {strides = array<i32>} : memref<16x8xf32, #tpu.memory_space<vmem>>, vector<16x8xf32>,
      %cst_136 = arith.constant 0.000000e+00 : f32
      %268 = vector.broadcast %cst_136 : f32 to vector<16x8xf32>
      %c0_137 = arith.constant 0 : index
      %c0_138 = arith.constant 0 : index
      %269 = vector.load %arg8[%c0_137, %c0_138] : memref<16x8xf32, #tpu.memory_space<vmem>>, vector<16x8xf32>
      tpu.vector_store %arg8[%c0_137, %c0_138], %268 {strides = array<i32>} : memref<16x8xf32, #tpu.memory_space<vmem>>, vector<16x8xf32>,
      %cst_139 = arith.constant 0.000000e+00 : f32
      %270 = vector.broadcast %cst_139 : f32 to vector<16x32xf32>
      %c0_140 = arith.constant 0 : index
      %c0_141 = arith.constant 0 : index
      %271 = vector.load %arg9[%c0_140, %c0_141] : memref<16x32xf32, #tpu.memory_space<vmem>>, vector<16x32xf32>
      tpu.vector_store %arg9[%c0_140, %c0_141], %270 {strides = array<i32>} : memref<16x32xf32, #tpu.memory_space<vmem>>, vector<16x32xf32>,
    } else {
    }
    %c0 = arith.constant 0 : index
    %c0_1 = arith.constant 0 : index
    %c0_2 = arith.constant 0 : index
    %3 = vector.load %arg3[%c0, %c0_1, %c0_2] : memref<1x16x32xbf16, #tpu.memory_space<vmem>>, vector<1x16x32xbf16>
    %4 = vector.shape_cast %3 : vector<1x16x32xbf16> to vector<16x32xbf16>
    %c0_3 = arith.constant 0 : index
    %c0_4 = arith.constant 0 : index
    %c0_5 = arith.constant 0 : index
    %5 = vector.load %arg4[%c0_3, %c0_4, %c0_5] : memref<1x16x32xbf16, #tpu.memory_space<vmem>>, vector<1x16x32xbf16>
    %6 = vector.shape_cast %5 : vector<1x16x32xbf16> to vector<16x32xbf16>
    %c0_6 = arith.constant 0 : index
    %c0_7 = arith.constant 0 : index
    %c0_8 = arith.constant 0 : index
    %7 = vector.load %arg5[%c0_6, %c0_7, %c0_8] : memref<1x16x32xbf16, #tpu.memory_space<vmem>>, vector<1x16x32xbf16>
    %8 = vector.shape_cast %7 : vector<1x16x32xbf16> to vector<16x32xbf16>
    %9 = tpu.iota {dimensions = array<i32: 1>} : vector<1x16xi32>
    %c16_i32 = arith.constant 16 : i32
    %10 = arith.muli %arg2, %c16_i32 : i32
    %11 = vector.broadcast %10 : i32 to vector<1x16xi32>
    %12 = arith.addi %9, %11 : vector<1x16xi32>
    %c10_i32 = arith.constant 10 : i32
    %13 = vector.broadcast %c10_i32 : i32 to vector<1x16xi32>
    %14 = arith.cmpi slt, %12, %13 : vector<1x16xi32>
    %15 = vector.extract_strided_slice %4 {offsets = [0, 0], sizes = [16, 4], strides = [1, 1]} : vector<16x32xbf16> to vector<16x4xbf16>
    %16 = vector.extract_strided_slice %6 {offsets = [0, 0], sizes = [16, 4], strides = [1, 1]} : vector<16x32xbf16> to vector<16x4xbf16>
    %cst = arith.constant dense<0.000000e+00> : vector<16x16xf32>
    %17 = tpu.matmul %15, %16, %cst {dimension_numbers = #tpu.dot_dimension_numbers<[1], [1], [0], [0], [0, 0, 1, 0], [], []>} : vector<16x4xbf16>, vector<16x4xbf16>, vector<16x16xf32> -> vector<16x16xf32>
    %cst_9 = arith.constant -2.38197633E+38 : f32
    %18 = vector.shape_cast %14 : vector<1x16xi1> to vector<1x16xi1>
    %19 = vector.broadcast %18 : vector<1x16xi1> to vector<16x16xi1>
    %20 = vector.broadcast %cst_9 : f32 to vector<16x16xf32>
    %21 = arith.select %19, %17, %20 : vector<16x16xi1>, vector<16x16xf32>
    %c0_10 = arith.constant 0 : index
    %c0_11 = arith.constant 0 : index
    %22 = vector.load %arg7[%c0_10, %c0_11] : memref<16x8xf32, #tpu.memory_space<vmem>>, vector<16x1xf32>
    %cst_12 = arith.constant dense<0xFF800000> : vector<16xf32>
    %23 = vector.multi_reduction <maximumf>, %21, %cst_12 [1] : vector<16x16xf32> to vector<16xf32>
    %24 = vector.shape_cast %23 : vector<16xf32> to vector<16x1xf32>
    %25 = arith.maximumf %22, %24 : vector<16x1xf32>
    %26 = arith.subf %22, %25 : vector<16x1xf32>
    %27 = math.exp %26 : vector<16x1xf32>
    %28 = vector.broadcast %25 : vector<16x1xf32> to vector<16x16xf32>
    %29 = arith.subf %21, %28 : vector<16x16xf32>
    %30 = math.exp %29 : vector<16x16xf32>
    %c0_13 = arith.constant 0 : index
    %c0_14 = arith.constant 0 : index
    %31 = vector.load %arg8[%c0_13, %c0_14] : memref<16x8xf32, #tpu.memory_space<vmem>>, vector<16x1xf32>
    %32 = arith.mulf %27, %31 : vector<16x1xf32>
    %cst_15 = arith.constant dense<0.000000e+00> : vector<16xf32>
    %33 = vector.multi_reduction <add>, %30, %cst_15 [1] : vector<16x16xf32> to vector<16xf32>
    %34 = vector.shape_cast %33 : vector<16xf32> to vector<16x1xf32>
    %35 = arith.addf %32, %34 : vector<16x1xf32>
    %c0_16 = arith.constant 0 : index
    %c0_17 = arith.constant 0 : index
    %36 = vector.load %arg8[%c0_16, %c0_17] : memref<16x8xf32, #tpu.memory_space<vmem>>, vector<16x1xf32>
    tpu.vector_store %arg8[%c0_16, %c0_17], %35 {strides = array<i32>} : memref<16x8xf32, #tpu.memory_space<vmem>>, vector<16x1xf32>,
    %37 = arith.truncf %30 : vector<16x16xf32> to vector<16x16xbf16>
    %38 = vector.extract_strided_slice %8 {offsets = [0, 0], sizes = [16, 4], strides = [1, 1]} : vector<16x32xbf16> to vector<16x4xbf16>
    %cst_18 = arith.constant dense<0.000000e+00> : vector<16x4xf32>
    %39 = tpu.matmul %37, %38, %cst_18 {dimension_numbers = #tpu.dot_dimension_numbers<[1], [0], [0], [1], [0, 0, 1, 1], [], []>} : vector<16x16xbf16>, vector<16x4xbf16>, vector<16x4xf32> -> vector<16x4xf32>
    %c0_19 = arith.constant 0 : index
    %c0_20 = arith.constant 0 : index
    %40 = vector.load %arg9[%c0_19, %c0_20] : memref<16x32xf32, #tpu.memory_space<vmem>>, vector<16x4xf32>
    %41 = vector.broadcast %27 : vector<16x1xf32> to vector<16x4xf32>
    %42 = arith.mulf %41, %40 : vector<16x4xf32>
    %43 = arith.addf %42, %39 : vector<16x4xf32>
    %c0_21 = arith.constant 0 : index
    %c0_22 = arith.constant 0 : index
    %44 = vector.load %arg9[%c0_21, %c0_22] : memref<16x32xf32, #tpu.memory_space<vmem>>, vector<16x4xf32>
    tpu.vector_store %arg9[%c0_21, %c0_22], %43 {strides = array<i32>} : memref<16x32xf32, #tpu.memory_space<vmem>>, vector<16x4xf32>,
    %c0_23 = arith.constant 0 : index
    %c0_24 = arith.constant 0 : index
    %45 = vector.load %arg7[%c0_23, %c0_24] : memref<16x8xf32, #tpu.memory_space<vmem>>, vector<16x1xf32>
    tpu.vector_store %arg7[%c0_23, %c0_24], %25 {strides = array<i32>} : memref<16x8xf32, #tpu.memory_space<vmem>>, vector<16x1xf32>,
    %46 = vector.extract_strided_slice %4 {offsets = [0, 4], sizes = [16, 4], strides = [1, 1]} : vector<16x32xbf16> to vector<16x4xbf16>
    %47 = vector.extract_strided_slice %6 {offsets = [0, 4], sizes = [16, 4], strides = [1, 1]} : vector<16x32xbf16> to vector<16x4xbf16>
    %cst_25 = arith.constant dense<0.000000e+00> : vector<16x16xf32>
    %48 = tpu.matmul %46, %47, %cst_25 {dimension_numbers = #tpu.dot_dimension_numbers<[1], [1], [0], [0], [0, 0, 1, 0], [], []>} : vector<16x4xbf16>, vector<16x4xbf16>, vector<16x16xf32> -> vector<16x16xf32>
    %cst_26 = arith.constant -2.38197633E+38 : f32
    %49 = vector.shape_cast %14 : vector<1x16xi1> to vector<1x16xi1>
    %50 = vector.broadcast %49 : vector<1x16xi1> to vector<16x16xi1>
    %51 = vector.broadcast %cst_26 : f32 to vector<16x16xf32>
    %52 = arith.select %50, %48, %51 : vector<16x16xi1>, vector<16x16xf32>
    %c0_27 = arith.constant 0 : index
    %c1 = arith.constant 1 : index
    %53 = vector.load %arg7[%c0_27, %c1] : memref<16x8xf32, #tpu.memory_space<vmem>>, vector<16x1xf32>
    %cst_28 = arith.constant dense<0xFF800000> : vector<16xf32>
    %54 = vector.multi_reduction <maximumf>, %52, %cst_28 [1] : vector<16x16xf32> to vector<16xf32>
    %55 = vector.shape_cast %54 : vector<16xf32> to vector<16x1xf32>
    %56 = arith.maximumf %53, %55 : vector<16x1xf32>
    %57 = arith.subf %53, %56 : vector<16x1xf32>
    %58 = math.exp %57 : vector<16x1xf32>
    %59 = vector.broadcast %56 : vector<16x1xf32> to vector<16x16xf32>
    %60 = arith.subf %52, %59 : vector<16x16xf32>
    %61 = math.exp %60 : vector<16x16xf32>
    %c0_29 = arith.constant 0 : index
    %c1_30 = arith.constant 1 : index
    %62 = vector.load %arg8[%c0_29, %c1_30] : memref<16x8xf32, #tpu.memory_space<vmem>>, vector<16x1xf32>
    %63 = arith.mulf %58, %62 : vector<16x1xf32>
    %cst_31 = arith.constant dense<0.000000e+00> : vector<16xf32>
    %64 = vector.multi_reduction <add>, %61, %cst_31 [1] : vector<16x16xf32> to vector<16xf32>
    %65 = vector.shape_cast %64 : vector<16xf32> to vector<16x1xf32>
    %66 = arith.addf %63, %65 : vector<16x1xf32>
    %c0_32 = arith.constant 0 : index
    %c1_33 = arith.constant 1 : index
    %67 = vector.load %arg8[%c0_32, %c1_33] : memref<16x8xf32, #tpu.memory_space<vmem>>, vector<16x1xf32>
    tpu.vector_store %arg8[%c0_32, %c1_33], %66 {strides = array<i32>} : memref<16x8xf32, #tpu.memory_space<vmem>>, vector<16x1xf32>,
    %68 = arith.truncf %61 : vector<16x16xf32> to vector<16x16xbf16>
    %69 = vector.extract_strided_slice %8 {offsets = [0, 4], sizes = [16, 4], strides = [1, 1]} : vector<16x32xbf16> to vector<16x4xbf16>
    %cst_34 = arith.constant dense<0.000000e+00> : vector<16x4xf32>
    %70 = tpu.matmul %68, %69, %cst_34 {dimension_numbers = #tpu.dot_dimension_numbers<[1], [0], [0], [1], [0, 0, 1, 1], [], []>} : vector<16x16xbf16>, vector<16x4xbf16>, vector<16x4xf32> -> vector<16x4xf32>
    %c0_35 = arith.constant 0 : index
    %c4 = arith.constant 4 : index
    %71 = vector.load %arg9[%c0_35, %c4] : memref<16x32xf32, #tpu.memory_space<vmem>>, vector<16x4xf32>
    %72 = vector.broadcast %58 : vector<16x1xf32> to vector<16x4xf32>
    %73 = arith.mulf %72, %71 : vector<16x4xf32>
    %74 = arith.addf %73, %70 : vector<16x4xf32>
    %c0_36 = arith.constant 0 : index
    %c4_37 = arith.constant 4 : index
    %75 = vector.load %arg9[%c0_36, %c4_37] : memref<16x32xf32, #tpu.memory_space<vmem>>, vector<16x4xf32>
    tpu.vector_store %arg9[%c0_36, %c4_37], %74 {strides = array<i32>} : memref<16x32xf32, #tpu.memory_space<vmem>>, vector<16x4xf32>,
    %c0_38 = arith.constant 0 : index
    %c1_39 = arith.constant 1 : index
    %76 = vector.load %arg7[%c0_38, %c1_39] : memref<16x8xf32, #tpu.memory_space<vmem>>, vector<16x1xf32>
    tpu.vector_store %arg7[%c0_38, %c1_39], %56 {strides = array<i32>} : memref<16x8xf32, #tpu.memory_space<vmem>>, vector<16x1xf32>,
    %77 = vector.extract_strided_slice %4 {offsets = [0, 8], sizes = [16, 4], strides = [1, 1]} : vector<16x32xbf16> to vector<16x4xbf16>
    %78 = vector.extract_strided_slice %6 {offsets = [0, 8], sizes = [16, 4], strides = [1, 1]} : vector<16x32xbf16> to vector<16x4xbf16>
    %cst_40 = arith.constant dense<0.000000e+00> : vector<16x16xf32>
    %79 = tpu.matmul %77, %78, %cst_40 {dimension_numbers = #tpu.dot_dimension_numbers<[1], [1], [0], [0], [0, 0, 1, 0], [], []>} : vector<16x4xbf16>, vector<16x4xbf16>, vector<16x16xf32> -> vector<16x16xf32>
    %cst_41 = arith.constant -2.38197633E+38 : f32
    %80 = vector.shape_cast %14 : vector<1x16xi1> to vector<1x16xi1>
    %81 = vector.broadcast %80 : vector<1x16xi1> to vector<16x16xi1>
    %82 = vector.broadcast %cst_41 : f32 to vector<16x16xf32>
    %83 = arith.select %81, %79, %82 : vector<16x16xi1>, vector<16x16xf32>
    %c0_42 = arith.constant 0 : index
    %c2 = arith.constant 2 : index
    %84 = vector.load %arg7[%c0_42, %c2] : memref<16x8xf32, #tpu.memory_space<vmem>>, vector<16x1xf32>
    %cst_43 = arith.constant dense<0xFF800000> : vector<16xf32>
    %85 = vector.multi_reduction <maximumf>, %83, %cst_43 [1] : vector<16x16xf32> to vector<16xf32>
    %86 = vector.shape_cast %85 : vector<16xf32> to vector<16x1xf32>
    %87 = arith.maximumf %84, %86 : vector<16x1xf32>
    %88 = arith.subf %84, %87 : vector<16x1xf32>
    %89 = math.exp %88 : vector<16x1xf32>
    %90 = vector.broadcast %87 : vector<16x1xf32> to vector<16x16xf32>
    %91 = arith.subf %83, %90 : vector<16x16xf32>
    %92 = math.exp %91 : vector<16x16xf32>
    %c0_44 = arith.constant 0 : index
    %c2_45 = arith.constant 2 : index
    %93 = vector.load %arg8[%c0_44, %c2_45] : memref<16x8xf32, #tpu.memory_space<vmem>>, vector<16x1xf32>
    %94 = arith.mulf %89, %93 : vector<16x1xf32>
    %cst_46 = arith.constant dense<0.000000e+00> : vector<16xf32>
    %95 = vector.multi_reduction <add>, %92, %cst_46 [1] : vector<16x16xf32> to vector<16xf32>
    %96 = vector.shape_cast %95 : vector<16xf32> to vector<16x1xf32>
    %97 = arith.addf %94, %96 : vector<16x1xf32>
    %c0_47 = arith.constant 0 : index
    %c2_48 = arith.constant 2 : index
    %98 = vector.load %arg8[%c0_47, %c2_48] : memref<16x8xf32, #tpu.memory_space<vmem>>, vector<16x1xf32>
    tpu.vector_store %arg8[%c0_47, %c2_48], %97 {strides = array<i32>} : memref<16x8xf32, #tpu.memory_space<vmem>>, vector<16x1xf32>,
    %99 = arith.truncf %92 : vector<16x16xf32> to vector<16x16xbf16>
    %100 = vector.extract_strided_slice %8 {offsets = [0, 8], sizes = [16, 4], strides = [1, 1]} : vector<16x32xbf16> to vector<16x4xbf16>
    %cst_49 = arith.constant dense<0.000000e+00> : vector<16x4xf32>
    %101 = tpu.matmul %99, %100, %cst_49 {dimension_numbers = #tpu.dot_dimension_numbers<[1], [0], [0], [1], [0, 0, 1, 1], [], []>} : vector<16x16xbf16>, vector<16x4xbf16>, vector<16x4xf32> -> vector<16x4xf32>
    %c0_50 = arith.constant 0 : index
    %c8 = arith.constant 8 : index
    %102 = vector.load %arg9[%c0_50, %c8] : memref<16x32xf32, #tpu.memory_space<vmem>>, vector<16x4xf32>
    %103 = vector.broadcast %89 : vector<16x1xf32> to vector<16x4xf32>
    %104 = arith.mulf %103, %102 : vector<16x4xf32>
    %105 = arith.addf %104, %101 : vector<16x4xf32>
    %c0_51 = arith.constant 0 : index
    %c8_52 = arith.constant 8 : index
    %106 = vector.load %arg9[%c0_51, %c8_52] : memref<16x32xf32, #tpu.memory_space<vmem>>, vector<16x4xf32>
    tpu.vector_store %arg9[%c0_51, %c8_52], %105 {strides = array<i32>} : memref<16x32xf32, #tpu.memory_space<vmem>>, vector<16x4xf32>,
    %c0_53 = arith.constant 0 : index
    %c2_54 = arith.constant 2 : index
    %107 = vector.load %arg7[%c0_53, %c2_54] : memref<16x8xf32, #tpu.memory_space<vmem>>, vector<16x1xf32>
    tpu.vector_store %arg7[%c0_53, %c2_54], %87 {strides = array<i32>} : memref<16x8xf32, #tpu.memory_space<vmem>>, vector<16x1xf32>,
    %108 = vector.extract_strided_slice %4 {offsets = [0, 12], sizes = [16, 4], strides = [1, 1]} : vector<16x32xbf16> to vector<16x4xbf16>
    %109 = vector.extract_strided_slice %6 {offsets = [0, 12], sizes = [16, 4], strides = [1, 1]} : vector<16x32xbf16> to vector<16x4xbf16>
    %cst_55 = arith.constant dense<0.000000e+00> : vector<16x16xf32>
    %110 = tpu.matmul %108, %109, %cst_55 {dimension_numbers = #tpu.dot_dimension_numbers<[1], [1], [0], [0], [0, 0, 1, 0], [], []>} : vector<16x4xbf16>, vector<16x4xbf16>, vector<16x16xf32> -> vector<16x16xf32>
    %cst_56 = arith.constant -2.38197633E+38 : f32
    %111 = vector.shape_cast %14 : vector<1x16xi1> to vector<1x16xi1>
    %112 = vector.broadcast %111 : vector<1x16xi1> to vector<16x16xi1>
    %113 = vector.broadcast %cst_56 : f32 to vector<16x16xf32>
    %114 = arith.select %112, %110, %113 : vector<16x16xi1>, vector<16x16xf32>
    %c0_57 = arith.constant 0 : index
    %c3 = arith.constant 3 : index
    %115 = vector.load %arg7[%c0_57, %c3] : memref<16x8xf32, #tpu.memory_space<vmem>>, vector<16x1xf32>
    %cst_58 = arith.constant dense<0xFF800000> : vector<16xf32>
    %116 = vector.multi_reduction <maximumf>, %114, %cst_58 [1] : vector<16x16xf32> to vector<16xf32>
    %117 = vector.shape_cast %116 : vector<16xf32> to vector<16x1xf32>
    %118 = arith.maximumf %115, %117 : vector<16x1xf32>
    %119 = arith.subf %115, %118 : vector<16x1xf32>
    %120 = math.exp %119 : vector<16x1xf32>
    %121 = vector.broadcast %118 : vector<16x1xf32> to vector<16x16xf32>
    %122 = arith.subf %114, %121 : vector<16x16xf32>
    %123 = math.exp %122 : vector<16x16xf32>
    %c0_59 = arith.constant 0 : index
    %c3_60 = arith.constant 3 : index
    %124 = vector.load %arg8[%c0_59, %c3_60] : memref<16x8xf32, #tpu.memory_space<vmem>>, vector<16x1xf32>
    %125 = arith.mulf %120, %124 : vector<16x1xf32>
    %cst_61 = arith.constant dense<0.000000e+00> : vector<16xf32>
    %126 = vector.multi_reduction <add>, %123, %cst_61 [1] : vector<16x16xf32> to vector<16xf32>
    %127 = vector.shape_cast %126 : vector<16xf32> to vector<16x1xf32>
    %128 = arith.addf %125, %127 : vector<16x1xf32>
    %c0_62 = arith.constant 0 : index
    %c3_63 = arith.constant 3 : index
    %129 = vector.load %arg8[%c0_62, %c3_63] : memref<16x8xf32, #tpu.memory_space<vmem>>, vector<16x1xf32>
    tpu.vector_store %arg8[%c0_62, %c3_63], %128 {strides = array<i32>} : memref<16x8xf32, #tpu.memory_space<vmem>>, vector<16x1xf32>,
    %130 = arith.truncf %123 : vector<16x16xf32> to vector<16x16xbf16>
    %131 = vector.extract_strided_slice %8 {offsets = [0, 12], sizes = [16, 4], strides = [1, 1]} : vector<16x32xbf16> to vector<16x4xbf16>
    %cst_64 = arith.constant dense<0.000000e+00> : vector<16x4xf32>
    %132 = tpu.matmul %130, %131, %cst_64 {dimension_numbers = #tpu.dot_dimension_numbers<[1], [0], [0], [1], [0, 0, 1, 1], [], []>} : vector<16x16xbf16>, vector<16x4xbf16>, vector<16x4xf32> -> vector<16x4xf32>
    %c0_65 = arith.constant 0 : index
    %c12 = arith.constant 12 : index
    %133 = vector.load %arg9[%c0_65, %c12] : memref<16x32xf32, #tpu.memory_space<vmem>>, vector<16x4xf32>
    %134 = vector.broadcast %120 : vector<16x1xf32> to vector<16x4xf32>
    %135 = arith.mulf %134, %133 : vector<16x4xf32>
    %136 = arith.addf %135, %132 : vector<16x4xf32>
    %c0_66 = arith.constant 0 : index
    %c12_67 = arith.constant 12 : index
    %137 = vector.load %arg9[%c0_66, %c12_67] : memref<16x32xf32, #tpu.memory_space<vmem>>, vector<16x4xf32>
    tpu.vector_store %arg9[%c0_66, %c12_67], %136 {strides = array<i32>} : memref<16x32xf32, #tpu.memory_space<vmem>>, vector<16x4xf32>,
    %c0_68 = arith.constant 0 : index
    %c3_69 = arith.constant 3 : index
    %138 = vector.load %arg7[%c0_68, %c3_69] : memref<16x8xf32, #tpu.memory_space<vmem>>, vector<16x1xf32>
    tpu.vector_store %arg7[%c0_68, %c3_69], %118 {strides = array<i32>} : memref<16x8xf32, #tpu.memory_space<vmem>>, vector<16x1xf32>,
    %139 = vector.extract_strided_slice %4 {offsets = [0, 16], sizes = [16, 4], strides = [1, 1]} : vector<16x32xbf16> to vector<16x4xbf16>
    %140 = vector.extract_strided_slice %6 {offsets = [0, 16], sizes = [16, 4], strides = [1, 1]} : vector<16x32xbf16> to vector<16x4xbf16>
    %cst_70 = arith.constant dense<0.000000e+00> : vector<16x16xf32>
    %141 = tpu.matmul %139, %140, %cst_70 {dimension_numbers = #tpu.dot_dimension_numbers<[1], [1], [0], [0], [0, 0, 1, 0], [], []>} : vector<16x4xbf16>, vector<16x4xbf16>, vector<16x16xf32> -> vector<16x16xf32>
    %cst_71 = arith.constant -2.38197633E+38 : f32
    %142 = vector.shape_cast %14 : vector<1x16xi1> to vector<1x16xi1>
    %143 = vector.broadcast %142 : vector<1x16xi1> to vector<16x16xi1>
    %144 = vector.broadcast %cst_71 : f32 to vector<16x16xf32>
    %145 = arith.select %143, %141, %144 : vector<16x16xi1>, vector<16x16xf32>
    %c0_72 = arith.constant 0 : index
    %c4_73 = arith.constant 4 : index
    %146 = vector.load %arg7[%c0_72, %c4_73] : memref<16x8xf32, #tpu.memory_space<vmem>>, vector<16x1xf32>
    %cst_74 = arith.constant dense<0xFF800000> : vector<16xf32>
    %147 = vector.multi_reduction <maximumf>, %145, %cst_74 [1] : vector<16x16xf32> to vector<16xf32>
    %148 = vector.shape_cast %147 : vector<16xf32> to vector<16x1xf32>
    %149 = arith.maximumf %146, %148 : vector<16x1xf32>
    %150 = arith.subf %146, %149 : vector<16x1xf32>
    %151 = math.exp %150 : vector<16x1xf32>
    %152 = vector.broadcast %149 : vector<16x1xf32> to vector<16x16xf32>
    %153 = arith.subf %145, %152 : vector<16x16xf32>
    %154 = math.exp %153 : vector<16x16xf32>
    %c0_75 = arith.constant 0 : index
    %c4_76 = arith.constant 4 : index
    %155 = vector.load %arg8[%c0_75, %c4_76] : memref<16x8xf32, #tpu.memory_space<vmem>>, vector<16x1xf32>
    %156 = arith.mulf %151, %155 : vector<16x1xf32>
    %cst_77 = arith.constant dense<0.000000e+00> : vector<16xf32>
    %157 = vector.multi_reduction <add>, %154, %cst_77 [1] : vector<16x16xf32> to vector<16xf32>
    %158 = vector.shape_cast %157 : vector<16xf32> to vector<16x1xf32>
    %159 = arith.addf %156, %158 : vector<16x1xf32>
    %c0_78 = arith.constant 0 : index
    %c4_79 = arith.constant 4 : index
    %160 = vector.load %arg8[%c0_78, %c4_79] : memref<16x8xf32, #tpu.memory_space<vmem>>, vector<16x1xf32>
    tpu.vector_store %arg8[%c0_78, %c4_79], %159 {strides = array<i32>} : memref<16x8xf32, #tpu.memory_space<vmem>>, vector<16x1xf32>,
    %161 = arith.truncf %154 : vector<16x16xf32> to vector<16x16xbf16>
    %162 = vector.extract_strided_slice %8 {offsets = [0, 16], sizes = [16, 4], strides = [1, 1]} : vector<16x32xbf16> to vector<16x4xbf16>
    %cst_80 = arith.constant dense<0.000000e+00> : vector<16x4xf32>
    %163 = tpu.matmul %161, %162, %cst_80 {dimension_numbers = #tpu.dot_dimension_numbers<[1], [0], [0], [1], [0, 0, 1, 1], [], []>} : vector<16x16xbf16>, vector<16x4xbf16>, vector<16x4xf32> -> vector<16x4xf32>
    %c0_81 = arith.constant 0 : index
    %c16 = arith.constant 16 : index
    %164 = vector.load %arg9[%c0_81, %c16] : memref<16x32xf32, #tpu.memory_space<vmem>>, vector<16x4xf32>
    %165 = vector.broadcast %151 : vector<16x1xf32> to vector<16x4xf32>
    %166 = arith.mulf %165, %164 : vector<16x4xf32>
    %167 = arith.addf %166, %163 : vector<16x4xf32>
    %c0_82 = arith.constant 0 : index
    %c16_83 = arith.constant 16 : index
    %168 = vector.load %arg9[%c0_82, %c16_83] : memref<16x32xf32, #tpu.memory_space<vmem>>, vector<16x4xf32>
    tpu.vector_store %arg9[%c0_82, %c16_83], %167 {strides = array<i32>} : memref<16x32xf32, #tpu.memory_space<vmem>>, vector<16x4xf32>,
    %c0_84 = arith.constant 0 : index
    %c4_85 = arith.constant 4 : index
    %169 = vector.load %arg7[%c0_84, %c4_85] : memref<16x8xf32, #tpu.memory_space<vmem>>, vector<16x1xf32>
    tpu.vector_store %arg7[%c0_84, %c4_85], %149 {strides = array<i32>} : memref<16x8xf32, #tpu.memory_space<vmem>>, vector<16x1xf32>,
    %170 = vector.extract_strided_slice %4 {offsets = [0, 20], sizes = [16, 4], strides = [1, 1]} : vector<16x32xbf16> to vector<16x4xbf16>
    %171 = vector.extract_strided_slice %6 {offsets = [0, 20], sizes = [16, 4], strides = [1, 1]} : vector<16x32xbf16> to vector<16x4xbf16>
    %cst_86 = arith.constant dense<0.000000e+00> : vector<16x16xf32>
    %172 = tpu.matmul %170, %171, %cst_86 {dimension_numbers = #tpu.dot_dimension_numbers<[1], [1], [0], [0], [0, 0, 1, 0], [], []>} : vector<16x4xbf16>, vector<16x4xbf16>, vector<16x16xf32> -> vector<16x16xf32>
    %cst_87 = arith.constant -2.38197633E+38 : f32
    %173 = vector.shape_cast %14 : vector<1x16xi1> to vector<1x16xi1>
    %174 = vector.broadcast %173 : vector<1x16xi1> to vector<16x16xi1>
    %175 = vector.broadcast %cst_87 : f32 to vector<16x16xf32>
    %176 = arith.select %174, %172, %175 : vector<16x16xi1>, vector<16x16xf32>
    %c0_88 = arith.constant 0 : index
    %c5 = arith.constant 5 : index
    %177 = vector.load %arg7[%c0_88, %c5] : memref<16x8xf32, #tpu.memory_space<vmem>>, vector<16x1xf32>
    %cst_89 = arith.constant dense<0xFF800000> : vector<16xf32>
    %178 = vector.multi_reduction <maximumf>, %176, %cst_89 [1] : vector<16x16xf32> to vector<16xf32>
    %179 = vector.shape_cast %178 : vector<16xf32> to vector<16x1xf32>
    %180 = arith.maximumf %177, %179 : vector<16x1xf32>
    %181 = arith.subf %177, %180 : vector<16x1xf32>
    %182 = math.exp %181 : vector<16x1xf32>
    %183 = vector.broadcast %180 : vector<16x1xf32> to vector<16x16xf32>
    %184 = arith.subf %176, %183 : vector<16x16xf32>
    %185 = math.exp %184 : vector<16x16xf32>
    %c0_90 = arith.constant 0 : index
    %c5_91 = arith.constant 5 : index
    %186 = vector.load %arg8[%c0_90, %c5_91] : memref<16x8xf32, #tpu.memory_space<vmem>>, vector<16x1xf32>
    %187 = arith.mulf %182, %186 : vector<16x1xf32>
    %cst_92 = arith.constant dense<0.000000e+00> : vector<16xf32>
    %188 = vector.multi_reduction <add>, %185, %cst_92 [1] : vector<16x16xf32> to vector<16xf32>
    %189 = vector.shape_cast %188 : vector<16xf32> to vector<16x1xf32>
    %190 = arith.addf %187, %189 : vector<16x1xf32>
    %c0_93 = arith.constant 0 : index
    %c5_94 = arith.constant 5 : index
    %191 = vector.load %arg8[%c0_93, %c5_94] : memref<16x8xf32, #tpu.memory_space<vmem>>, vector<16x1xf32>
    tpu.vector_store %arg8[%c0_93, %c5_94], %190 {strides = array<i32>} : memref<16x8xf32, #tpu.memory_space<vmem>>, vector<16x1xf32>,
    %192 = arith.truncf %185 : vector<16x16xf32> to vector<16x16xbf16>
    %193 = vector.extract_strided_slice %8 {offsets = [0, 20], sizes = [16, 4], strides = [1, 1]} : vector<16x32xbf16> to vector<16x4xbf16>
    %cst_95 = arith.constant dense<0.000000e+00> : vector<16x4xf32>
    %194 = tpu.matmul %192, %193, %cst_95 {dimension_numbers = #tpu.dot_dimension_numbers<[1], [0], [0], [1], [0, 0, 1, 1], [], []>} : vector<16x16xbf16>, vector<16x4xbf16>, vector<16x4xf32> -> vector<16x4xf32>
    %c0_96 = arith.constant 0 : index
    %c20 = arith.constant 20 : index
    %195 = vector.load %arg9[%c0_96, %c20] : memref<16x32xf32, #tpu.memory_space<vmem>>, vector<16x4xf32>
    %196 = vector.broadcast %182 : vector<16x1xf32> to vector<16x4xf32>
    %197 = arith.mulf %196, %195 : vector<16x4xf32>
    %198 = arith.addf %197, %194 : vector<16x4xf32>
    %c0_97 = arith.constant 0 : index
    %c20_98 = arith.constant 20 : index
    %199 = vector.load %arg9[%c0_97, %c20_98] : memref<16x32xf32, #tpu.memory_space<vmem>>, vector<16x4xf32>
    tpu.vector_store %arg9[%c0_97, %c20_98], %198 {strides = array<i32>} : memref<16x32xf32, #tpu.memory_space<vmem>>, vector<16x4xf32>,
    %c0_99 = arith.constant 0 : index
    %c5_100 = arith.constant 5 : index
    %200 = vector.load %arg7[%c0_99, %c5_100] : memref<16x8xf32, #tpu.memory_space<vmem>>, vector<16x1xf32>
    tpu.vector_store %arg7[%c0_99, %c5_100], %180 {strides = array<i32>} : memref<16x8xf32, #tpu.memory_space<vmem>>, vector<16x1xf32>,
    %201 = vector.extract_strided_slice %4 {offsets = [0, 24], sizes = [16, 4], strides = [1, 1]} : vector<16x32xbf16> to vector<16x4xbf16>
    %202 = vector.extract_strided_slice %6 {offsets = [0, 24], sizes = [16, 4], strides = [1, 1]} : vector<16x32xbf16> to vector<16x4xbf16>
    %cst_101 = arith.constant dense<0.000000e+00> : vector<16x16xf32>
    %203 = tpu.matmul %201, %202, %cst_101 {dimension_numbers = #tpu.dot_dimension_numbers<[1], [1], [0], [0], [0, 0, 1, 0], [], []>} : vector<16x4xbf16>, vector<16x4xbf16>, vector<16x16xf32> -> vector<16x16xf32>
    %cst_102 = arith.constant -2.38197633E+38 : f32
    %204 = vector.shape_cast %14 : vector<1x16xi1> to vector<1x16xi1>
    %205 = vector.broadcast %204 : vector<1x16xi1> to vector<16x16xi1>
    %206 = vector.broadcast %cst_102 : f32 to vector<16x16xf32>
    %207 = arith.select %205, %203, %206 : vector<16x16xi1>, vector<16x16xf32>
    %c0_103 = arith.constant 0 : index
    %c6 = arith.constant 6 : index
    %208 = vector.load %arg7[%c0_103, %c6] : memref<16x8xf32, #tpu.memory_space<vmem>>, vector<16x1xf32>
    %cst_104 = arith.constant dense<0xFF800000> : vector<16xf32>
    %209 = vector.multi_reduction <maximumf>, %207, %cst_104 [1] : vector<16x16xf32> to vector<16xf32>
    %210 = vector.shape_cast %209 : vector<16xf32> to vector<16x1xf32>
    %211 = arith.maximumf %208, %210 : vector<16x1xf32>
    %212 = arith.subf %208, %211 : vector<16x1xf32>
    %213 = math.exp %212 : vector<16x1xf32>
    %214 = vector.broadcast %211 : vector<16x1xf32> to vector<16x16xf32>
    %215 = arith.subf %207, %214 : vector<16x16xf32>
    %216 = math.exp %215 : vector<16x16xf32>
    %c0_105 = arith.constant 0 : index
    %c6_106 = arith.constant 6 : index
    %217 = vector.load %arg8[%c0_105, %c6_106] : memref<16x8xf32, #tpu.memory_space<vmem>>, vector<16x1xf32>
    %218 = arith.mulf %213, %217 : vector<16x1xf32>
    %cst_107 = arith.constant dense<0.000000e+00> : vector<16xf32>
    %219 = vector.multi_reduction <add>, %216, %cst_107 [1] : vector<16x16xf32> to vector<16xf32>
    %220 = vector.shape_cast %219 : vector<16xf32> to vector<16x1xf32>
    %221 = arith.addf %218, %220 : vector<16x1xf32>
    %c0_108 = arith.constant 0 : index
    %c6_109 = arith.constant 6 : index
    %222 = vector.load %arg8[%c0_108, %c6_109] : memref<16x8xf32, #tpu.memory_space<vmem>>, vector<16x1xf32>
    tpu.vector_store %arg8[%c0_108, %c6_109], %221 {strides = array<i32>} : memref<16x8xf32, #tpu.memory_space<vmem>>, vector<16x1xf32>,
    %223 = arith.truncf %216 : vector<16x16xf32> to vector<16x16xbf16>
    %224 = vector.extract_strided_slice %8 {offsets = [0, 24], sizes = [16, 4], strides = [1, 1]} : vector<16x32xbf16> to vector<16x4xbf16>
    %cst_110 = arith.constant dense<0.000000e+00> : vector<16x4xf32>
    %225 = tpu.matmul %223, %224, %cst_110 {dimension_numbers = #tpu.dot_dimension_numbers<[1], [0], [0], [1], [0, 0, 1, 1], [], []>} : vector<16x16xbf16>, vector<16x4xbf16>, vector<16x4xf32> -> vector<16x4xf32>
    %c0_111 = arith.constant 0 : index
    %c24 = arith.constant 24 : index
    %226 = vector.load %arg9[%c0_111, %c24] : memref<16x32xf32, #tpu.memory_space<vmem>>, vector<16x4xf32>
    %227 = vector.broadcast %213 : vector<16x1xf32> to vector<16x4xf32>
    %228 = arith.mulf %227, %226 : vector<16x4xf32>
    %229 = arith.addf %228, %225 : vector<16x4xf32>
    %c0_112 = arith.constant 0 : index
    %c24_113 = arith.constant 24 : index
    %230 = vector.load %arg9[%c0_112, %c24_113] : memref<16x32xf32, #tpu.memory_space<vmem>>, vector<16x4xf32>
    tpu.vector_store %arg9[%c0_112, %c24_113], %229 {strides = array<i32>} : memref<16x32xf32, #tpu.memory_space<vmem>>, vector<16x4xf32>,
    %c0_114 = arith.constant 0 : index
    %c6_115 = arith.constant 6 : index
    %231 = vector.load %arg7[%c0_114, %c6_115] : memref<16x8xf32, #tpu.memory_space<vmem>>, vector<16x1xf32>
    tpu.vector_store %arg7[%c0_114, %c6_115], %211 {strides = array<i32>} : memref<16x8xf32, #tpu.memory_space<vmem>>, vector<16x1xf32>,
    %232 = vector.extract_strided_slice %4 {offsets = [0, 28], sizes = [16, 4], strides = [1, 1]} : vector<16x32xbf16> to vector<16x4xbf16>
    %233 = vector.extract_strided_slice %6 {offsets = [0, 28], sizes = [16, 4], strides = [1, 1]} : vector<16x32xbf16> to vector<16x4xbf16>
    %cst_116 = arith.constant dense<0.000000e+00> : vector<16x16xf32>
    %234 = tpu.matmul %232, %233, %cst_116 {dimension_numbers = #tpu.dot_dimension_numbers<[1], [1], [0], [0], [0, 0, 1, 0], [], []>} : vector<16x4xbf16>, vector<16x4xbf16>, vector<16x16xf32> -> vector<16x16xf32>
    %cst_117 = arith.constant -2.38197633E+38 : f32
    %235 = vector.shape_cast %14 : vector<1x16xi1> to vector<1x16xi1>
    %236 = vector.broadcast %235 : vector<1x16xi1> to vector<16x16xi1>
    %237 = vector.broadcast %cst_117 : f32 to vector<16x16xf32>
    %238 = arith.select %236, %234, %237 : vector<16x16xi1>, vector<16x16xf32>
    %c0_118 = arith.constant 0 : index
    %c7 = arith.constant 7 : index
    %239 = vector.load %arg7[%c0_118, %c7] : memref<16x8xf32, #tpu.memory_space<vmem>>, vector<16x1xf32>
    %cst_119 = arith.constant dense<0xFF800000> : vector<16xf32>
    %240 = vector.multi_reduction <maximumf>, %238, %cst_119 [1] : vector<16x16xf32> to vector<16xf32>
    %241 = vector.shape_cast %240 : vector<16xf32> to vector<16x1xf32>
    %242 = arith.maximumf %239, %241 : vector<16x1xf32>
    %243 = arith.subf %239, %242 : vector<16x1xf32>
    %244 = math.exp %243 : vector<16x1xf32>
    %245 = vector.broadcast %242 : vector<16x1xf32> to vector<16x16xf32>
    %246 = arith.subf %238, %245 : vector<16x16xf32>
    %247 = math.exp %246 : vector<16x16xf32>
    %c0_120 = arith.constant 0 : index
    %c7_121 = arith.constant 7 : index
    %248 = vector.load %arg8[%c0_120, %c7_121] : memref<16x8xf32, #tpu.memory_space<vmem>>, vector<16x1xf32>
    %249 = arith.mulf %244, %248 : vector<16x1xf32>
    %cst_122 = arith.constant dense<0.000000e+00> : vector<16xf32>
    %250 = vector.multi_reduction <add>, %247, %cst_122 [1] : vector<16x16xf32> to vector<16xf32>
    %251 = vector.shape_cast %250 : vector<16xf32> to vector<16x1xf32>
    %252 = arith.addf %249, %251 : vector<16x1xf32>
    %c0_123 = arith.constant 0 : index
    %c7_124 = arith.constant 7 : index
    %253 = vector.load %arg8[%c0_123, %c7_124] : memref<16x8xf32, #tpu.memory_space<vmem>>, vector<16x1xf32>
    tpu.vector_store %arg8[%c0_123, %c7_124], %252 {strides = array<i32>} : memref<16x8xf32, #tpu.memory_space<vmem>>, vector<16x1xf32>,
    %254 = arith.truncf %247 : vector<16x16xf32> to vector<16x16xbf16>
    %255 = vector.extract_strided_slice %8 {offsets = [0, 28], sizes = [16, 4], strides = [1, 1]} : vector<16x32xbf16> to vector<16x4xbf16>
    %cst_125 = arith.constant dense<0.000000e+00> : vector<16x4xf32>
    %256 = tpu.matmul %254, %255, %cst_125 {dimension_numbers = #tpu.dot_dimension_numbers<[1], [0], [0], [1], [0, 0, 1, 1], [], []>} : vector<16x16xbf16>, vector<16x4xbf16>, vector<16x4xf32> -> vector<16x4xf32>
    %c0_126 = arith.constant 0 : index
    %c28 = arith.constant 28 : index
    %257 = vector.load %arg9[%c0_126, %c28] : memref<16x32xf32, #tpu.memory_space<vmem>>, vector<16x4xf32>
    %258 = vector.broadcast %244 : vector<16x1xf32> to vector<16x4xf32>
    %259 = arith.mulf %258, %257 : vector<16x4xf32>
    %260 = arith.addf %259, %256 : vector<16x4xf32>
    %c0_127 = arith.constant 0 : index
    %c28_128 = arith.constant 28 : index
    %261 = vector.load %arg9[%c0_127, %c28_128] : memref<16x32xf32, #tpu.memory_space<vmem>>, vector<16x4xf32>
    tpu.vector_store %arg9[%c0_127, %c28_128], %260 {strides = array<i32>} : memref<16x32xf32, #tpu.memory_space<vmem>>, vector<16x4xf32>,
    %c0_129 = arith.constant 0 : index
    %c7_130 = arith.constant 7 : index
    %262 = vector.load %arg7[%c0_129, %c7_130] : memref<16x8xf32, #tpu.memory_space<vmem>>, vector<16x1xf32>
    tpu.vector_store %arg7[%c0_129, %c7_130], %242 {strides = array<i32>} : memref<16x8xf32, #tpu.memory_space<vmem>>, vector<16x1xf32>,
    %c0_i32_131 = arith.constant 0 : i32
    %263 = arith.cmpi eq, %arg2, %c0_i32_131 : i32
    %264 = arith.extui %263 : i1 to i32
    %c0_i32_132 = arith.constant 0 : i32
    %265 = arith.cmpi ne, %264, %c0_i32_132 : i32
    scf.if %265 {
      %c0_133 = arith.constant 0 : index
      %c0_134 = arith.constant 0 : index
      %266 = vector.load %arg9[%c0_133, %c0_134] : memref<16x32xf32, #tpu.memory_space<vmem>>, vector<16x4xf32>
      %c0_135 = arith.constant 0 : index
      %c0_136 = arith.constant 0 : index
      %267 = vector.load %arg8[%c0_135, %c0_136] : memref<16x8xf32, #tpu.memory_space<vmem>>, vector<16x1xf32>
      %268 = vector.broadcast %267 : vector<16x1xf32> to vector<16x4xf32>
      %269 = arith.divf %266, %268 : vector<16x4xf32>
      %270 = arith.truncf %269 : vector<16x4xf32> to vector<16x4xbf16>
      %c0_137 = arith.constant 0 : index
      %c0_138 = arith.constant 0 : index
      %c0_139 = arith.constant 0 : index
      %271 = vector.load %arg6[%c0_137, %c0_138, %c0_139] : memref<1x16x32xbf16, #tpu.memory_space<vmem>>, vector<1x16x4xbf16>
      %272 = vector.shape_cast %271 : vector<1x16x4xbf16> to vector<16x4xbf16>
      %273 = vector.shape_cast %270 : vector<16x4xbf16> to vector<1x16x4xbf16>
      tpu.vector_store %arg6[%c0_137, %c0_138, %c0_139], %273 {strides = array<i32>} : memref<1x16x32xbf16, #tpu.memory_space<vmem>>, vector<1x16x4xbf16>,
      %c0_140 = arith.constant 0 : index
      %c4_141 = arith.constant 4 : index
      %274 = vector.load %arg9[%c0_140, %c4_141] : memref<16x32xf32, #tpu.memory_space<vmem>>, vector<16x4xf32>
      %c0_142 = arith.constant 0 : index
      %c1_143 = arith.constant 1 : index
      %275 = vector.load %arg8[%c0_142, %c1_143] : memref<16x8xf32, #tpu.memory_space<vmem>>, vector<16x1xf32>
      %276 = vector.broadcast %275 : vector<16x1xf32> to vector<16x4xf32>
      %277 = arith.divf %274, %276 : vector<16x4xf32>
      %278 = arith.truncf %277 : vector<16x4xf32> to vector<16x4xbf16>
      %c0_144 = arith.constant 0 : index
      %c0_145 = arith.constant 0 : index
      %c4_146 = arith.constant 4 : index
      %279 = vector.load %arg6[%c0_144, %c0_145, %c4_146] : memref<1x16x32xbf16, #tpu.memory_space<vmem>>, vector<1x16x4xbf16>
      %280 = vector.shape_cast %279 : vector<1x16x4xbf16> to vector<16x4xbf16>
      %281 = vector.shape_cast %278 : vector<16x4xbf16> to vector<1x16x4xbf16>
      tpu.vector_store %arg6[%c0_144, %c0_145, %c4_146], %281 {strides = array<i32>} : memref<1x16x32xbf16, #tpu.memory_space<vmem>>, vector<1x16x4xbf16>,
      %c0_147 = arith.constant 0 : index
      %c8_148 = arith.constant 8 : index
      %282 = vector.load %arg9[%c0_147, %c8_148] : memref<16x32xf32, #tpu.memory_space<vmem>>, vector<16x4xf32>
      %c0_149 = arith.constant 0 : index
      %c2_150 = arith.constant 2 : index
      %283 = vector.load %arg8[%c0_149, %c2_150] : memref<16x8xf32, #tpu.memory_space<vmem>>, vector<16x1xf32>
      %284 = vector.broadcast %283 : vector<16x1xf32> to vector<16x4xf32>
      %285 = arith.divf %282, %284 : vector<16x4xf32>
      %286 = arith.truncf %285 : vector<16x4xf32> to vector<16x4xbf16>
      %c0_151 = arith.constant 0 : index
      %c0_152 = arith.constant 0 : index
      %c8_153 = arith.constant 8 : index
      %287 = vector.load %arg6[%c0_151, %c0_152, %c8_153] : memref<1x16x32xbf16, #tpu.memory_space<vmem>>, vector<1x16x4xbf16>
      %288 = vector.shape_cast %287 : vector<1x16x4xbf16> to vector<16x4xbf16>
      %289 = vector.shape_cast %286 : vector<16x4xbf16> to vector<1x16x4xbf16>
      tpu.vector_store %arg6[%c0_151, %c0_152, %c8_153], %289 {strides = array<i32>} : memref<1x16x32xbf16, #tpu.memory_space<vmem>>, vector<1x16x4xbf16>,
      %c0_154 = arith.constant 0 : index
      %c12_155 = arith.constant 12 : index
      %290 = vector.load %arg9[%c0_154, %c12_155] : memref<16x32xf32, #tpu.memory_space<vmem>>, vector<16x4xf32>
      %c0_156 = arith.constant 0 : index
      %c3_157 = arith.constant 3 : index
      %291 = vector.load %arg8[%c0_156, %c3_157] : memref<16x8xf32, #tpu.memory_space<vmem>>, vector<16x1xf32>
      %292 = vector.broadcast %291 : vector<16x1xf32> to vector<16x4xf32>
      %293 = arith.divf %290, %292 : vector<16x4xf32>
      %294 = arith.truncf %293 : vector<16x4xf32> to vector<16x4xbf16>
      %c0_158 = arith.constant 0 : index
      %c0_159 = arith.constant 0 : index
      %c12_160 = arith.constant 12 : index
      %295 = vector.load %arg6[%c0_158, %c0_159, %c12_160] : memref<1x16x32xbf16, #tpu.memory_space<vmem>>, vector<1x16x4xbf16>
      %296 = vector.shape_cast %295 : vector<1x16x4xbf16> to vector<16x4xbf16>
      %297 = vector.shape_cast %294 : vector<16x4xbf16> to vector<1x16x4xbf16>
      tpu.vector_store %arg6[%c0_158, %c0_159, %c12_160], %297 {strides = array<i32>} : memref<1x16x32xbf16, #tpu.memory_space<vmem>>, vector<1x16x4xbf16>,
      %c0_161 = arith.constant 0 : index
      %c16_162 = arith.constant 16 : index
      %298 = vector.load %arg9[%c0_161, %c16_162] : memref<16x32xf32, #tpu.memory_space<vmem>>, vector<16x4xf32>
      %c0_163 = arith.constant 0 : index
      %c4_164 = arith.constant 4 : index
      %299 = vector.load %arg8[%c0_163, %c4_164] : memref<16x8xf32, #tpu.memory_space<vmem>>, vector<16x1xf32>
      %300 = vector.broadcast %299 : vector<16x1xf32> to vector<16x4xf32>
      %301 = arith.divf %298, %300 : vector<16x4xf32>
      %302 = arith.truncf %301 : vector<16x4xf32> to vector<16x4xbf16>
      %c0_165 = arith.constant 0 : index
      %c0_166 = arith.constant 0 : index
      %c16_167 = arith.constant 16 : index
      %303 = vector.load %arg6[%c0_165, %c0_166, %c16_167] : memref<1x16x32xbf16, #tpu.memory_space<vmem>>, vector<1x16x4xbf16>
      %304 = vector.shape_cast %303 : vector<1x16x4xbf16> to vector<16x4xbf16>
      %305 = vector.shape_cast %302 : vector<16x4xbf16> to vector<1x16x4xbf16>
      tpu.vector_store %arg6[%c0_165, %c0_166, %c16_167], %305 {strides = array<i32>} : memref<1x16x32xbf16, #tpu.memory_space<vmem>>, vector<1x16x4xbf16>,
      %c0_168 = arith.constant 0 : index
      %c20_169 = arith.constant 20 : index
      %306 = vector.load %arg9[%c0_168, %c20_169] : memref<16x32xf32, #tpu.memory_space<vmem>>, vector<16x4xf32>
      %c0_170 = arith.constant 0 : index
      %c5_171 = arith.constant 5 : index
      %307 = vector.load %arg8[%c0_170, %c5_171] : memref<16x8xf32, #tpu.memory_space<vmem>>, vector<16x1xf32>
      %308 = vector.broadcast %307 : vector<16x1xf32> to vector<16x4xf32>
      %309 = arith.divf %306, %308 : vector<16x4xf32>
      %310 = arith.truncf %309 : vector<16x4xf32> to vector<16x4xbf16>
      %c0_172 = arith.constant 0 : index
      %c0_173 = arith.constant 0 : index
      %c20_174 = arith.constant 20 : index
      %311 = vector.load %arg6[%c0_172, %c0_173, %c20_174] : memref<1x16x32xbf16, #tpu.memory_space<vmem>>, vector<1x16x4xbf16>
      %312 = vector.shape_cast %311 : vector<1x16x4xbf16> to vector<16x4xbf16>
      %313 = vector.shape_cast %310 : vector<16x4xbf16> to vector<1x16x4xbf16>
      tpu.vector_store %arg6[%c0_172, %c0_173, %c20_174], %313 {strides = array<i32>} : memref<1x16x32xbf16, #tpu.memory_space<vmem>>, vector<1x16x4xbf16>,
      %c0_175 = arith.constant 0 : index
      %c24_176 = arith.constant 24 : index
      %314 = vector.load %arg9[%c0_175, %c24_176] : memref<16x32xf32, #tpu.memory_space<vmem>>, vector<16x4xf32>
      %c0_177 = arith.constant 0 : index
      %c6_178 = arith.constant 6 : index
      %315 = vector.load %arg8[%c0_177, %c6_178] : memref<16x8xf32, #tpu.memory_space<vmem>>, vector<16x1xf32>
      %316 = vector.broadcast %315 : vector<16x1xf32> to vector<16x4xf32>
      %317 = arith.divf %314, %316 : vector<16x4xf32>
      %318 = arith.truncf %317 : vector<16x4xf32> to vector<16x4xbf16>
      %c0_179 = arith.constant 0 : index
      %c0_180 = arith.constant 0 : index
      %c24_181 = arith.constant 24 : index
      %319 = vector.load %arg6[%c0_179, %c0_180, %c24_181] : memref<1x16x32xbf16, #tpu.memory_space<vmem>>, vector<1x16x4xbf16>
      %320 = vector.shape_cast %319 : vector<1x16x4xbf16> to vector<16x4xbf16>
      %321 = vector.shape_cast %318 : vector<16x4xbf16> to vector<1x16x4xbf16>
      tpu.vector_store %arg6[%c0_179, %c0_180, %c24_181], %321 {strides = array<i32>} : memref<1x16x32xbf16, #tpu.memory_space<vmem>>, vector<1x16x4xbf16>,
      %c0_182 = arith.constant 0 : index
      %c28_183 = arith.constant 28 : index
      %322 = vector.load %arg9[%c0_182, %c28_183] : memref<16x32xf32, #tpu.memory_space<vmem>>, vector<16x4xf32>
      %c0_184 = arith.constant 0 : index
      %c7_185 = arith.constant 7 : index
      %323 = vector.load %arg8[%c0_184, %c7_185] : memref<16x8xf32, #tpu.memory_space<vmem>>, vector<16x1xf32>
      %324 = vector.broadcast %323 : vector<16x1xf32> to vector<16x4xf32>
      %325 = arith.divf %322, %324 : vector<16x4xf32>
      %326 = arith.truncf %325 : vector<16x4xf32> to vector<16x4xbf16>
      %c0_186 = arith.constant 0 : index
      %c0_187 = arith.constant 0 : index
      %c28_188 = arith.constant 28 : index
      %327 = vector.load %arg6[%c0_186, %c0_187, %c28_188] : memref<1x16x32xbf16, #tpu.memory_space<vmem>>, vector<1x16x4xbf16>
      %328 = vector.shape_cast %327 : vector<1x16x4xbf16> to vector<16x4xbf16>
      %329 = vector.shape_cast %326 : vector<16x4xbf16> to vector<1x16x4xbf16>
      tpu.vector_store %arg6[%c0_186, %c0_187, %c28_188], %329 {strides = array<i32>} : memref<1x16x32xbf16, #tpu.memory_space<vmem>>, vector<1x16x4xbf16>,
    } else {
    }
    return
  }
  func.func @transform_0(%arg0: i32, %arg1: i32, %arg2: i32) -> (i32, i32, i32) {
    %c0_i32 = arith.constant 0 : i32
    %c0_i32_0 = arith.constant 0 : i32
    return %arg0, %arg1, %c0_i32 : i32, i32, i32
  }
  func.func @transform_1(%arg0: i32, %arg1: i32, %arg2: i32) -> (i32, i32, i32) {
    %c0_i32 = arith.constant 0 : i32
    %c0_i32_0 = arith.constant 0 : i32
    return %arg0, %arg2, %c0_i32 : i32, i32, i32
  }
  func.func @transform_2(%arg0: i32, %arg1: i32, %arg2: i32) -> (i32, i32, i32) {
    %c0_i32 = arith.constant 0 : i32
    %c0_i32_0 = arith.constant 0 : i32
    return %arg0, %arg2, %c0_i32 : i32, i32, i32
  }
  func.func @transform_3(%arg0: i32, %arg1: i32, %arg2: i32) -> (i32, i32, i32) {
    %c0_i32 = arith.constant 0 : i32
    %c0_i32_0 = arith.constant 0 : i32
    return %arg0, %arg1, %c0_i32 : i32, i32, i32
  }
}

module attributes {stable_mosaic.version = 11 : i64} {
  func.func @kernel(%arg0: i32, %arg1: i32, %arg2: i32, %arg3: memref<32x32xbf16, #tpu.memory_space<vmem>>, %arg4: memref<32x32xf32, #tpu.memory_space<vmem>>, %arg5: memref<1x32xf32, #tpu.memory_space<vmem>>, %arg6: memref<32x32xf32, #tpu.memory_space<vmem>>) attributes {dimension_semantics = [#tpu.dimension_semantics<parallel>, #tpu.dimension_semantics<parallel>, #tpu.dimension_semantics<arbitrary>], iteration_bounds = array<i64: 1, 1, 1>, scalar_prefetch = 0 : i64, scratch_operands = 0 : i64, tpu.core_type = #tpu.core_type<tc>, window_params = [{transform_indices = @transform_0, window_bounds = array<i64: 32, 32>}, {transform_indices = @transform_1, window_bounds = array<i64: 32, 32>}, {transform_indices = @transform_2, window_bounds = array<i64: 1, 32>}, {transform_indices = @transform_3, window_bounds = array<i64: 32, 32>}]} {
    %c0_i32 = arith.constant 0 : i32
    %0 = arith.cmpi eq, %arg2, %c0_i32 : i32
    %1 = arith.extui %0 : i1 to i32
    %c0_i32_0 = arith.constant 0 : i32
    %2 = arith.cmpi ne, %1, %c0_i32_0 : i32
    scf.if %2 {
      %cst_10 = arith.constant 0.000000e+00 : f32
      %13 = vector.broadcast %cst_10 : f32 to vector<32x32xf32>
      %c0_11 = arith.constant 0 : index
      %c0_12 = arith.constant 0 : index
      %14 = vector.load %arg6[%c0_11, %c0_12] : memref<32x32xf32, #tpu.memory_space<vmem>>, vector<32x32xf32>
      tpu.vector_store %arg6[%c0_11, %c0_12], %13 {strides = array<i32>} : memref<32x32xf32, #tpu.memory_space<vmem>>, vector<32x32xf32>,
    } else {
    }
    %c0 = arith.constant 0 : index
    %c0_1 = arith.constant 0 : index
    %3 = vector.load %arg3[%c0, %c0_1] : memref<32x32xbf16, #tpu.memory_space<vmem>>, vector<32x32xbf16>
    %c0_2 = arith.constant 0 : index
    %c0_3 = arith.constant 0 : index
    %4 = vector.load %arg4[%c0_2, %c0_3] : memref<32x32xf32, #tpu.memory_space<vmem>>, vector<32x32xf32>
    %c0_4 = arith.constant 0 : index
    %c0_5 = arith.constant 0 : index
    %5 = vector.load %arg6[%c0_4, %c0_5] : memref<32x32xf32, #tpu.memory_space<vmem>>, vector<32x32xf32>
    %6 = arith.truncf %4 : vector<32x32xf32> to vector<32x32xbf16>
    %cst = arith.constant dense<0.000000e+00> : vector<32x32xf32>
    %7 = tpu.matmul %3, %6, %cst {dimension_numbers = #tpu.dot_dimension_numbers<[1], [0], [0], [1], [0, 0, 1, 1], [], []>} : vector<32x32xbf16>, vector<32x32xbf16>, vector<32x32xf32> -> vector<32x32xf32>
    %8 = arith.addf %5, %7 : vector<32x32xf32>
    %c0_6 = arith.constant 0 : index
    %c0_7 = arith.constant 0 : index
    %9 = vector.load %arg6[%c0_6, %c0_7] : memref<32x32xf32, #tpu.memory_space<vmem>>, vector<32x32xf32>
    tpu.vector_store %arg6[%c0_6, %c0_7], %8 {strides = array<i32>} : memref<32x32xf32, #tpu.memory_space<vmem>>, vector<32x32xf32>,
    %c0_i32_8 = arith.constant 0 : i32
    %10 = arith.cmpi eq, %arg2, %c0_i32_8 : i32
    %11 = arith.extui %10 : i1 to i32
    %c0_i32_9 = arith.constant 0 : i32
    %12 = arith.cmpi ne, %11, %c0_i32_9 : i32
    scf.if %12 {
      %c0_10 = arith.constant 0 : index
      %c0_11 = arith.constant 0 : index
      %13 = vector.load %arg6[%c0_10, %c0_11] : memref<32x32xf32, #tpu.memory_space<vmem>>, vector<32x32xf32>
      %c0_12 = arith.constant 0 : index
      %c0_13 = arith.constant 0 : index
      %14 = vector.load %arg5[%c0_12, %c0_13] : memref<1x32xf32, #tpu.memory_space<vmem>>, vector<1x32xf32>
      %15 = vector.broadcast %14 : vector<1x32xf32> to vector<32x32xf32>
      %16 = arith.addf %13, %15 : vector<32x32xf32>
      %c0_14 = arith.constant 0 : index
      %c0_15 = arith.constant 0 : index
      %17 = vector.load %arg6[%c0_14, %c0_15] : memref<32x32xf32, #tpu.memory_space<vmem>>, vector<32x32xf32>
      tpu.vector_store %arg6[%c0_14, %c0_15], %16 {strides = array<i32>} : memref<32x32xf32, #tpu.memory_space<vmem>>, vector<32x32xf32>,
    } else {
    }
    return
  }
  func.func @transform_0(%arg0: i32, %arg1: i32, %arg2: i32) -> (i32, i32) {
    %c0_i32 = arith.constant 0 : i32
    return %arg0, %arg2 : i32, i32
  }
  func.func @transform_1(%arg0: i32, %arg1: i32, %arg2: i32) -> (i32, i32) {
    %c0_i32 = arith.constant 0 : i32
    return %arg2, %arg1 : i32, i32
  }
  func.func @transform_2(%arg0: i32, %arg1: i32, %arg2: i32) -> (i32, i32) {
    %c0_i32 = arith.constant 0 : i32
    %c0_i32_0 = arith.constant 0 : i32
    return %c0_i32, %arg1 : i32, i32
  }
  func.func @transform_3(%arg0: i32, %arg1: i32, %arg2: i32) -> (i32, i32) {
    %c0_i32 = arith.constant 0 : i32
    return %arg0, %arg1 : i32, i32
  }
}

</mosaic_0001>

<llo_original>
// kernel: mem_eff_attention_forward.9
$region0: #{mem_eff_attention_forward.9}
  #allocation0 [shape = 'u32[]', space=smem, size = 0x4, offset = 0x4, fixed_abs, tag = 'smem constant byte address 0x4 - core index']
  #allocation1 [shape = 'u32[144,128]{1,0:T(1,128)}', space=vmem, size = 0x12000, scoped, tag = 'internal scratch']
  %s0 = inlined_call_operand.vmem [shape: bf16[32,32], index: 0, kind: input, shape index: {}]
  %s1 = inlined_call_operand.vmem [shape: f32[32,32], index: 1, kind: input, shape index: {}]
  %s2 = inlined_call_operand.vmem [shape: f32[1,32], index: 2, kind: input, shape index: {}]
  %s3 = inlined_call_operand.vmem [shape: f32[32,32], index: 3, kind: output, shape index: {}]
  %s4 = sld [smem:[#allocation0]]
  $region30: #{mem_eff_attention_forward.9} parent=0
    _
  %s6 = ssub.s32 1, %s4
  %s7 = scalar_select 0, %s6, %s4
  // Predicated region
  $region2: #{mem_eff_attention_forward.9} parent=0 // pred_check
    _
  $region3: #{mem_eff_attention_forward.9} parent=0 // pred_check_branch
    %9 = sbr.rel (0) target = $region5
  $region4: #{mem_eff_attention_forward.9} parent=0 // pred_region
    _
  $region5: #{mem_eff_attention_forward.9} parent=0 // pred_fallthru
    _
  // Predicated region
  $region6: #{mem_eff_attention_forward.9} parent=0 // pred_check
    _
  $region7: #{mem_eff_attention_forward.9} parent=0 // pred_check_branch
    %11 = sbr.rel (0) target = $region9
  $region8: #{mem_eff_attention_forward.9} parent=0 // pred_region
    _
  $region9: #{mem_eff_attention_forward.9} parent=0 // pred_fallthru
    _
  // Predicated region
  $region10: #{mem_eff_attention_forward.9} parent=0 // pred_check
    _
  $region11: #{mem_eff_attention_forward.9} parent=0 // pred_check_branch
    %13 = sbr.rel (0) target = $region13
  $region12: #{mem_eff_attention_forward.9} parent=0 // pred_region
    _
  $region13: #{mem_eff_attention_forward.9} parent=0 // pred_fallthru
    _
  %p15 = scmp.eq.s32.totalorder 0, 0
  // Predicated region
  $region14: #{mem_eff_attention_forward.9} parent=0 // pred_check
    %p16 = pneg %p15
  $region15: #{mem_eff_attention_forward.9} parent=0 // pred_check_branch
    %18 = sbr.rel (%p16) target = $region17
  $region16: #{mem_eff_attention_forward.9} parent=0 // pred_region
    %vm19 = vcmask 261120
    %20 = vst.msk [vmem:[%s3] sm:$0xff] %vm19, 0.0
    %21 = vst.msk [vmem:[%s3 + $0x8] sm:$0xff] %vm19, 0.0
    %22 = vst.msk [vmem:[%s3 + $0x10] sm:$0xff] %vm19, 0.0
    %23 = vst.msk [vmem:[%s3 + $0x18] sm:$0xff] %vm19, 0.0
  $region17: #{mem_eff_attention_forward.9} parent=0 // pred_fallthru
    _
  %v24 = vld [vmem:[%s0] sm:$0xf]
  %v25 = vld [vmem:[%s0 + $0x4] sm:$0xf]
  %v26 = vld [vmem:[%s0 + $0x8] sm:$0xf]
  %v27 = vld [vmem:[%s0 + $0xc] sm:$0xf]
  %v28 = vld [vmem:[%s1] sm:$0xff]
  %v29 = vld [vmem:[%s1 + $0x8] sm:$0xff]
  %v30 = vld [vmem:[%s1 + $0x10] sm:$0xff]
  %v31 = vld [vmem:[%s1 + $0x18] sm:$0xff]
  %v32 = vld [vmem:[%s3] sm:$0xff]
  %v33 = vld [vmem:[%s3 + $0x8] sm:$0xff]
  %v34 = vld [vmem:[%s3 + $0x10] sm:$0xff]
  %v35 = vld [vmem:[%s3 + $0x18] sm:$0xff]
  %v36 = vpack.c.bf16 %v29, %v28
  %v37 = vpack.c.bf16 %v31, %v30
  %v42 = vunpack.c.l.b16 %v24
  %v43 = vunpack.c.l.b16 %v25
  %v44 = vunpack.c.l.b16 %v26
  %v45 = vunpack.c.l.b16 %v27
  %v46 = vpack.c.b16 %v43, %v42
  %v47 = vpack.c.b16 %v45, %v44
  %vm48 = vcmask 261120
  %v50 = vsel %vm48, %v46, 0
  %v53 = vsel %vm48, %v47, 0
  %55 = vmatprep.subr.bf16.mxu0 0
  %56 = vmatpush1.bf16.msra.mxu0 0
  %57 = vmatprep.subr.bf16.mxu0 0
  %58 = vmatpush1.bf16.msra.mxu0 0
  %59 = vmatprep.subr.bf16.mxu0 0
  %60 = vmatpush1.bf16.msra.mxu0 0
  %61 = vmatprep.subr.bf16.mxu0 0
  %62 = vmatpush1.bf16.msra.mxu0 0
  %63 = vmatprep.subr.bf16.mxu0 0
  %64 = vmatpush1.bf16.msra.mxu0 0
  %65 = vmatprep.subr.bf16.mxu0 0
  %66 = vmatpush1.bf16.msra.mxu0 0
  %67 = vmatprep.subr.bf16.mxu0 0
  %68 = vmatpush1.bf16.msra.mxu0 %v37
  %69 = vmatprep.subr.bf16.mxu0 0
  %70 = vmatpush1.bf16.msra.mxu0 %v36
  %71 = vmatprep.subr.bf16.mxu0 0
  %72 = vmatpush2.bf16.msra.mxu0 0
  %73 = vmatprep.subr.bf16.mxu0 0
  %74 = vmatpush2.bf16.msra.mxu0 0
  %75 = vmatprep.subr.bf16.mxu0 0
  %76 = vmatpush2.bf16.msra.mxu0 0
  %77 = vmatprep.subr.bf16.mxu0 0
  %78 = vmatpush2.bf16.msra.mxu0 0
  %79 = vmatprep.subr.bf16.mxu0 0
  %80 = vmatpush2.bf16.msra.mxu0 0
  %81 = vmatprep.subr.bf16.mxu0 0
  %82 = vmatpush2.bf16.msra.mxu0 0
  %83 = vmatprep.subr.bf16.mxu0 0
  %84 = vmatpush2.bf16.msra.mxu0 0
  %85 = vmatprep.subr.bf16.mxu0 0
  %86 = vmatpush2.bf16.msra.mxu0 0
  %87 = vmatprep.mubr.bf16.mxu0 0
  %88 = vmatmul.mubr.bf16.gmra.mxu0 %v50
  %v89 = vpop.f32.mrf.mxu0
  %v90 = vadd.f32 0.0, %v89
  %v91 = vpop.f32.mrf.mxu0
  %v92 = vpop.f32.mrf.mxu0
  %v93 = vadd.f32 0.0, %v92
  %v94 = vpop.f32.mrf.mxu0
  %95 = vmatprep.mubr.bf16.mxu0 0
  %96 = vmatmul.mubr.bf16.gmra.mxu0 %v53
  %v97 = vpop.f32.mrf.mxu0
  %v98 = vadd.f32 0.0, %v97
  %v99 = vpop.f32.mrf.mxu0
  %v100 = vpop.f32.mrf.mxu0
  %v101 = vadd.f32 0.0, %v100
  %v102 = vpop.f32.mrf.mxu0
  %103 = vdwg.mxu0
  %v104 = vadd.f32 %v32, %v90
  %v105 = vadd.f32 %v33, %v93
  %v106 = vadd.f32 %v34, %v98
  %v107 = vadd.f32 %v35, %v101
  %108 = vst.msk [vmem:[%s3] sm:$0xff] %vm48, %v104
  %109 = vst.msk [vmem:[%s3 + $0x8] sm:$0xff] %vm48, %v105
  %110 = vst.msk [vmem:[%s3 + $0x10] sm:$0xff] %vm48, %v106
  %111 = vst.msk [vmem:[%s3 + $0x18] sm:$0xff] %vm48, %v107
  // Predicated region
  $region18: #{mem_eff_attention_forward.9} parent=0 // pred_check
    %p112 = pneg %p15
  $region19: #{mem_eff_attention_forward.9} parent=0 // pred_check_branch
    %114 = sbr.rel (%p112) target = $region21
  $region20: #{mem_eff_attention_forward.9} parent=0 // pred_region
    %v115 = vld [vmem:[%s3] sm:$0xff]
    %v116 = vld [vmem:[%s3 + $0x8] sm:$0xff]
    %v117 = vld [vmem:[%s3 + $0x10] sm:$0xff]
    %v118 = vld [vmem:[%s3 + $0x18] sm:$0xff]
    %v119 = vld [vmem:[%s2] sm:$0x1]
    %v121 = vlaneseq
    %v122 = vshrl.u32 %v121, 7
    %v123 = vsub.s32 0, %v122
    %v124 = vrot.slane %v119, %v123
    %v126 = vadd.f32 %v115, %v124
    %v127 = vadd.f32 %v116, %v124
    %v128 = vadd.f32 %v117, %v124
    %v129 = vadd.f32 %v118, %v124
    %130 = vst.msk [vmem:[%s3] sm:$0xff] %vm48, %v126
    %131 = vst.msk [vmem:[%s3 + $0x8] sm:$0xff] %vm48, %v127
    %132 = vst.msk [vmem:[%s3 + $0x10] sm:$0xff] %vm48, %v128
    %133 = vst.msk [vmem:[%s3 + $0x18] sm:$0xff] %vm48, %v129
  $region21: #{mem_eff_attention_forward.9} parent=0 // pred_fallthru
    _
  // Predicated region
  $region22: #{mem_eff_attention_forward.9} parent=0 // pred_check
    _
  $region23: #{mem_eff_attention_forward.9} parent=0 // pred_check_branch
    %135 = sbr.rel (0) target = $region25
  $region24: #{mem_eff_attention_forward.9} parent=0 // pred_region
    _
  $region25: #{mem_eff_attention_forward.9} parent=0 // pred_fallthru
    _
  // Predicated region
  $region26: #{mem_eff_attention_forward.9} parent=0 // pred_check
    _
  $region27: #{mem_eff_attention_forward.9} parent=0 // pred_check_branch
    %137 = sbr.rel (0) target = $region29
  $region28: #{mem_eff_attention_forward.9} parent=0 // pred_region
    _
  $region29: #{mem_eff_attention_forward.9} parent=0 // pred_fallthru
    _

// kernel: mem_eff_attention_forward.7
$region0: #{mem_eff_attention_forward.7}
  #allocation0 [shape = 'u32[]', space=smem, size = 0x4, offset = 0x4, fixed_abs, tag = 'smem constant byte address 0x4 - core index']
  #allocation1 [shape = 'u32[144,128]{1,0:T(1,128)}', space=vmem, size = 0x12000, scoped, tag = 'internal scratch']
  #allocation2 [shape = 'f32[32,32]{1,0:T(8,128)}', space=vmem, size = 0x4000, scoped, tag = 'scratch operand']
  %s0 = inlined_call_operand.vmem [shape: f32[32,32], index: 0, kind: input, shape index: {}]
  %s1 = inlined_call_operand.vmem [shape: f32[32,32], index: 1, kind: input, shape index: {}]
  %s2 = inlined_call_operand.vmem [shape: bf16[32,32], index: 2, kind: output, shape index: {}]
  %s3 = sld [smem:[#allocation0]]
  $region26: #{mem_eff_attention_forward.7} parent=0
    _
  %s5 = ssub.s32 1, %s3
  %s6 = scalar_select 0, %s5, %s3
  // Predicated region
  $region2: #{mem_eff_attention_forward.7} parent=0 // pred_check
    _
  $region3: #{mem_eff_attention_forward.7} parent=0 // pred_check_branch
    %8 = sbr.rel (0) target = $region5
  $region4: #{mem_eff_attention_forward.7} parent=0 // pred_region
    _
  $region5: #{mem_eff_attention_forward.7} parent=0 // pred_fallthru
    _
  // Predicated region
  $region6: #{mem_eff_attention_forward.7} parent=0 // pred_check
    _
  $region7: #{mem_eff_attention_forward.7} parent=0 // pred_check_branch
    %10 = sbr.rel (0) target = $region9
  $region8: #{mem_eff_attention_forward.7} parent=0 // pred_region
    _
  $region9: #{mem_eff_attention_forward.7} parent=0 // pred_fallthru
    _
  %p12 = scmp.eq.s32.totalorder 0, 0
  // Predicated region
  $region10: #{mem_eff_attention_forward.7} parent=0 // pred_check
    %p13 = pneg %p12
  $region11: #{mem_eff_attention_forward.7} parent=0 // pred_check_branch
    %15 = sbr.rel (%p13) target = $region13
  $region12: #{mem_eff_attention_forward.7} parent=0 // pred_region
    %vm16 = vcmask 261120
    %17 = vst.msk [vmem:[#allocation2] sm:$0xff] %vm16, 0.0
    %18 = vst.msk [vmem:[#allocation2 + $0x8] sm:$0xff] %vm16, 0.0
    %19 = vst.msk [vmem:[#allocation2 + $0x10] sm:$0xff] %vm16, 0.0
    %20 = vst.msk [vmem:[#allocation2 + $0x18] sm:$0xff] %vm16, 0.0
  $region13: #{mem_eff_attention_forward.7} parent=0 // pred_fallthru
    _
  %v21 = vld [vmem:[%s0] sm:$0xff]
  %v22 = vld [vmem:[%s0 + $0x8] sm:$0xff]
  %v23 = vld [vmem:[%s0 + $0x10] sm:$0xff]
  %v24 = vld [vmem:[%s0 + $0x18] sm:$0xff]
  %v25 = vld [vmem:[%s1] sm:$0xff]
  %v26 = vld [vmem:[%s1 + $0x8] sm:$0xff]
  %v27 = vld [vmem:[%s1 + $0x10] sm:$0xff]
  %v28 = vld [vmem:[%s1 + $0x18] sm:$0xff]
  %v29 = vld [vmem:[#allocation2] sm:$0xff]
  %v30 = vld [vmem:[#allocation2 + $0x8] sm:$0xff]
  %v31 = vld [vmem:[#allocation2 + $0x10] sm:$0xff]
  %v32 = vld [vmem:[#allocation2 + $0x18] sm:$0xff]
  %v33 = vpack.c.bf16 %v22, %v21
  %v34 = vpack.c.bf16 %v24, %v23
  %v35 = vpack.c.bf16 %v26, %v25
  %v36 = vpack.c.bf16 %v28, %v27
  %vm37 = vcmask 261120
  %v39 = vsel %vm37, %v33, 0
  %v42 = vsel %vm37, %v34, 0
  %44 = vmatprep.subr.bf16.mxu0 0
  %45 = vmatpush1.bf16.msra.mxu0 0
  %46 = vmatprep.subr.bf16.mxu0 0
  %47 = vmatpush1.bf16.msra.mxu0 0
  %48 = vmatprep.subr.bf16.mxu0 0
  %49 = vmatpush1.bf16.msra.mxu0 0
  %50 = vmatprep.subr.bf16.mxu0 0
  %51 = vmatpush1.bf16.msra.mxu0 0
  %52 = vmatprep.subr.bf16.mxu0 0
  %53 = vmatpush1.bf16.msra.mxu0 0
  %54 = vmatprep.subr.bf16.mxu0 0
  %55 = vmatpush1.bf16.msra.mxu0 0
  %56 = vmatprep.subr.bf16.mxu0 0
  %57 = vmatpush1.bf16.msra.mxu0 %v36
  %58 = vmatprep.subr.bf16.mxu0 0
  %59 = vmatpush1.bf16.msra.mxu0 %v35
  %60 = vmatprep.subr.bf16.mxu0 0
  %61 = vmatpush2.bf16.msra.mxu0 0
  %62 = vmatprep.subr.bf16.mxu0 0
  %63 = vmatpush2.bf16.msra.mxu0 0
  %64 = vmatprep.subr.bf16.mxu0 0
  %65 = vmatpush2.bf16.msra.mxu0 0
  %66 = vmatprep.subr.bf16.mxu0 0
  %67 = vmatpush2.bf16.msra.mxu0 0
  %68 = vmatprep.subr.bf16.mxu0 0
  %69 = vmatpush2.bf16.msra.mxu0 0
  %70 = vmatprep.subr.bf16.mxu0 0
  %71 = vmatpush2.bf16.msra.mxu0 0
  %72 = vmatprep.subr.bf16.mxu0 0
  %73 = vmatpush2.bf16.msra.mxu0 0
  %74 = vmatprep.subr.bf16.mxu0 0
  %75 = vmatpush2.bf16.msra.mxu0 0
  %76 = vmatprep.mubr.bf16.mxu0 0
  %77 = vmatmul.mubr.bf16.gmra.mxu0 %v39
  %v78 = vpop.f32.mrf.mxu0
  %v79 = vadd.f32 0.0, %v78
  %v80 = vpop.f32.mrf.mxu0
  %v81 = vpop.f32.mrf.mxu0
  %v82 = vadd.f32 0.0, %v81
  %v83 = vpop.f32.mrf.mxu0
  %84 = vmatprep.mubr.bf16.mxu0 0
  %85 = vmatmul.mubr.bf16.gmra.mxu0 %v42
  %v86 = vpop.f32.mrf.mxu0
  %v87 = vadd.f32 0.0, %v86
  %v88 = vpop.f32.mrf.mxu0
  %v89 = vpop.f32.mrf.mxu0
  %v90 = vadd.f32 0.0, %v89
  %v91 = vpop.f32.mrf.mxu0
  %92 = vdwg.mxu0
  %v93 = vadd.f32 %v29, %v79
  %v94 = vadd.f32 %v30, %v82
  %v95 = vadd.f32 %v31, %v87
  %v96 = vadd.f32 %v32, %v90
  %97 = vst.msk [vmem:[#allocation2] sm:$0xff] %vm37, %v93
  %98 = vst.msk [vmem:[#allocation2 + $0x8] sm:$0xff] %vm37, %v94
  %99 = vst.msk [vmem:[#allocation2 + $0x10] sm:$0xff] %vm37, %v95
  %100 = vst.msk [vmem:[#allocation2 + $0x18] sm:$0xff] %vm37, %v96
  // Predicated region
  $region14: #{mem_eff_attention_forward.7} parent=0 // pred_check
    %p101 = pneg %p12
  $region15: #{mem_eff_attention_forward.7} parent=0 // pred_check_branch
    %103 = sbr.rel (%p101) target = $region17
  $region16: #{mem_eff_attention_forward.7} parent=0 // pred_region
    %v104 = vld [vmem:[#allocation2] sm:$0xff]
    %v105 = vld [vmem:[#allocation2 + $0x8] sm:$0xff]
    %v106 = vld [vmem:[#allocation2 + $0x10] sm:$0xff]
    %v107 = vld [vmem:[#allocation2 + $0x18] sm:$0xff]
    %v108 = vpack.c.bf16 %v105, %v104
    %v109 = vpack.c.bf16 %v107, %v106
    %v112 = vunpack.c.l.b16 %v108
    %v113 = vunpack.c.h.b16 %v108
    %v114 = vunpack.c.l.b16 %v109
    %v115 = vunpack.c.h.b16 %v109
    %v116 = vpack.c.b16 %v112, %v112
    %v117 = vpack.c.b16 %v113, %v113
    %v118 = vpack.c.b16 %v114, %v114
    %v119 = vpack.c.b16 %v115, %v115
    %vm124 = vcmask 257024
    %125 = vst.msk [vmem:[%s2] sm:$0xf] %vm124, %v116
    %126 = vst.msk [vmem:[%s2 + $0x4] sm:$0xf] %vm124, %v117
    %127 = vst.msk [vmem:[%s2 + $0x8] sm:$0xf] %vm124, %v118
    %128 = vst.msk [vmem:[%s2 + $0xc] sm:$0xf] %vm124, %v119
  $region17: #{mem_eff_attention_forward.7} parent=0 // pred_fallthru
    _
  // Predicated region
  $region18: #{mem_eff_attention_forward.7} parent=0 // pred_check
    _
  $region19: #{mem_eff_attention_forward.7} parent=0 // pred_check_branch
    %130 = sbr.rel (0) target = $region21
  $region20: #{mem_eff_attention_forward.7} parent=0 // pred_region
    _
  $region21: #{mem_eff_attention_forward.7} parent=0 // pred_fallthru
    _
  // Predicated region
  $region22: #{mem_eff_attention_forward.7} parent=0 // pred_check
    _
  $region23: #{mem_eff_attention_forward.7} parent=0 // pred_check_branch
    %132 = sbr.rel (0) target = $region25
  $region24: #{mem_eff_attention_forward.7} parent=0 // pred_region
    _
  $region25: #{mem_eff_attention_forward.7} parent=0 // pred_fallthru
    _

// kernel: mem_eff_attention_forward.8
$region0: #{mem_eff_attention_forward.8}
  #allocation0 [shape = 'u32[]', space=smem, size = 0x4, offset = 0x4, fixed_abs, tag = 'smem constant byte address 0x4 - core index']
  #allocation1 [shape = 'u32[144,128]{1,0:T(1,128)}', space=vmem, size = 0x12000, scoped, tag = 'internal scratch']
  #allocation2 [shape = 'f32[16,8]{1,0:T(8,128)}', space=vmem, size = 0x2000, scoped, tag = 'scratch operand']
  #allocation3 [shape = 'f32[16,8]{1,0:T(8,128)}', space=vmem, size = 0x2000, scoped, tag = 'scratch operand']
  #allocation4 [shape = 'f32[16,32]{1,0:T(8,128)}', space=vmem, size = 0x2000, scoped, tag = 'scratch operand']
  %s0 = inlined_call_operand.vmem [shape: bf16[2,16,32], index: 0, kind: input, shape index: {}]
  %s1 = inlined_call_operand.vmem [shape: bf16[2,16,32], index: 1, kind: input, shape index: {}]
  %s2 = inlined_call_operand.vmem [shape: bf16[2,16,32], index: 2, kind: input, shape index: {}]
  %s3 = inlined_call_operand.vmem [shape: bf16[2,16,32], index: 3, kind: output, shape index: {}]
  %s4 = sld [smem:[#allocation0]]
  $region53: #{mem_eff_attention_forward.8} parent=0
    _
  %s6 = ssub.s32 1, %s4
  %s7 = scalar_select 0, %s6, %s4
  loop: start=0, step=1, limit=4
  $region2: #{mem_eff_attention_forward.8} parent=0 // loop_pre_header
    _
  $region3: #{mem_eff_attention_forward.8} parent=0 // loop_header
    %s9 = sphi 0, %s13
    %p10 = scmp.ge.s32.totalorder %s9, 4
    %s16 = sphi 0, %s35
    %s17 = sphi 0, %s31
    %s18 = sphi 0, %s27
    %s19 = sphi 0, %s16
    %s20 = sphi 0, %s17
    %s21 = sphi 0, %s18
    %s22 = sphi 0, %s19
    %s23 = sphi 0, %s20
    %s24 = sphi 0, %s21
    %s40 = sphi 0, %s42
    %s43 = sphi 0, %s40
    %s44 = sphi 0, %s43
    %s60 = sphi 0, %s44
    %s68 = sphi 0, %s70
    %s71 = sphi 0, %s68
    %s72 = sphi 0, %s71
    %s88 = sphi 0, %s72
    %s96 = sphi 0, %s98
    %s99 = sphi 0, %s96
    %s100 = sphi 0, %s99
    %s116 = sphi 0, %s100
    %s124 = sphi 0, %s126
    %s127 = sphi 0, %s124
    %s128 = sphi 0, %s127
    %s144 = sphi 0, %s128
  $region4: #{mem_eff_attention_forward.8} parent=0 // loop_header_branch
    %12 = sbr.rel (%p10) target = $region8
  $region5: #{mem_eff_attention_forward.8} parent=0 // loop_body
    %s14 = ssub.s32 %s9, 1
    %s15 = ssub.s32 %s9, 2
    %s25 = sadd.s32 1, %s18
    %p26 = scmp.ge.s32.totalorder %s25, 1
    %s27 = scalar_select %p26, 0, %s25
    %s28 = sadd.s32 1, %s17
    %s29 = scalar_select %p26, %s28, %s17
    %p30 = scmp.ge.s32.totalorder %s29, 1
    %s31 = scalar_select %p30, 0, %s29
    %s32 = sadd.s32 1, %s16
    %s33 = scalar_select %p30, %s32, %s16
    %p34 = scmp.ge.s32.totalorder %s33, 2
    %s35 = scalar_select %p34, 0, %s33
    %s36 = ssub.s32 %s16, %s35
    %s37 = ssub.s32 %s17, %s31
    %s38 = sor.u32 %s36, %s37
    %p39 = scmp.eq.s32.totalorder %s38, 0
    %s41 = sadd.s32 %s40, 1
    %s42 = scalar_select %p39, %s40, %s41
    %p45 = pneg %p39
    %p46 = scmp.eq.s32.totalorder %s9, 1
    %p47 = por %p45, %p46
    %p48 = scmp.ne.s32.totalorder %s40, %s43
    %p49 = scmp.eq.s32.totalorder %s9, 0
    %p50 = por %p48, %p49
    %p51 = scmp.ne.s32.totalorder %s40, %s43
    %p52 = scmp.eq.s32.totalorder %s14, 1
    %p53 = por %p51, %p52
    %p54 = scmp.ne.s32.totalorder %s43, %s44
    %p55 = scmp.eq.s32.totalorder %s14, 0
    %p56 = por %p54, %p55
    %p57 = scmp.ne.s32.totalorder %s43, %s44
    %p58 = scmp.eq.s32.totalorder %s15, 1
    %p59 = por %p57, %p58
    %p61 = scmp.ne.s32.totalorder %s44, %s60
    %p62 = scmp.eq.s32.totalorder %s15, 0
    %p63 = por %p61, %p62
    %s64 = ssub.s32 %s16, %s35
    %s65 = ssub.s32 %s18, %s27
    %s66 = sor.u32 %s64, %s65
    %p67 = scmp.eq.s32.totalorder %s66, 0
    %s69 = sadd.s32 %s68, 1
    %s70 = scalar_select %p67, %s68, %s69
    %p73 = pneg %p67
    %p74 = scmp.eq.s32.totalorder %s9, 1
    %p75 = por %p73, %p74
    %p76 = scmp.ne.s32.totalorder %s68, %s71
    %p77 = scmp.eq.s32.totalorder %s9, 0
    %p78 = por %p76, %p77
    %p79 = scmp.ne.s32.totalorder %s68, %s71
    %p80 = scmp.eq.s32.totalorder %s14, 1
    %p81 = por %p79, %p80
    %p82 = scmp.ne.s32.totalorder %s71, %s72
    %p83 = scmp.eq.s32.totalorder %s14, 0
    %p84 = por %p82, %p83
    %p85 = scmp.ne.s32.totalorder %s71, %s72
    %p86 = scmp.eq.s32.totalorder %s15, 1
    %p87 = por %p85, %p86
    %p89 = scmp.ne.s32.totalorder %s72, %s88
    %p90 = scmp.eq.s32.totalorder %s15, 0
    %p91 = por %p89, %p90
    %s92 = ssub.s32 %s16, %s35
    %s93 = ssub.s32 %s18, %s27
    %s94 = sor.u32 %s92, %s93
    %p95 = scmp.eq.s32.totalorder %s94, 0
    %s97 = sadd.s32 %s96, 1
    %s98 = scalar_select %p95, %s96, %s97
    %p101 = pneg %p95
    %p102 = scmp.eq.s32.totalorder %s9, 1
    %p103 = por %p101, %p102
    %p104 = scmp.ne.s32.totalorder %s96, %s99
    %p105 = scmp.eq.s32.totalorder %s9, 0
    %p106 = por %p104, %p105
    %p107 = scmp.ne.s32.totalorder %s96, %s99
    %p108 = scmp.eq.s32.totalorder %s14, 1
    %p109 = por %p107, %p108
    %p110 = scmp.ne.s32.totalorder %s99, %s100
    %p111 = scmp.eq.s32.totalorder %s14, 0
    %p112 = por %p110, %p111
    %p113 = scmp.ne.s32.totalorder %s99, %s100
    %p114 = scmp.eq.s32.totalorder %s15, 1
    %p115 = por %p113, %p114
    %p117 = scmp.ne.s32.totalorder %s100, %s116
    %p118 = scmp.eq.s32.totalorder %s15, 0
    %p119 = por %p117, %p118
    %s120 = ssub.s32 %s16, %s35
    %s121 = ssub.s32 %s17, %s31
    %s122 = sor.u32 %s120, %s121
    %p123 = scmp.eq.s32.totalorder %s122, 0
    %s125 = sadd.s32 %s124, 1
    %s126 = scalar_select %p123, %s124, %s125
    %p129 = pneg %p123
    %p130 = scmp.eq.s32.totalorder %s9, 1
    %p131 = por %p129, %p130
    %p132 = scmp.ne.s32.totalorder %s124, %s127
    %p133 = scmp.eq.s32.totalorder %s9, 0
    %p134 = por %p132, %p133
    %p135 = scmp.ne.s32.totalorder %s124, %s127
    %p136 = scmp.eq.s32.totalorder %s14, 1
    %p137 = por %p135, %p136
    %p138 = scmp.ne.s32.totalorder %s127, %s128
    %p139 = scmp.eq.s32.totalorder %s14, 0
    %p140 = por %p138, %p139
    %p141 = scmp.ne.s32.totalorder %s127, %s128
    %p142 = scmp.eq.s32.totalorder %s15, 1
    %p143 = por %p141, %p142
    %p145 = scmp.ne.s32.totalorder %s128, %s144
    %p146 = scmp.eq.s32.totalorder %s15, 0
    %p147 = por %p145, %p146
    %p148 = scmp.le.s32.totalorder 1, %s9
    %p149 = scmp.lt.s32.totalorder %s9, 3
    %p150 = pnand %p148, %p149
    %p151 = pneg %p150
    // Predicated region
    $region9: #{mem_eff_attention_forward.8} parent=5 // pred_check
      _
    $region10: #{mem_eff_attention_forward.8} parent=5 // pred_check_branch
      %153 = sbr.rel (%p150) target = $region12
    $region11: #{mem_eff_attention_forward.8} parent=5 // pred_region
      %s154 = ssub.s32 %s9, 1
    $region12: #{mem_eff_attention_forward.8} parent=5 // pred_fallthru
      _
    %p155 = scmp.lt.s32.totalorder %s9, 2
    // Predicated region
    $region13: #{mem_eff_attention_forward.8} parent=5 // pred_check
      %p156 = pneg %p155
    $region14: #{mem_eff_attention_forward.8} parent=5 // pred_check_branch
      %158 = sbr.rel (%p156) target = $region16
    $region15: #{mem_eff_attention_forward.8} parent=5 // pred_region
      // Predicated region
      $region17: #{mem_eff_attention_forward.8} parent=15 // pred_check
        %p159 = pneg %p50
      $region18: #{mem_eff_attention_forward.8} parent=15 // pred_check_branch
        %161 = sbr.rel (%p159) target = $region20
      $region19: #{mem_eff_attention_forward.8} parent=15 // pred_region
        %s162 = smul.u32 2, %s17
        %p163 = scmp.lt.s32.totalorder %s16, 1
        %s164 = scalar_select %p163, %s16, 1
        %p165 = scmp.lt.s32.totalorder %s162, 1
        %s166 = scalar_select %p165, %s162, 1
        %s167 = smul.addr %s164, 2
        %s168 = sadd.s32 %s166, %s167
        %s169 = smul.addr %s168, 4
        %s170 = scalar_lea.vmem %s0, %s169
        %s171 = smul.u32 2, %s17
      $region20: #{mem_eff_attention_forward.8} parent=15 // pred_fallthru
        _
      // Predicated region
      $region21: #{mem_eff_attention_forward.8} parent=15 // pred_check
        %p172 = pneg %p78
      $region22: #{mem_eff_attention_forward.8} parent=15 // pred_check_branch
        %174 = sbr.rel (%p172) target = $region24
      $region23: #{mem_eff_attention_forward.8} parent=15 // pred_region
        %s175 = smul.u32 2, %s18
        %p176 = scmp.lt.s32.totalorder %s16, 1
        %s177 = scalar_select %p176, %s16, 1
        %p178 = scmp.lt.s32.totalorder %s175, 1
        %s179 = scalar_select %p178, %s175, 1
        %s180 = smul.addr %s177, 2
        %s181 = sadd.s32 %s179, %s180
        %s182 = smul.addr %s181, 4
        %s183 = scalar_lea.vmem %s1, %s182
        %s184 = smul.u32 2, %s18
      $region24: #{mem_eff_attention_forward.8} parent=15 // pred_fallthru
        _
      // Predicated region
      $region25: #{mem_eff_attention_forward.8} parent=15 // pred_check
        %p185 = pneg %p106
      $region26: #{mem_eff_attention_forward.8} parent=15 // pred_check_branch
        %187 = sbr.rel (%p185) target = $region28
      $region27: #{mem_eff_attention_forward.8} parent=15 // pred_region
        %s188 = smul.u32 2, %s18
        %p189 = scmp.lt.s32.totalorder %s16, 1
        %s190 = scalar_select %p189, %s16, 1
        %p191 = scmp.lt.s32.totalorder %s188, 1
        %s192 = scalar_select %p191, %s188, 1
        %s193 = smul.addr %s190, 2
        %s194 = sadd.s32 %s192, %s193
        %s195 = smul.addr %s194, 4
        %s196 = scalar_lea.vmem %s2, %s195
        %s197 = smul.u32 2, %s18
      $region28: #{mem_eff_attention_forward.8} parent=15 // pred_fallthru
        _
    $region16: #{mem_eff_attention_forward.8} parent=5 // pred_fallthru
      _
    %p198 = scmp.le.s32.totalorder 1, %s9
    %p199 = scmp.lt.s32.totalorder %s9, 3
    %p200 = pnand %p198, %p199
    %p201 = pneg %p200
    // Predicated region
    $region29: #{mem_eff_attention_forward.8} parent=5 // pred_check
      _
    $region30: #{mem_eff_attention_forward.8} parent=5 // pred_check_branch
      %203 = sbr.rel (%p200) target = $region32
    $region31: #{mem_eff_attention_forward.8} parent=5 // pred_region
      %s204 = ssub.s32 %s9, 1
      %s205 = smul.u32 2, %s20
      %p206 = scmp.lt.s32.totalorder %s19, 1
      %s207 = scalar_select %p206, %s19, 1
      %p208 = scmp.lt.s32.totalorder %s205, 1
      %s209 = scalar_select %p208, %s205, 1
      %s210 = smul.addr %s207, 2
      %s211 = sadd.s32 %s209, %s210
      %s212 = smul.addr %s211, 4
      %s213 = scalar_lea.vmem %s0, %s212
      %p214 = pneg %p56
      %p215 = pneg %p53
      %s216 = smul.u32 2, %s21
      %p217 = scmp.lt.s32.totalorder %s19, 1
      %s218 = scalar_select %p217, %s19, 1
      %p219 = scmp.lt.s32.totalorder %s216, 1
      %s220 = scalar_select %p219, %s216, 1
      %s221 = smul.addr %s218, 2
      %s222 = sadd.s32 %s220, %s221
      %s223 = smul.addr %s222, 4
      %s224 = scalar_lea.vmem %s1, %s223
      %p225 = pneg %p84
      %p226 = pneg %p81
      %s227 = smul.u32 2, %s21
      %p228 = scmp.lt.s32.totalorder %s19, 1
      %s229 = scalar_select %p228, %s19, 1
      %p230 = scmp.lt.s32.totalorder %s227, 1
      %s231 = scalar_select %p230, %s227, 1
      %s232 = smul.addr %s229, 2
      %s233 = sadd.s32 %s231, %s232
      %s234 = smul.addr %s233, 4
      %s235 = scalar_lea.vmem %s2, %s234
      %p236 = pneg %p112
      %p237 = pneg %p109
      %p238 = pneg %p140
      %p239 = pneg %p137
      %s240 = smul.u32 2, %s20
      %p241 = scmp.lt.s32.totalorder %s19, 1
      %s242 = scalar_select %p241, %s19, 1
      %p243 = scmp.lt.s32.totalorder %s240, 1
      %s244 = scalar_select %p243, %s240, 1
      %s245 = smul.addr %s242, 2
      %s246 = sadd.s32 %s244, %s245
      %s247 = smul.addr %s246, 4
      %s248 = scalar_lea.vmem %s3, %s247
      %s249 = smul.u32 2, %s20
      %p250 = scmp.lt.s32.totalorder %s19, 1
      %s251 = scalar_select %p250, %s19, 1
      %p252 = scmp.lt.s32.totalorder %s249, 1
      %s253 = scalar_select %p252, %s249, 1
      %s254 = smul.addr %s251, 2
      %s255 = sadd.s32 %s253, %s254
      %s256 = smul.addr %s255, 4
      %s257 = scalar_lea.vmem %s0, %s256
      %s258 = smul.u32 2, %s20
      %s259 = smul.u32 2, %s21
      %p260 = scmp.lt.s32.totalorder %s19, 1
      %s261 = scalar_select %p260, %s19, 1
      %p262 = scmp.lt.s32.totalorder %s259, 1
      %s263 = scalar_select %p262, %s259, 1
      %s264 = smul.addr %s261, 2
      %s265 = sadd.s32 %s263, %s264
      %s266 = smul.addr %s265, 4
      %s267 = scalar_lea.vmem %s1, %s266
      %s268 = smul.u32 2, %s21
      %s269 = smul.u32 2, %s21
      %p270 = scmp.lt.s32.totalorder %s19, 1
      %s271 = scalar_select %p270, %s19, 1
      %p272 = scmp.lt.s32.totalorder %s269, 1
      %s273 = scalar_select %p272, %s269, 1
      %s274 = smul.addr %s271, 2
      %s275 = sadd.s32 %s273, %s274
      %s276 = smul.addr %s275, 4
      %s277 = scalar_lea.vmem %s2, %s276
      %s278 = smul.u32 2, %s21
      %s279 = smul.u32 2, %s20
      %p280 = scmp.lt.s32.totalorder %s19, 1
      %s281 = scalar_select %p280, %s19, 1
      %p282 = scmp.lt.s32.totalorder %s279, 1
      %s283 = scalar_select %p282, %s279, 1
      %s284 = smul.addr %s281, 2
      %s285 = sadd.s32 %s283, %s284
      %s286 = smul.addr %s285, 4
      %s287 = scalar_lea.vmem %s3, %s286
      %s288 = smul.u32 2, %s20
      %p290 = scmp.eq.s32.totalorder %s21, 0
      // Predicated region
      $region33: #{mem_eff_attention_forward.8} parent=31 // pred_check
        %p291 = pneg %p290
      $region34: #{mem_eff_attention_forward.8} parent=31 // pred_check_branch
        %293 = sbr.rel (%p291) target = $region36
      $region35: #{mem_eff_attention_forward.8} parent=31 // pred_region
        %vm294 = vcmask 64512
        %295 = vst.msk [vmem:[#allocation2] sm:$0xff] %vm294, -2.3819763e+38
        %296 = vst.msk [vmem:[#allocation2 + $0x8] sm:$0xff] %vm294, -2.3819763e+38
        %297 = vst.msk [vmem:[#allocation3] sm:$0xff] %vm294, 0.0
        %298 = vst.msk [vmem:[#allocation3 + $0x8] sm:$0xff] %vm294, 0.0
        %vm299 = vcmask 261120
        %300 = vst.msk [vmem:[#allocation4] sm:$0xff] %vm299, 0.0
        %301 = vst.msk [vmem:[#allocation4 + $0x8] sm:$0xff] %vm299, 0.0
      $region36: #{mem_eff_attention_forward.8} parent=31 // pred_fallthru
        _
      %v302 = vld [vmem:[%s257] sm:$0xf]
      %v303 = vld [vmem:[%s257 + $0x4] sm:$0xf]
      %v304 = vld [vmem:[%s267] sm:$0xf]
      %v305 = vld [vmem:[%s267 + $0x4] sm:$0xf]
      %v306 = vld [vmem:[%s277] sm:$0xf]
      %v307 = vld [vmem:[%s277 + $0x4] sm:$0xf]
      %v308 = vlaneseq
      %v309 = vand.u32 %v308, 127
      %s310 = smul.u32 %s21, 16
      %v311 = vstv %s310
      %v312 = vadd.s32 %v309, %v311
      %vm313 = vcmp.lt.s32.totalorder %v312, 10
      %v316 = vunpack.c.l.b16 %v302
      %v317 = vunpack.c.l.b16 %v303
      %v318 = vpack.c.b16 %v317, %v316
      %v321 = vunpack.c.l.b16 %v304
      %v322 = vunpack.c.l.b16 %v305
      %v323 = vpack.c.b16 %v322, %v321
      %vm324 = vcmask 31744
      %v326 = vsel %vm324, %v318, 0
      %v329 = vsel %vm324, %v323, 0
      %331 = vmatprep.subr.bf16.mxu0 0
      %332 = vmatpush1.bf16.xpose.msra.mxu0 0
      %333 = vmatprep.subr.bf16.mxu0 0
      %334 = vmatpush1.bf16.xpose.msra.mxu0 0
      %335 = vmatprep.subr.bf16.mxu0 0
      %336 = vmatpush1.bf16.xpose.msra.mxu0 0
      %337 = vmatprep.subr.bf16.mxu0 0
      %338 = vmatpush1.bf16.xpose.msra.mxu0 0
      %339 = vmatprep.subr.bf16.mxu0 0
      %340 = vmatpush1.bf16.xpose.msra.mxu0 0
      %341 = vmatprep.subr.bf16.mxu0 0
      %342 = vmatpush1.bf16.xpose.msra.mxu0 0
      %343 = vmatprep.subr.bf16.mxu0 0
      %344 = vmatpush1.bf16.xpose.msra.mxu0 0
      %345 = vmatprep.subr.bf16.mxu0 0
      %346 = vmatpush1.bf16.xpose.msra.mxu0 %v329
      %347 = vmatprep.subr.bf16.mxu0 0
      %348 = vmatpush2.bf16.xpose.msra.mxu0 0
      %349 = vmatprep.subr.bf16.mxu0 0
      %350 = vmatpush2.bf16.xpose.msra.mxu0 0
      %351 = vmatprep.subr.bf16.mxu0 0
      %352 = vmatpush2.bf16.xpose.msra.mxu0 0
      %353 = vmatprep.subr.bf16.mxu0 0
      %354 = vmatpush2.bf16.xpose.msra.mxu0 0
      %355 = vmatprep.subr.bf16.mxu0 0
      %356 = vmatpush2.bf16.xpose.msra.mxu0 0
      %357 = vmatprep.subr.bf16.mxu0 0
      %358 = vmatpush2.bf16.xpose.msra.mxu0 0
      %359 = vmatprep.subr.bf16.mxu0 0
      %360 = vmatpush2.bf16.xpose.msra.mxu0 0
      %361 = vmatprep.subr.bf16.mxu0 0
      %362 = vmatpush2.bf16.xpose.msra.mxu0 0
      %363 = vmatprep.mubr.bf16.mxu0 0
      %364 = vmatmul.mubr.bf16.gmra.mxu0 %v326
      %v365 = vpop.f32.mrf.mxu0
      %v366 = vadd.f32 0.0, %v365
      %v367 = vpop.f32.mrf.mxu0
      %v368 = vpop.f32.mrf.mxu0
      %v369 = vadd.f32 0.0, %v368
      %v370 = vpop.f32.mrf.mxu0
      %371 = vdwg.mxu0
      %v372 = vsel %vm313, 1, 0
      %vm373 = vcmp.eq.s32.totalorder %v372, 1
      %v374 = vsel %vm373, %v366, -2.3819763e+38
      %v375 = vsel %vm373, %v369, -2.3819763e+38
      %v376 = vld [vmem:[#allocation2] sm:$0xff]
      %v377 = vld [vmem:[#allocation2 + $0x8] sm:$0xff]
      %vm378 = vcmask 130048
      %v379 = vsel %vm378, %v374, -inf
      %380 = vmax.xlane.f32.xlu0 %v379
      %v381 = vpop.xlane.xlu0 %380
      %v382 = vsel %vm378, %v375, -inf
      %383 = vmax.xlane.f32.xlu0 %v382
      %v384 = vpop.xlane.xlu0 %383
      %v385 = vmax.f32 %v376, %v381
      %v386 = vmax.f32 %v377, %v384
      %v387 = vsub.f32 %v376, %v385
      %v388 = vsub.f32 %v377, %v386
      %v389 = vmul.f32 %v387, 1.442695
      %v390 = vpow.pop %v389
      %v391 = vmul.f32 %v388, 1.442695
      %v392 = vpow.pop %v391
      %394 = vset.pattern.permute.xlu0 0
      %395 = vperm.xlu0 %394, %v385
      %v396 = vpop.permute.xlu0 %395
      %399 = vset.pattern.permute.xlu0 0
      %400 = vperm.xlu0 %399, %v386
      %v401 = vpop.permute.xlu0 %400
      %v403 = vsub.f32 %v374, %v396
      %v404 = vsub.f32 %v375, %v401
      %v405 = vmul.f32 %v403, 1.442695
      %v406 = vpow.pop %v405
      %v407 = vmul.f32 %v404, 1.442695
      %v408 = vpow.pop %v407
      %v409 = vld [vmem:[#allocation3] sm:$0xff]
      %v410 = vld [vmem:[#allocation3 + $0x8] sm:$0xff]
      %v411 = vmul.f32 %v390, %v409
      %v412 = vmul.f32 %v392, %v410
      %v413 = vsel %vm378, %v406, 0.0
      %414 = vadd.xlane.f32.xlu0 %v413
      %v415 = vpop.xlane.xlu0 %414
      %v416 = vsel %vm378, %v408, 0.0
      %417 = vadd.xlane.f32.xlu0 %v416
      %v418 = vpop.xlane.xlu0 %417
      %v419 = vadd.f32 %v411, %v415
      %v420 = vadd.f32 %v412, %v418
      %vm421 = vcmask 7168
      %422 = vst.msk [vmem:[#allocation3] sm:$0xff] %vm421, %v419
      %423 = vst.msk [vmem:[#allocation3 + $0x8] sm:$0xff] %vm421, %v420
      %v424 = vpack.c.bf16 %v408, %v406
      %v427 = vunpack.c.l.b16 %v306
      %v428 = vunpack.c.l.b16 %v307
      %v429 = vpack.c.b16 %v428, %v427
      %v432 = vsel %vm378, %v424, 0
      %434 = vmatprep.subr.bf16.mxu0 0
      %435 = vmatpush1.bf16.msra.mxu0 0
      %436 = vmatprep.subr.bf16.mxu0 0
      %437 = vmatpush1.bf16.msra.mxu0 0
      %438 = vmatprep.subr.bf16.mxu0 0
      %439 = vmatpush1.bf16.msra.mxu0 0
      %440 = vmatprep.subr.bf16.mxu0 0
      %441 = vmatpush1.bf16.msra.mxu0 0
      %442 = vmatprep.subr.bf16.mxu0 0
      %443 = vmatpush1.bf16.msra.mxu0 0
      %444 = vmatprep.subr.bf16.mxu0 0
      %445 = vmatpush1.bf16.msra.mxu0 0
      %446 = vmatprep.subr.bf16.mxu0 0
      %447 = vmatpush1.bf16.msra.mxu0 0
      %448 = vmatprep.subr.bf16.mxu0 0
      %449 = vmatpush1.bf16.msra.mxu0 %v429
      %450 = vmatprep.subr.bf16.mxu0 0
      %451 = vmatpush2.bf16.msra.mxu0 0
      %452 = vmatprep.subr.bf16.mxu0 0
      %453 = vmatpush2.bf16.msra.mxu0 0
      %454 = vmatprep.subr.bf16.mxu0 0
      %455 = vmatpush2.bf16.msra.mxu0 0
      %456 = vmatprep.subr.bf16.mxu0 0
      %457 = vmatpush2.bf16.msra.mxu0 0
      %458 = vmatprep.subr.bf16.mxu0 0
      %459 = vmatpush2.bf16.msra.mxu0 0
      %460 = vmatprep.subr.bf16.mxu0 0
      %461 = vmatpush2.bf16.msra.mxu0 0
      %462 = vmatprep.subr.bf16.mxu0 0
      %463 = vmatpush2.bf16.msra.mxu0 0
      %464 = vmatprep.subr.bf16.mxu0 0
      %465 = vmatpush2.bf16.msra.mxu0 0
      %466 = vmatprep.mubr.bf16.mxu0 0
      %467 = vmatmul.mubr.bf16.gmra.mxu0 %v432
      %v468 = vpop.f32.mrf.mxu0
      %v469 = vadd.f32 0.0, %v468
      %v470 = vpop.f32.mrf.mxu0
      %v471 = vpop.f32.mrf.mxu0
      %v472 = vadd.f32 0.0, %v471
      %v473 = vpop.f32.mrf.mxu0
      %474 = vdwg.mxu0
      %v475 = vld [vmem:[#allocation4] sm:$0xff]
      %v476 = vld [vmem:[#allocation4 + $0x8] sm:$0xff]
      %478 = vset.pattern.permute.xlu0 0
      %479 = vperm.xlu0 %478, %v390
      %v480 = vpop.permute.xlu0 %479
      %483 = vset.pattern.permute.xlu0 0
      %484 = vperm.xlu0 %483, %v392
      %v485 = vpop.permute.xlu0 %484
      %v487 = vmul.f32 %v480, %v475
      %v488 = vmul.f32 %v485, %v476
      %v489 = vadd.f32 %v487, %v469
      %v490 = vadd.f32 %v488, %v472
      %491 = vst.msk [vmem:[#allocation4] sm:$0xff] %vm324, %v489
      %492 = vst.msk [vmem:[#allocation4 + $0x8] sm:$0xff] %vm324, %v490
      %493 = vst.msk [vmem:[#allocation2] sm:$0xff] %vm421, %v385
      %494 = vst.msk [vmem:[#allocation2 + $0x8] sm:$0xff] %vm421, %v386
      %495 = vrot.lane.b32.xlu0 %v318, 124
      %v496 = vpop.permute.xlu0 %495
      %497 = vrot.lane.b32.xlu0 %v323, 124
      %v498 = vpop.permute.xlu0 %497
      %v500 = vsel %vm324, %v496, 0
      %v503 = vsel %vm324, %v498, 0
      %505 = vmatprep.subr.bf16.mxu0 0
      %506 = vmatpush1.bf16.xpose.msra.mxu0 0
      %507 = vmatprep.subr.bf16.mxu0 0
      %508 = vmatpush1.bf16.xpose.msra.mxu0 0
      %509 = vmatprep.subr.bf16.mxu0 0
      %510 = vmatpush1.bf16.xpose.msra.mxu0 0
      %511 = vmatprep.subr.bf16.mxu0 0
      %512 = vmatpush1.bf16.xpose.msra.mxu0 0
      %513 = vmatprep.subr.bf16.mxu0 0
      %514 = vmatpush1.bf16.xpose.msra.mxu0 0
      %515 = vmatprep.subr.bf16.mxu0 0
      %516 = vmatpush1.bf16.xpose.msra.mxu0 0
      %517 = vmatprep.subr.bf16.mxu0 0
      %518 = vmatpush1.bf16.xpose.msra.mxu0 0
      %519 = vmatprep.subr.bf16.mxu0 0
      %520 = vmatpush1.bf16.xpose.msra.mxu0 %v503
      %521 = vmatprep.subr.bf16.mxu0 0
      %522 = vmatpush2.bf16.xpose.msra.mxu0 0
      %523 = vmatprep.subr.bf16.mxu0 0
      %524 = vmatpush2.bf16.xpose.msra.mxu0 0
      %525 = vmatprep.subr.bf16.mxu0 0
      %526 = vmatpush2.bf16.xpose.msra.mxu0 0
      %527 = vmatprep.subr.bf16.mxu0 0
      %528 = vmatpush2.bf16.xpose.msra.mxu0 0
      %529 = vmatprep.subr.bf16.mxu0 0
      %530 = vmatpush2.bf16.xpose.msra.mxu0 0
      %531 = vmatprep.subr.bf16.mxu0 0
      %532 = vmatpush2.bf16.xpose.msra.mxu0 0
      %533 = vmatprep.subr.bf16.mxu0 0
      %534 = vmatpush2.bf16.xpose.msra.mxu0 0
      %535 = vmatprep.subr.bf16.mxu0 0
      %536 = vmatpush2.bf16.xpose.msra.mxu0 0
      %537 = vmatprep.mubr.bf16.mxu0 0
      %538 = vmatmul.mubr.bf16.gmra.mxu0 %v500
      %v539 = vpop.f32.mrf.mxu0
      %v540 = vadd.f32 0.0, %v539
      %v541 = vpop.f32.mrf.mxu0
      %v542 = vpop.f32.mrf.mxu0
      %v543 = vadd.f32 0.0, %v542
      %v544 = vpop.f32.mrf.mxu0
      %545 = vdwg.mxu0
      %v546 = vsel %vm373, %v540, -2.3819763e+38
      %v547 = vsel %vm373, %v543, -2.3819763e+38
      %v548 = vld [vmem:[#allocation2] sm:$0xff]
      %v549 = vld [vmem:[#allocation2 + $0x8] sm:$0xff]
      %v550 = vsel %vm378, %v546, -inf
      %551 = vmax.xlane.f32.xlu0 %v550
      %v552 = vpop.xlane.xlu0 %551
      %v553 = vsel %vm378, %v547, -inf
      %554 = vmax.xlane.f32.xlu0 %v553
      %v555 = vpop.xlane.xlu0 %554
      %v556 = vmax.f32 %v548, %v552
      %v557 = vmax.f32 %v549, %v555
      %v558 = vsub.f32 %v548, %v556
      %v559 = vsub.f32 %v549, %v557
      %v560 = vmul.f32 %v558, 1.442695
      %v561 = vpow.pop %v560
      %v562 = vmul.f32 %v559, 1.442695
      %v563 = vpow.pop %v562
      %565 = vset.pattern.permute.xlu0 1
      %566 = vperm.xlu0 %565, %v556
      %v567 = vpop.permute.xlu0 %566
      %570 = vset.pattern.permute.xlu0 1
      %571 = vperm.xlu0 %570, %v557
      %v572 = vpop.permute.xlu0 %571
      %v574 = vsub.f32 %v546, %v567
      %v575 = vsub.f32 %v547, %v572
      %v576 = vmul.f32 %v574, 1.442695
      %v577 = vpow.pop %v576
      %v578 = vmul.f32 %v575, 1.442695
      %v579 = vpow.pop %v578
      %v580 = vld [vmem:[#allocation3] sm:$0xff]
      %v581 = vld [vmem:[#allocation3 + $0x8] sm:$0xff]
      %v582 = vmul.f32 %v561, %v580
      %v583 = vmul.f32 %v563, %v581
      %v584 = vsel %vm378, %v577, 0.0
      %585 = vadd.xlane.f32.xlu0 %v584
      %v586 = vpop.xlane.xlu0 %585
      %v587 = vsel %vm378, %v579, 0.0
      %588 = vadd.xlane.f32.xlu0 %v587
      %v589 = vpop.xlane.xlu0 %588
      %v590 = vadd.f32 %v582, %v586
      %v591 = vadd.f32 %v583, %v589
      %vm592 = vcmask 15368
      %593 = vst.msk [vmem:[#allocation3] sm:$0xff] %vm592, %v590
      %594 = vst.msk [vmem:[#allocation3 + $0x8] sm:$0xff] %vm592, %v591
      %v595 = vpack.c.bf16 %v579, %v577
      %596 = vrot.lane.b32.xlu0 %v429, 124
      %v597 = vpop.permute.xlu0 %596
      %v600 = vsel %vm378, %v595, 0
      %602 = vmatprep.subr.bf16.mxu0 0
      %603 = vmatpush1.bf16.msra.mxu0 0
      %604 = vmatprep.subr.bf16.mxu0 0
      %605 = vmatpush1.bf16.msra.mxu0 0
      %606 = vmatprep.subr.bf16.mxu0 0
      %607 = vmatpush1.bf16.msra.mxu0 0
      %608 = vmatprep.subr.bf16.mxu0 0
      %609 = vmatpush1.bf16.msra.mxu0 0
      %610 = vmatprep.subr.bf16.mxu0 0
      %611 = vmatpush1.bf16.msra.mxu0 0
      %612 = vmatprep.subr.bf16.mxu0 0
      %613 = vmatpush1.bf16.msra.mxu0 0
      %614 = vmatprep.subr.bf16.mxu0 0
      %615 = vmatpush1.bf16.msra.mxu0 0
      %616 = vmatprep.subr.bf16.mxu0 0
      %617 = vmatpush1.bf16.msra.mxu0 %v597
      %618 = vmatprep.subr.bf16.mxu0 0
      %619 = vmatpush2.bf16.msra.mxu0 0
      %620 = vmatprep.subr.bf16.mxu0 0
      %621 = vmatpush2.bf16.msra.mxu0 0
      %622 = vmatprep.subr.bf16.mxu0 0
      %623 = vmatpush2.bf16.msra.mxu0 0
      %624 = vmatprep.subr.bf16.mxu0 0
      %625 = vmatpush2.bf16.msra.mxu0 0
      %626 = vmatprep.subr.bf16.mxu0 0
      %627 = vmatpush2.bf16.msra.mxu0 0
      %628 = vmatprep.subr.bf16.mxu0 0
      %629 = vmatpush2.bf16.msra.mxu0 0
      %630 = vmatprep.subr.bf16.mxu0 0
      %631 = vmatpush2.bf16.msra.mxu0 0
      %632 = vmatprep.subr.bf16.mxu0 0
      %633 = vmatpush2.bf16.msra.mxu0 0
      %634 = vmatprep.mubr.bf16.mxu0 0
      %635 = vmatmul.mubr.bf16.gmra.mxu0 %v600
      %v636 = vpop.f32.mrf.mxu0
      %v637 = vadd.f32 0.0, %v636
      %v638 = vpop.f32.mrf.mxu0
      %v639 = vpop.f32.mrf.mxu0
      %v640 = vadd.f32 0.0, %v639
      %v641 = vpop.f32.mrf.mxu0
      %642 = vdwg.mxu0
      %v643 = vld [vmem:[#allocation4] sm:$0xff]
      %v644 = vld [vmem:[#allocation4 + $0x8] sm:$0xff]
      %646 = vset.pattern.permute.xlu0 1
      %647 = vperm.xlu0 %646, %v561
      %v648 = vpop.permute.xlu0 %647
      %651 = vset.pattern.permute.xlu0 1
      %652 = vperm.xlu0 %651, %v563
      %v653 = vpop.permute.xlu0 %652
      %v655 = vmul.f32 %v648, %v643
      %v656 = vmul.f32 %v653, %v644
      %659 = vrot.lane.b32.xlu0 %v637, 4
      %v660 = vpop.permute.xlu0 %659
      %661 = vrot.lane.b32.xlu0 %v640, 4
      %v662 = vpop.permute.xlu0 %661
      %v665 = vadd.f32 %v655, %v660
      %v666 = vadd.f32 %v656, %v662
      %vm667 = vcmask 64544
      %668 = vst.msk [vmem:[#allocation4] sm:$0xff] %vm667, %v665
      %669 = vst.msk [vmem:[#allocation4 + $0x8] sm:$0xff] %vm667, %v666
      %670 = vst.msk [vmem:[#allocation2] sm:$0xff] %vm592, %v556
      %671 = vst.msk [vmem:[#allocation2 + $0x8] sm:$0xff] %vm592, %v557
      %672 = vrot.lane.b32.xlu0 %v318, 120
      %v673 = vpop.permute.xlu0 %672
      %674 = vrot.lane.b32.xlu0 %v323, 120
      %v675 = vpop.permute.xlu0 %674
      %v677 = vsel %vm324, %v673, 0
      %v680 = vsel %vm324, %v675, 0
      %682 = vmatprep.subr.bf16.mxu0 0
      %683 = vmatpush1.bf16.xpose.msra.mxu0 0
      %684 = vmatprep.subr.bf16.mxu0 0
      %685 = vmatpush1.bf16.xpose.msra.mxu0 0
      %686 = vmatprep.subr.bf16.mxu0 0
      %687 = vmatpush1.bf16.xpose.msra.mxu0 0
      %688 = vmatprep.subr.bf16.mxu0 0
      %689 = vmatpush1.bf16.xpose.msra.mxu0 0
      %690 = vmatprep.subr.bf16.mxu0 0
      %691 = vmatpush1.bf16.xpose.msra.mxu0 0
      %692 = vmatprep.subr.bf16.mxu0 0
      %693 = vmatpush1.bf16.xpose.msra.mxu0 0
      %694 = vmatprep.subr.bf16.mxu0 0
      %695 = vmatpush1.bf16.xpose.msra.mxu0 0
      %696 = vmatprep.subr.bf16.mxu0 0
      %697 = vmatpush1.bf16.xpose.msra.mxu0 %v680
      %698 = vmatprep.subr.bf16.mxu0 0
      %699 = vmatpush2.bf16.xpose.msra.mxu0 0
      %700 = vmatprep.subr.bf16.mxu0 0
      %701 = vmatpush2.bf16.xpose.msra.mxu0 0
      %702 = vmatprep.subr.bf16.mxu0 0
      %703 = vmatpush2.bf16.xpose.msra.mxu0 0
      %704 = vmatprep.subr.bf16.mxu0 0
      %705 = vmatpush2.bf16.xpose.msra.mxu0 0
      %706 = vmatprep.subr.bf16.mxu0 0
      %707 = vmatpush2.bf16.xpose.msra.mxu0 0
      %708 = vmatprep.subr.bf16.mxu0 0
      %709 = vmatpush2.bf16.xpose.msra.mxu0 0
      %710 = vmatprep.subr.bf16.mxu0 0
      %711 = vmatpush2.bf16.xpose.msra.mxu0 0
      %712 = vmatprep.subr.bf16.mxu0 0
      %713 = vmatpush2.bf16.xpose.msra.mxu0 0
      %714 = vmatprep.mubr.bf16.mxu0 0
      %715 = vmatmul.mubr.bf16.gmra.mxu0 %v677
      %v716 = vpop.f32.mrf.mxu0
      %v717 = vadd.f32 0.0, %v716
      %v718 = vpop.f32.mrf.mxu0
      %v719 = vpop.f32.mrf.mxu0
      %v720 = vadd.f32 0.0, %v719
      %v721 = vpop.f32.mrf.mxu0
      %722 = vdwg.mxu0
      %v723 = vsel %vm373, %v717, -2.3819763e+38
      %v724 = vsel %vm373, %v720, -2.3819763e+38
      %v725 = vld [vmem:[#allocation2] sm:$0xff]
      %v726 = vld [vmem:[#allocation2 + $0x8] sm:$0xff]
      %v727 = vsel %vm378, %v723, -inf
      %728 = vmax.xlane.f32.xlu0 %v727
      %v729 = vpop.xlane.xlu0 %728
      %v730 = vsel %vm378, %v724, -inf
      %731 = vmax.xlane.f32.xlu0 %v730
      %v732 = vpop.xlane.xlu0 %731
      %v733 = vmax.f32 %v725, %v729
      %v734 = vmax.f32 %v726, %v732
      %v735 = vsub.f32 %v725, %v733
      %v736 = vsub.f32 %v726, %v734
      %v737 = vmul.f32 %v735, 1.442695
      %v738 = vpow.pop %v737
      %v739 = vmul.f32 %v736, 1.442695
      %v740 = vpow.pop %v739
      %742 = vset.pattern.permute.xlu0 2
      %743 = vperm.xlu0 %742, %v733
      %v744 = vpop.permute.xlu0 %743
      %747 = vset.pattern.permute.xlu0 2
      %748 = vperm.xlu0 %747, %v734
      %v749 = vpop.permute.xlu0 %748
      %v751 = vsub.f32 %v723, %v744
      %v752 = vsub.f32 %v724, %v749
      %v753 = vmul.f32 %v751, 1.442695
      %v754 = vpow.pop %v753
      %v755 = vmul.f32 %v752, 1.442695
      %v756 = vpow.pop %v755
      %v757 = vld [vmem:[#allocation3] sm:$0xff]
      %v758 = vld [vmem:[#allocation3 + $0x8] sm:$0xff]
      %v759 = vmul.f32 %v738, %v757
      %v760 = vmul.f32 %v740, %v758
      %v761 = vsel %vm378, %v754, 0.0
      %762 = vadd.xlane.f32.xlu0 %v761
      %v763 = vpop.xlane.xlu0 %762
      %v764 = vsel %vm378, %v756, 0.0
      %765 = vadd.xlane.f32.xlu0 %v764
      %v766 = vpop.xlane.xlu0 %765
      %v767 = vadd.f32 %v759, %v763
      %v768 = vadd.f32 %v760, %v766
      %vm769 = vcmask 23568
      %770 = vst.msk [vmem:[#allocation3] sm:$0xff] %vm769, %v767
      %771 = vst.msk [vmem:[#allocation3 + $0x8] sm:$0xff] %vm769, %v768
      %v772 = vpack.c.bf16 %v756, %v754
      %773 = vrot.lane.b32.xlu0 %v429, 120
      %v774 = vpop.permute.xlu0 %773
      %v777 = vsel %vm378, %v772, 0
      %779 = vmatprep.subr.bf16.mxu0 0
      %780 = vmatpush1.bf16.msra.mxu0 0
      %781 = vmatprep.subr.bf16.mxu0 0
      %782 = vmatpush1.bf16.msra.mxu0 0
      %783 = vmatprep.subr.bf16.mxu0 0
      %784 = vmatpush1.bf16.msra.mxu0 0
      %785 = vmatprep.subr.bf16.mxu0 0
      %786 = vmatpush1.bf16.msra.mxu0 0
      %787 = vmatprep.subr.bf16.mxu0 0
      %788 = vmatpush1.bf16.msra.mxu0 0
      %789 = vmatprep.subr.bf16.mxu0 0
      %790 = vmatpush1.bf16.msra.mxu0 0
      %791 = vmatprep.subr.bf16.mxu0 0
      %792 = vmatpush1.bf16.msra.mxu0 0
      %793 = vmatprep.subr.bf16.mxu0 0
      %794 = vmatpush1.bf16.msra.mxu0 %v774
      %795 = vmatprep.subr.bf16.mxu0 0
      %796 = vmatpush2.bf16.msra.mxu0 0
      %797 = vmatprep.subr.bf16.mxu0 0
      %798 = vmatpush2.bf16.msra.mxu0 0
      %799 = vmatprep.subr.bf16.mxu0 0
      %800 = vmatpush2.bf16.msra.mxu0 0
      %801 = vmatprep.subr.bf16.mxu0 0
      %802 = vmatpush2.bf16.msra.mxu0 0
      %803 = vmatprep.subr.bf16.mxu0 0
      %804 = vmatpush2.bf16.msra.mxu0 0
      %805 = vmatprep.subr.bf16.mxu0 0
      %806 = vmatpush2.bf16.msra.mxu0 0
      %807 = vmatprep.subr.bf16.mxu0 0
      %808 = vmatpush2.bf16.msra.mxu0 0
      %809 = vmatprep.subr.bf16.mxu0 0
      %810 = vmatpush2.bf16.msra.mxu0 0
      %811 = vmatprep.mubr.bf16.mxu0 0
      %812 = vmatmul.mubr.bf16.gmra.mxu0 %v777
      %v813 = vpop.f32.mrf.mxu0
      %v814 = vadd.f32 0.0, %v813
      %v815 = vpop.f32.mrf.mxu0
      %v816 = vpop.f32.mrf.mxu0
      %v817 = vadd.f32 0.0, %v816
      %v818 = vpop.f32.mrf.mxu0
      %819 = vdwg.mxu0
      %v820 = vld [vmem:[#allocation4] sm:$0xff]
      %v821 = vld [vmem:[#allocation4 + $0x8] sm:$0xff]
      %823 = vset.pattern.permute.xlu0 2
      %824 = vperm.xlu0 %823, %v738
      %v825 = vpop.permute.xlu0 %824
      %828 = vset.pattern.permute.xlu0 2
      %829 = vperm.xlu0 %828, %v740
      %v830 = vpop.permute.xlu0 %829
      %v832 = vmul.f32 %v825, %v820
      %v833 = vmul.f32 %v830, %v821
      %836 = vrot.lane.b32.xlu0 %v814, 8
      %v837 = vpop.permute.xlu0 %836
      %838 = vrot.lane.b32.xlu0 %v817, 8
      %v839 = vpop.permute.xlu0 %838
      %v842 = vadd.f32 %v832, %v837
      %v843 = vadd.f32 %v833, %v839
      %vm844 = vcmask 97344
      %845 = vst.msk [vmem:[#allocation4] sm:$0xff] %vm844, %v842
      %846 = vst.msk [vmem:[#allocation4 + $0x8] sm:$0xff] %vm844, %v843
      %847 = vst.msk [vmem:[#allocation2] sm:$0xff] %vm769, %v733
      %848 = vst.msk [vmem:[#allocation2 + $0x8] sm:$0xff] %vm769, %v734
      %849 = vrot.lane.b32.xlu0 %v318, 116
      %v850 = vpop.permute.xlu0 %849
      %851 = vrot.lane.b32.xlu0 %v323, 116
      %v852 = vpop.permute.xlu0 %851
      %v854 = vsel %vm324, %v850, 0
      %v857 = vsel %vm324, %v852, 0
      %859 = vmatprep.subr.bf16.mxu0 0
      %860 = vmatpush1.bf16.xpose.msra.mxu0 0
      %861 = vmatprep.subr.bf16.mxu0 0
      %862 = vmatpush1.bf16.xpose.msra.mxu0 0
      %863 = vmatprep.subr.bf16.mxu0 0
      %864 = vmatpush1.bf16.xpose.msra.mxu0 0
      %865 = vmatprep.subr.bf16.mxu0 0
      %866 = vmatpush1.bf16.xpose.msra.mxu0 0
      %867 = vmatprep.subr.bf16.mxu0 0
      %868 = vmatpush1.bf16.xpose.msra.mxu0 0
      %869 = vmatprep.subr.bf16.mxu0 0
      %870 = vmatpush1.bf16.xpose.msra.mxu0 0
      %871 = vmatprep.subr.bf16.mxu0 0
      %872 = vmatpush1.bf16.xpose.msra.mxu0 0
      %873 = vmatprep.subr.bf16.mxu0 0
      %874 = vmatpush1.bf16.xpose.msra.mxu0 %v857
      %875 = vmatprep.subr.bf16.mxu0 0
      %876 = vmatpush2.bf16.xpose.msra.mxu0 0
      %877 = vmatprep.subr.bf16.mxu0 0
      %878 = vmatpush2.bf16.xpose.msra.mxu0 0
      %879 = vmatprep.subr.bf16.mxu0 0
      %880 = vmatpush2.bf16.xpose.msra.mxu0 0
      %881 = vmatprep.subr.bf16.mxu0 0
      %882 = vmatpush2.bf16.xpose.msra.mxu0 0
      %883 = vmatprep.subr.bf16.mxu0 0
      %884 = vmatpush2.bf16.xpose.msra.mxu0 0
      %885 = vmatprep.subr.bf16.mxu0 0
      %886 = vmatpush2.bf16.xpose.msra.mxu0 0
      %887 = vmatprep.subr.bf16.mxu0 0
      %888 = vmatpush2.bf16.xpose.msra.mxu0 0
      %889 = vmatprep.subr.bf16.mxu0 0
      %890 = vmatpush2.bf16.xpose.msra.mxu0 0
      %891 = vmatprep.mubr.bf16.mxu0 0
      %892 = vmatmul.mubr.bf16.gmra.mxu0 %v854
      %v893 = vpop.f32.mrf.mxu0
      %v894 = vadd.f32 0.0, %v893
      %v895 = vpop.f32.mrf.mxu0
      %v896 = vpop.f32.mrf.mxu0
      %v897 = vadd.f32 0.0, %v896
      %v898 = vpop.f32.mrf.mxu0
      %899 = vdwg.mxu0
      %v900 = vsel %vm373, %v894, -2.3819763e+38
      %v901 = vsel %vm373, %v897, -2.3819763e+38
      %v902 = vld [vmem:[#allocation2] sm:$0xff]
      %v903 = vld [vmem:[#allocation2 + $0x8] sm:$0xff]
      %v904 = vsel %vm378, %v900, -inf
      %905 = vmax.xlane.f32.xlu0 %v904
      %v906 = vpop.xlane.xlu0 %905
      %v907 = vsel %vm378, %v901, -inf
      %908 = vmax.xlane.f32.xlu0 %v907
      %v909 = vpop.xlane.xlu0 %908
      %v910 = vmax.f32 %v902, %v906
      %v911 = vmax.f32 %v903, %v909
      %v912 = vsub.f32 %v902, %v910
      %v913 = vsub.f32 %v903, %v911
      %v914 = vmul.f32 %v912, 1.442695
      %v915 = vpow.pop %v914
      %v916 = vmul.f32 %v913, 1.442695
      %v917 = vpow.pop %v916
      %919 = vset.pattern.permute.xlu0 3
      %920 = vperm.xlu0 %919, %v910
      %v921 = vpop.permute.xlu0 %920
      %924 = vset.pattern.permute.xlu0 3
      %925 = vperm.xlu0 %924, %v911
      %v926 = vpop.permute.xlu0 %925
      %v928 = vsub.f32 %v900, %v921
      %v929 = vsub.f32 %v901, %v926
      %v930 = vmul.f32 %v928, 1.442695
      %v931 = vpow.pop %v930
      %v932 = vmul.f32 %v929, 1.442695
      %v933 = vpow.pop %v932
      %v934 = vld [vmem:[#allocation3] sm:$0xff]
      %v935 = vld [vmem:[#allocation3 + $0x8] sm:$0xff]
      %v936 = vmul.f32 %v915, %v934
      %v937 = vmul.f32 %v917, %v935
      %v938 = vsel %vm378, %v931, 0.0
      %939 = vadd.xlane.f32.xlu0 %v938
      %v940 = vpop.xlane.xlu0 %939
      %v941 = vsel %vm378, %v933, 0.0
      %942 = vadd.xlane.f32.xlu0 %v941
      %v943 = vpop.xlane.xlu0 %942
      %v944 = vadd.f32 %v936, %v940
      %v945 = vadd.f32 %v937, %v943
      %vm946 = vcmask 31768
      %947 = vst.msk [vmem:[#allocation3] sm:$0xff] %vm946, %v944
      %948 = vst.msk [vmem:[#allocation3 + $0x8] sm:$0xff] %vm946, %v945
      %v949 = vpack.c.bf16 %v933, %v931
      %950 = vrot.lane.b32.xlu0 %v429, 116
      %v951 = vpop.permute.xlu0 %950
      %v954 = vsel %vm378, %v949, 0
      %956 = vmatprep.subr.bf16.mxu0 0
      %957 = vmatpush1.bf16.msra.mxu0 0
      %958 = vmatprep.subr.bf16.mxu0 0
      %959 = vmatpush1.bf16.msra.mxu0 0
      %960 = vmatprep.subr.bf16.mxu0 0
      %961 = vmatpush1.bf16.msra.mxu0 0
      %962 = vmatprep.subr.bf16.mxu0 0
      %963 = vmatpush1.bf16.msra.mxu0 0
      %964 = vmatprep.subr.bf16.mxu0 0
      %965 = vmatpush1.bf16.msra.mxu0 0
      %966 = vmatprep.subr.bf16.mxu0 0
      %967 = vmatpush1.bf16.msra.mxu0 0
      %968 = vmatprep.subr.bf16.mxu0 0
      %969 = vmatpush1.bf16.msra.mxu0 0
      %970 = vmatprep.subr.bf16.mxu0 0
      %971 = vmatpush1.bf16.msra.mxu0 %v951
      %972 = vmatprep.subr.bf16.mxu0 0
      %973 = vmatpush2.bf16.msra.mxu0 0
      %974 = vmatprep.subr.bf16.mxu0 0
      %975 = vmatpush2.bf16.msra.mxu0 0
      %976 = vmatprep.subr.bf16.mxu0 0
      %977 = vmatpush2.bf16.msra.mxu0 0
      %978 = vmatprep.subr.bf16.mxu0 0
      %979 = vmatpush2.bf16.msra.mxu0 0
      %980 = vmatprep.subr.bf16.mxu0 0
      %981 = vmatpush2.bf16.msra.mxu0 0
      %982 = vmatprep.subr.bf16.mxu0 0
      %983 = vmatpush2.bf16.msra.mxu0 0
      %984 = vmatprep.subr.bf16.mxu0 0
      %985 = vmatpush2.bf16.msra.mxu0 0
      %986 = vmatprep.subr.bf16.mxu0 0
      %987 = vmatpush2.bf16.msra.mxu0 0
      %988 = vmatprep.mubr.bf16.mxu0 0
      %989 = vmatmul.mubr.bf16.gmra.mxu0 %v954
      %v990 = vpop.f32.mrf.mxu0
      %v991 = vadd.f32 0.0, %v990
      %v992 = vpop.f32.mrf.mxu0
      %v993 = vpop.f32.mrf.mxu0
      %v994 = vadd.f32 0.0, %v993
      %v995 = vpop.f32.mrf.mxu0
      %996 = vdwg.mxu0
      %v997 = vld [vmem:[#allocation4] sm:$0xff]
      %v998 = vld [vmem:[#allocation4 + $0x8] sm:$0xff]
      %1000 = vset.pattern.permute.xlu0 3
      %1001 = vperm.xlu0 %1000, %v915
      %v1002 = vpop.permute.xlu0 %1001
      %1005 = vset.pattern.permute.xlu0 3
      %1006 = vperm.xlu0 %1005, %v917
      %v1007 = vpop.permute.xlu0 %1006
      %v1009 = vmul.f32 %v1002, %v997
      %v1010 = vmul.f32 %v1007, %v998
      %1013 = vrot.lane.b32.xlu0 %v991, 12
      %v1014 = vpop.permute.xlu0 %1013
      %1015 = vrot.lane.b32.xlu0 %v994, 12
      %v1016 = vpop.permute.xlu0 %1015
      %v1019 = vadd.f32 %v1009, %v1014
      %v1020 = vadd.f32 %v1010, %v1016
      %vm1021 = vcmask 130144
      %1022 = vst.msk [vmem:[#allocation4] sm:$0xff] %vm1021, %v1019
      %1023 = vst.msk [vmem:[#allocation4 + $0x8] sm:$0xff] %vm1021, %v1020
      %1024 = vst.msk [vmem:[#allocation2] sm:$0xff] %vm946, %v910
      %1025 = vst.msk [vmem:[#allocation2 + $0x8] sm:$0xff] %vm946, %v911
      %1026 = vrot.lane.b32.xlu0 %v318, 112
      %v1027 = vpop.permute.xlu0 %1026
      %1028 = vrot.lane.b32.xlu0 %v323, 112
      %v1029 = vpop.permute.xlu0 %1028
      %v1031 = vsel %vm324, %v1027, 0
      %v1034 = vsel %vm324, %v1029, 0
      %1036 = vmatprep.subr.bf16.mxu0 0
      %1037 = vmatpush1.bf16.xpose.msra.mxu0 0
      %1038 = vmatprep.subr.bf16.mxu0 0
      %1039 = vmatpush1.bf16.xpose.msra.mxu0 0
      %1040 = vmatprep.subr.bf16.mxu0 0
      %1041 = vmatpush1.bf16.xpose.msra.mxu0 0
      %1042 = vmatprep.subr.bf16.mxu0 0
      %1043 = vmatpush1.bf16.xpose.msra.mxu0 0
      %1044 = vmatprep.subr.bf16.mxu0 0
      %1045 = vmatpush1.bf16.xpose.msra.mxu0 0
      %1046 = vmatprep.subr.bf16.mxu0 0
      %1047 = vmatpush1.bf16.xpose.msra.mxu0 0
      %1048 = vmatprep.subr.bf16.mxu0 0
      %1049 = vmatpush1.bf16.xpose.msra.mxu0 0
      %1050 = vmatprep.subr.bf16.mxu0 0
      %1051 = vmatpush1.bf16.xpose.msra.mxu0 %v1034
      %1052 = vmatprep.subr.bf16.mxu0 0
      %1053 = vmatpush2.bf16.xpose.msra.mxu0 0
      %1054 = vmatprep.subr.bf16.mxu0 0
      %1055 = vmatpush2.bf16.xpose.msra.mxu0 0
      %1056 = vmatprep.subr.bf16.mxu0 0
      %1057 = vmatpush2.bf16.xpose.msra.mxu0 0
      %1058 = vmatprep.subr.bf16.mxu0 0
      %1059 = vmatpush2.bf16.xpose.msra.mxu0 0
      %1060 = vmatprep.subr.bf16.mxu0 0
      %1061 = vmatpush2.bf16.xpose.msra.mxu0 0
      %1062 = vmatprep.subr.bf16.mxu0 0
      %1063 = vmatpush2.bf16.xpose.msra.mxu0 0
      %1064 = vmatprep.subr.bf16.mxu0 0
      %1065 = vmatpush2.bf16.xpose.msra.mxu0 0
      %1066 = vmatprep.subr.bf16.mxu0 0
      %1067 = vmatpush2.bf16.xpose.msra.mxu0 0
      %1068 = vmatprep.mubr.bf16.mxu0 0
      %1069 = vmatmul.mubr.bf16.gmra.mxu0 %v1031
      %v1070 = vpop.f32.mrf.mxu0
      %v1071 = vadd.f32 0.0, %v1070
      %v1072 = vpop.f32.mrf.mxu0
      %v1073 = vpop.f32.mrf.mxu0
      %v1074 = vadd.f32 0.0, %v1073
      %v1075 = vpop.f32.mrf.mxu0
      %1076 = vdwg.mxu0
      %v1077 = vsel %vm373, %v1071, -2.3819763e+38
      %v1078 = vsel %vm373, %v1074, -2.3819763e+38
      %v1079 = vld [vmem:[#allocation2] sm:$0xff]
      %v1080 = vld [vmem:[#allocation2 + $0x8] sm:$0xff]
      %v1081 = vsel %vm378, %v1077, -inf
      %1082 = vmax.xlane.f32.xlu0 %v1081
      %v1083 = vpop.xlane.xlu0 %1082
      %v1084 = vsel %vm378, %v1078, -inf
      %1085 = vmax.xlane.f32.xlu0 %v1084
      %v1086 = vpop.xlane.xlu0 %1085
      %v1087 = vmax.f32 %v1079, %v1083
      %v1088 = vmax.f32 %v1080, %v1086
      %v1089 = vsub.f32 %v1079, %v1087
      %v1090 = vsub.f32 %v1080, %v1088
      %v1091 = vmul.f32 %v1089, 1.442695
      %v1092 = vpow.pop %v1091
      %v1093 = vmul.f32 %v1090, 1.442695
      %v1094 = vpow.pop %v1093
      %1096 = vset.pattern.permute.xlu0 4
      %1097 = vperm.xlu0 %1096, %v1087
      %v1098 = vpop.permute.xlu0 %1097
      %1101 = vset.pattern.permute.xlu0 4
      %1102 = vperm.xlu0 %1101, %v1088
      %v1103 = vpop.permute.xlu0 %1102
      %v1105 = vsub.f32 %v1077, %v1098
      %v1106 = vsub.f32 %v1078, %v1103
      %v1107 = vmul.f32 %v1105, 1.442695
      %v1108 = vpow.pop %v1107
      %v1109 = vmul.f32 %v1106, 1.442695
      %v1110 = vpow.pop %v1109
      %v1111 = vld [vmem:[#allocation3] sm:$0xff]
      %v1112 = vld [vmem:[#allocation3 + $0x8] sm:$0xff]
      %v1113 = vmul.f32 %v1092, %v1111
      %v1114 = vmul.f32 %v1094, %v1112
      %v1115 = vsel %vm378, %v1108, 0.0
      %1116 = vadd.xlane.f32.xlu0 %v1115
      %v1117 = vpop.xlane.xlu0 %1116
      %v1118 = vsel %vm378, %v1110, 0.0
      %1119 = vadd.xlane.f32.xlu0 %v1118
      %v1120 = vpop.xlane.xlu0 %1119
      %v1121 = vadd.f32 %v1113, %v1117
      %v1122 = vadd.f32 %v1114, %v1120
      %vm1123 = vcmask 39968
      %1124 = vst.msk [vmem:[#allocation3] sm:$0xff] %vm1123, %v1121
      %1125 = vst.msk [vmem:[#allocation3 + $0x8] sm:$0xff] %vm1123, %v1122
      %v1126 = vpack.c.bf16 %v1110, %v1108
      %1127 = vrot.lane.b32.xlu0 %v429, 112
      %v1128 = vpop.permute.xlu0 %1127
      %v1131 = vsel %vm378, %v1126, 0
      %1133 = vmatprep.subr.bf16.mxu0 0
      %1134 = vmatpush1.bf16.msra.mxu0 0
      %1135 = vmatprep.subr.bf16.mxu0 0
      %1136 = vmatpush1.bf16.msra.mxu0 0
      %1137 = vmatprep.subr.bf16.mxu0 0
      %1138 = vmatpush1.bf16.msra.mxu0 0
      %1139 = vmatprep.subr.bf16.mxu0 0
      %1140 = vmatpush1.bf16.msra.mxu0 0
      %1141 = vmatprep.subr.bf16.mxu0 0
      %1142 = vmatpush1.bf16.msra.mxu0 0
      %1143 = vmatprep.subr.bf16.mxu0 0
      %1144 = vmatpush1.bf16.msra.mxu0 0
      %1145 = vmatprep.subr.bf16.mxu0 0
      %1146 = vmatpush1.bf16.msra.mxu0 0
      %1147 = vmatprep.subr.bf16.mxu0 0
      %1148 = vmatpush1.bf16.msra.mxu0 %v1128
      %1149 = vmatprep.subr.bf16.mxu0 0
      %1150 = vmatpush2.bf16.msra.mxu0 0
      %1151 = vmatprep.subr.bf16.mxu0 0
      %1152 = vmatpush2.bf16.msra.mxu0 0
      %1153 = vmatprep.subr.bf16.mxu0 0
      %1154 = vmatpush2.bf16.msra.mxu0 0
      %1155 = vmatprep.subr.bf16.mxu0 0
      %1156 = vmatpush2.bf16.msra.mxu0 0
      %1157 = vmatprep.subr.bf16.mxu0 0
      %1158 = vmatpush2.bf16.msra.mxu0 0
      %1159 = vmatprep.subr.bf16.mxu0 0
      %1160 = vmatpush2.bf16.msra.mxu0 0
      %1161 = vmatprep.subr.bf16.mxu0 0
      %1162 = vmatpush2.bf16.msra.mxu0 0
      %1163 = vmatprep.subr.bf16.mxu0 0
      %1164 = vmatpush2.bf16.msra.mxu0 0
      %1165 = vmatprep.mubr.bf16.mxu0 0
      %1166 = vmatmul.mubr.bf16.gmra.mxu0 %v1131
      %v1167 = vpop.f32.mrf.mxu0
      %v1168 = vadd.f32 0.0, %v1167
      %v1169 = vpop.f32.mrf.mxu0
      %v1170 = vpop.f32.mrf.mxu0
      %v1171 = vadd.f32 0.0, %v1170
      %v1172 = vpop.f32.mrf.mxu0
      %1173 = vdwg.mxu0
      %v1174 = vld [vmem:[#allocation4] sm:$0xff]
      %v1175 = vld [vmem:[#allocation4 + $0x8] sm:$0xff]
      %1177 = vset.pattern.permute.xlu0 4
      %1178 = vperm.xlu0 %1177, %v1092
      %v1179 = vpop.permute.xlu0 %1178
      %1182 = vset.pattern.permute.xlu0 4
      %1183 = vperm.xlu0 %1182, %v1094
      %v1184 = vpop.permute.xlu0 %1183
      %v1186 = vmul.f32 %v1179, %v1174
      %v1187 = vmul.f32 %v1184, %v1175
      %1190 = vrot.lane.b32.xlu0 %v1168, 16
      %v1191 = vpop.permute.xlu0 %1190
      %1192 = vrot.lane.b32.xlu0 %v1171, 16
      %v1193 = vpop.permute.xlu0 %1192
      %v1196 = vadd.f32 %v1186, %v1191
      %v1197 = vadd.f32 %v1187, %v1193
      %vm1198 = vcmask 162944
      %1199 = vst.msk [vmem:[#allocation4] sm:$0xff] %vm1198, %v1196
      %1200 = vst.msk [vmem:[#allocation4 + $0x8] sm:$0xff] %vm1198, %v1197
      %1201 = vst.msk [vmem:[#allocation2] sm:$0xff] %vm1123, %v1087
      %1202 = vst.msk [vmem:[#allocation2 + $0x8] sm:$0xff] %vm1123, %v1088
      %1203 = vrot.lane.b32.xlu0 %v318, 108
      %v1204 = vpop.permute.xlu0 %1203
      %1205 = vrot.lane.b32.xlu0 %v323, 108
      %v1206 = vpop.permute.xlu0 %1205
      %v1208 = vsel %vm324, %v1204, 0
      %v1211 = vsel %vm324, %v1206, 0
      %1213 = vmatprep.subr.bf16.mxu0 0
      %1214 = vmatpush1.bf16.xpose.msra.mxu0 0
      %1215 = vmatprep.subr.bf16.mxu0 0
      %1216 = vmatpush1.bf16.xpose.msra.mxu0 0
      %1217 = vmatprep.subr.bf16.mxu0 0
      %1218 = vmatpush1.bf16.xpose.msra.mxu0 0
      %1219 = vmatprep.subr.bf16.mxu0 0
      %1220 = vmatpush1.bf16.xpose.msra.mxu0 0
      %1221 = vmatprep.subr.bf16.mxu0 0
      %1222 = vmatpush1.bf16.xpose.msra.mxu0 0
      %1223 = vmatprep.subr.bf16.mxu0 0
      %1224 = vmatpush1.bf16.xpose.msra.mxu0 0
      %1225 = vmatprep.subr.bf16.mxu0 0
      %1226 = vmatpush1.bf16.xpose.msra.mxu0 0
      %1227 = vmatprep.subr.bf16.mxu0 0
      %1228 = vmatpush1.bf16.xpose.msra.mxu0 %v1211
      %1229 = vmatprep.subr.bf16.mxu0 0
      %1230 = vmatpush2.bf16.xpose.msra.mxu0 0
      %1231 = vmatprep.subr.bf16.mxu0 0
      %1232 = vmatpush2.bf16.xpose.msra.mxu0 0
      %1233 = vmatprep.subr.bf16.mxu0 0
      %1234 = vmatpush2.bf16.xpose.msra.mxu0 0
      %1235 = vmatprep.subr.bf16.mxu0 0
      %1236 = vmatpush2.bf16.xpose.msra.mxu0 0
      %1237 = vmatprep.subr.bf16.mxu0 0
      %1238 = vmatpush2.bf16.xpose.msra.mxu0 0
      %1239 = vmatprep.subr.bf16.mxu0 0
      %1240 = vmatpush2.bf16.xpose.msra.mxu0 0
      %1241 = vmatprep.subr.bf16.mxu0 0
      %1242 = vmatpush2.bf16.xpose.msra.mxu0 0
      %1243 = vmatprep.subr.bf16.mxu0 0
      %1244 = vmatpush2.bf16.xpose.msra.mxu0 0
      %1245 = vmatprep.mubr.bf16.mxu0 0
      %1246 = vmatmul.mubr.bf16.gmra.mxu0 %v1208
      %v1247 = vpop.f32.mrf.mxu0
      %v1248 = vadd.f32 0.0, %v1247
      %v1249 = vpop.f32.mrf.mxu0
      %v1250 = vpop.f32.mrf.mxu0
      %v1251 = vadd.f32 0.0, %v1250
      %v1252 = vpop.f32.mrf.mxu0
      %1253 = vdwg.mxu0
      %v1254 = vsel %vm373, %v1248, -2.3819763e+38
      %v1255 = vsel %vm373, %v1251, -2.3819763e+38
      %v1256 = vld [vmem:[#allocation2] sm:$0xff]
      %v1257 = vld [vmem:[#allocation2 + $0x8] sm:$0xff]
      %v1258 = vsel %vm378, %v1254, -inf
      %1259 = vmax.xlane.f32.xlu0 %v1258
      %v1260 = vpop.xlane.xlu0 %1259
      %v1261 = vsel %vm378, %v1255, -inf
      %1262 = vmax.xlane.f32.xlu0 %v1261
      %v1263 = vpop.xlane.xlu0 %1262
      %v1264 = vmax.f32 %v1256, %v1260
      %v1265 = vmax.f32 %v1257, %v1263
      %v1266 = vsub.f32 %v1256, %v1264
      %v1267 = vsub.f32 %v1257, %v1265
      %v1268 = vmul.f32 %v1266, 1.442695
      %v1269 = vpow.pop %v1268
      %v1270 = vmul.f32 %v1267, 1.442695
      %v1271 = vpow.pop %v1270
      %1273 = vset.pattern.permute.xlu0 5
      %1274 = vperm.xlu0 %1273, %v1264
      %v1275 = vpop.permute.xlu0 %1274
      %1278 = vset.pattern.permute.xlu0 5
      %1279 = vperm.xlu0 %1278, %v1265
      %v1280 = vpop.permute.xlu0 %1279
      %v1282 = vsub.f32 %v1254, %v1275
      %v1283 = vsub.f32 %v1255, %v1280
      %v1284 = vmul.f32 %v1282, 1.442695
      %v1285 = vpow.pop %v1284
      %v1286 = vmul.f32 %v1283, 1.442695
      %v1287 = vpow.pop %v1286
      %v1288 = vld [vmem:[#allocation3] sm:$0xff]
      %v1289 = vld [vmem:[#allocation3 + $0x8] sm:$0xff]
      %v1290 = vmul.f32 %v1269, %v1288
      %v1291 = vmul.f32 %v1271, %v1289
      %v1292 = vsel %vm378, %v1285, 0.0
      %1293 = vadd.xlane.f32.xlu0 %v1292
      %v1294 = vpop.xlane.xlu0 %1293
      %v1295 = vsel %vm378, %v1287, 0.0
      %1296 = vadd.xlane.f32.xlu0 %v1295
      %v1297 = vpop.xlane.xlu0 %1296
      %v1298 = vadd.f32 %v1290, %v1294
      %v1299 = vadd.f32 %v1291, %v1297
      %vm1300 = vcmask 48168
      %1301 = vst.msk [vmem:[#allocation3] sm:$0xff] %vm1300, %v1298
      %1302 = vst.msk [vmem:[#allocation3 + $0x8] sm:$0xff] %vm1300, %v1299
      %v1303 = vpack.c.bf16 %v1287, %v1285
      %1304 = vrot.lane.b32.xlu0 %v429, 108
      %v1305 = vpop.permute.xlu0 %1304
      %v1308 = vsel %vm378, %v1303, 0
      %1310 = vmatprep.subr.bf16.mxu0 0
      %1311 = vmatpush1.bf16.msra.mxu0 0
      %1312 = vmatprep.subr.bf16.mxu0 0
      %1313 = vmatpush1.bf16.msra.mxu0 0
      %1314 = vmatprep.subr.bf16.mxu0 0
      %1315 = vmatpush1.bf16.msra.mxu0 0
      %1316 = vmatprep.subr.bf16.mxu0 0
      %1317 = vmatpush1.bf16.msra.mxu0 0
      %1318 = vmatprep.subr.bf16.mxu0 0
      %1319 = vmatpush1.bf16.msra.mxu0 0
      %1320 = vmatprep.subr.bf16.mxu0 0
      %1321 = vmatpush1.bf16.msra.mxu0 0
      %1322 = vmatprep.subr.bf16.mxu0 0
      %1323 = vmatpush1.bf16.msra.mxu0 0
      %1324 = vmatprep.subr.bf16.mxu0 0
      %1325 = vmatpush1.bf16.msra.mxu0 %v1305
      %1326 = vmatprep.subr.bf16.mxu0 0
      %1327 = vmatpush2.bf16.msra.mxu0 0
      %1328 = vmatprep.subr.bf16.mxu0 0
      %1329 = vmatpush2.bf16.msra.mxu0 0
      %1330 = vmatprep.subr.bf16.mxu0 0
      %1331 = vmatpush2.bf16.msra.mxu0 0
      %1332 = vmatprep.subr.bf16.mxu0 0
      %1333 = vmatpush2.bf16.msra.mxu0 0
      %1334 = vmatprep.subr.bf16.mxu0 0
      %1335 = vmatpush2.bf16.msra.mxu0 0
      %1336 = vmatprep.subr.bf16.mxu0 0
      %1337 = vmatpush2.bf16.msra.mxu0 0
      %1338 = vmatprep.subr.bf16.mxu0 0
      %1339 = vmatpush2.bf16.msra.mxu0 0
      %1340 = vmatprep.subr.bf16.mxu0 0
      %1341 = vmatpush2.bf16.msra.mxu0 0
      %1342 = vmatprep.mubr.bf16.mxu0 0
      %1343 = vmatmul.mubr.bf16.gmra.mxu0 %v1308
      %v1344 = vpop.f32.mrf.mxu0
      %v1345 = vadd.f32 0.0, %v1344
      %v1346 = vpop.f32.mrf.mxu0
      %v1347 = vpop.f32.mrf.mxu0
      %v1348 = vadd.f32 0.0, %v1347
      %v1349 = vpop.f32.mrf.mxu0
      %1350 = vdwg.mxu0
      %v1351 = vld [vmem:[#allocation4] sm:$0xff]
      %v1352 = vld [vmem:[#allocation4 + $0x8] sm:$0xff]
      %1354 = vset.pattern.permute.xlu0 5
      %1355 = vperm.xlu0 %1354, %v1269
      %v1356 = vpop.permute.xlu0 %1355
      %1359 = vset.pattern.permute.xlu0 5
      %1360 = vperm.xlu0 %1359, %v1271
      %v1361 = vpop.permute.xlu0 %1360
      %v1363 = vmul.f32 %v1356, %v1351
      %v1364 = vmul.f32 %v1361, %v1352
      %1367 = vrot.lane.b32.xlu0 %v1345, 20
      %v1368 = vpop.permute.xlu0 %1367
      %1369 = vrot.lane.b32.xlu0 %v1348, 20
      %v1370 = vpop.permute.xlu0 %1369
      %v1373 = vadd.f32 %v1363, %v1368
      %v1374 = vadd.f32 %v1364, %v1370
      %vm1375 = vcmask 195744
      %1376 = vst.msk [vmem:[#allocation4] sm:$0xff] %vm1375, %v1373
      %1377 = vst.msk [vmem:[#allocation4 + $0x8] sm:$0xff] %vm1375, %v1374
      %1378 = vst.msk [vmem:[#allocation2] sm:$0xff] %vm1300, %v1264
      %1379 = vst.msk [vmem:[#allocation2 + $0x8] sm:$0xff] %vm1300, %v1265
      %1380 = vrot.lane.b32.xlu0 %v318, 104
      %v1381 = vpop.permute.xlu0 %1380
      %1382 = vrot.lane.b32.xlu0 %v323, 104
      %v1383 = vpop.permute.xlu0 %1382
      %v1385 = vsel %vm324, %v1381, 0
      %v1388 = vsel %vm324, %v1383, 0
      %1390 = vmatprep.subr.bf16.mxu0 0
      %1391 = vmatpush1.bf16.xpose.msra.mxu0 0
      %1392 = vmatprep.subr.bf16.mxu0 0
      %1393 = vmatpush1.bf16.xpose.msra.mxu0 0
      %1394 = vmatprep.subr.bf16.mxu0 0
      %1395 = vmatpush1.bf16.xpose.msra.mxu0 0
      %1396 = vmatprep.subr.bf16.mxu0 0
      %1397 = vmatpush1.bf16.xpose.msra.mxu0 0
      %1398 = vmatprep.subr.bf16.mxu0 0
      %1399 = vmatpush1.bf16.xpose.msra.mxu0 0
      %1400 = vmatprep.subr.bf16.mxu0 0
      %1401 = vmatpush1.bf16.xpose.msra.mxu0 0
      %1402 = vmatprep.subr.bf16.mxu0 0
      %1403 = vmatpush1.bf16.xpose.msra.mxu0 0
      %1404 = vmatprep.subr.bf16.mxu0 0
      %1405 = vmatpush1.bf16.xpose.msra.mxu0 %v1388
      %1406 = vmatprep.subr.bf16.mxu0 0
      %1407 = vmatpush2.bf16.xpose.msra.mxu0 0
      %1408 = vmatprep.subr.bf16.mxu0 0
      %1409 = vmatpush2.bf16.xpose.msra.mxu0 0
      %1410 = vmatprep.subr.bf16.mxu0 0
      %1411 = vmatpush2.bf16.xpose.msra.mxu0 0
      %1412 = vmatprep.subr.bf16.mxu0 0
      %1413 = vmatpush2.bf16.xpose.msra.mxu0 0
      %1414 = vmatprep.subr.bf16.mxu0 0
      %1415 = vmatpush2.bf16.xpose.msra.mxu0 0
      %1416 = vmatprep.subr.bf16.mxu0 0
      %1417 = vmatpush2.bf16.xpose.msra.mxu0 0
      %1418 = vmatprep.subr.bf16.mxu0 0
      %1419 = vmatpush2.bf16.xpose.msra.mxu0 0
      %1420 = vmatprep.subr.bf16.mxu0 0
      %1421 = vmatpush2.bf16.xpose.msra.mxu0 0
      %1422 = vmatprep.mubr.bf16.mxu0 0
      %1423 = vmatmul.mubr.bf16.gmra.mxu0 %v1385
      %v1424 = vpop.f32.mrf.mxu0
      %v1425 = vadd.f32 0.0, %v1424
      %v1426 = vpop.f32.mrf.mxu0
      %v1427 = vpop.f32.mrf.mxu0
      %v1428 = vadd.f32 0.0, %v1427
      %v1429 = vpop.f32.mrf.mxu0
      %1430 = vdwg.mxu0
      %v1431 = vsel %vm373, %v1425, -2.3819763e+38
      %v1432 = vsel %vm373, %v1428, -2.3819763e+38
      %v1433 = vld [vmem:[#allocation2] sm:$0xff]
      %v1434 = vld [vmem:[#allocation2 + $0x8] sm:$0xff]
      %v1435 = vsel %vm378, %v1431, -inf
      %1436 = vmax.xlane.f32.xlu0 %v1435
      %v1437 = vpop.xlane.xlu0 %1436
      %v1438 = vsel %vm378, %v1432, -inf
      %1439 = vmax.xlane.f32.xlu0 %v1438
      %v1440 = vpop.xlane.xlu0 %1439
      %v1441 = vmax.f32 %v1433, %v1437
      %v1442 = vmax.f32 %v1434, %v1440
      %v1443 = vsub.f32 %v1433, %v1441
      %v1444 = vsub.f32 %v1434, %v1442
      %v1445 = vmul.f32 %v1443, 1.442695
      %v1446 = vpow.pop %v1445
      %v1447 = vmul.f32 %v1444, 1.442695
      %v1448 = vpow.pop %v1447
      %1450 = vset.pattern.permute.xlu0 6
      %1451 = vperm.xlu0 %1450, %v1441
      %v1452 = vpop.permute.xlu0 %1451
      %1455 = vset.pattern.permute.xlu0 6
      %1456 = vperm.xlu0 %1455, %v1442
      %v1457 = vpop.permute.xlu0 %1456
      %v1459 = vsub.f32 %v1431, %v1452
      %v1460 = vsub.f32 %v1432, %v1457
      %v1461 = vmul.f32 %v1459, 1.442695
      %v1462 = vpow.pop %v1461
      %v1463 = vmul.f32 %v1460, 1.442695
      %v1464 = vpow.pop %v1463
      %v1465 = vld [vmem:[#allocation3] sm:$0xff]
      %v1466 = vld [vmem:[#allocation3 + $0x8] sm:$0xff]
      %v1467 = vmul.f32 %v1446, %v1465
      %v1468 = vmul.f32 %v1448, %v1466
      %v1469 = vsel %vm378, %v1462, 0.0
      %1470 = vadd.xlane.f32.xlu0 %v1469
      %v1471 = vpop.xlane.xlu0 %1470
      %v1472 = vsel %vm378, %v1464, 0.0
      %1473 = vadd.xlane.f32.xlu0 %v1472
      %v1474 = vpop.xlane.xlu0 %1473
      %v1475 = vadd.f32 %v1467, %v1471
      %v1476 = vadd.f32 %v1468, %v1474
      %vm1477 = vcmask 56368
      %1478 = vst.msk [vmem:[#allocation3] sm:$0xff] %vm1477, %v1475
      %1479 = vst.msk [vmem:[#allocation3 + $0x8] sm:$0xff] %vm1477, %v1476
      %v1480 = vpack.c.bf16 %v1464, %v1462
      %1481 = vrot.lane.b32.xlu0 %v429, 104
      %v1482 = vpop.permute.xlu0 %1481
      %v1485 = vsel %vm378, %v1480, 0
      %1487 = vmatprep.subr.bf16.mxu0 0
      %1488 = vmatpush1.bf16.msra.mxu0 0
      %1489 = vmatprep.subr.bf16.mxu0 0
      %1490 = vmatpush1.bf16.msra.mxu0 0
      %1491 = vmatprep.subr.bf16.mxu0 0
      %1492 = vmatpush1.bf16.msra.mxu0 0
      %1493 = vmatprep.subr.bf16.mxu0 0
      %1494 = vmatpush1.bf16.msra.mxu0 0
      %1495 = vmatprep.subr.bf16.mxu0 0
      %1496 = vmatpush1.bf16.msra.mxu0 0
      %1497 = vmatprep.subr.bf16.mxu0 0
      %1498 = vmatpush1.bf16.msra.mxu0 0
      %1499 = vmatprep.subr.bf16.mxu0 0
      %1500 = vmatpush1.bf16.msra.mxu0 0
      %1501 = vmatprep.subr.bf16.mxu0 0
      %1502 = vmatpush1.bf16.msra.mxu0 %v1482
      %1503 = vmatprep.subr.bf16.mxu0 0
      %1504 = vmatpush2.bf16.msra.mxu0 0
      %1505 = vmatprep.subr.bf16.mxu0 0
      %1506 = vmatpush2.bf16.msra.mxu0 0
      %1507 = vmatprep.subr.bf16.mxu0 0
      %1508 = vmatpush2.bf16.msra.mxu0 0
      %1509 = vmatprep.subr.bf16.mxu0 0
      %1510 = vmatpush2.bf16.msra.mxu0 0
      %1511 = vmatprep.subr.bf16.mxu0 0
      %1512 = vmatpush2.bf16.msra.mxu0 0
      %1513 = vmatprep.subr.bf16.mxu0 0
      %1514 = vmatpush2.bf16.msra.mxu0 0
      %1515 = vmatprep.subr.bf16.mxu0 0
      %1516 = vmatpush2.bf16.msra.mxu0 0
      %1517 = vmatprep.subr.bf16.mxu0 0
      %1518 = vmatpush2.bf16.msra.mxu0 0
      %1519 = vmatprep.mubr.bf16.mxu0 0
      %1520 = vmatmul.mubr.bf16.gmra.mxu0 %v1485
      %v1521 = vpop.f32.mrf.mxu0
      %v1522 = vadd.f32 0.0, %v1521
      %v1523 = vpop.f32.mrf.mxu0
      %v1524 = vpop.f32.mrf.mxu0
      %v1525 = vadd.f32 0.0, %v1524
      %v1526 = vpop.f32.mrf.mxu0
      %1527 = vdwg.mxu0
      %v1528 = vld [vmem:[#allocation4] sm:$0xff]
      %v1529 = vld [vmem:[#allocation4 + $0x8] sm:$0xff]
      %1531 = vset.pattern.permute.xlu0 6
      %1532 = vperm.xlu0 %1531, %v1446
      %v1533 = vpop.permute.xlu0 %1532
      %1536 = vset.pattern.permute.xlu0 6
      %1537 = vperm.xlu0 %1536, %v1448
      %v1538 = vpop.permute.xlu0 %1537
      %v1540 = vmul.f32 %v1533, %v1528
      %v1541 = vmul.f32 %v1538, %v1529
      %1544 = vrot.lane.b32.xlu0 %v1522, 24
      %v1545 = vpop.permute.xlu0 %1544
      %1546 = vrot.lane.b32.xlu0 %v1525, 24
      %v1547 = vpop.permute.xlu0 %1546
      %v1550 = vadd.f32 %v1540, %v1545
      %v1551 = vadd.f32 %v1541, %v1547
      %vm1552 = vcmask 228544
      %1553 = vst.msk [vmem:[#allocation4] sm:$0xff] %vm1552, %v1550
      %1554 = vst.msk [vmem:[#allocation4 + $0x8] sm:$0xff] %vm1552, %v1551
      %1555 = vst.msk [vmem:[#allocation2] sm:$0xff] %vm1477, %v1441
      %1556 = vst.msk [vmem:[#allocation2 + $0x8] sm:$0xff] %vm1477, %v1442
      %1557 = vrot.lane.b32.xlu0 %v318, 100
      %v1558 = vpop.permute.xlu0 %1557
      %1559 = vrot.lane.b32.xlu0 %v323, 100
      %v1560 = vpop.permute.xlu0 %1559
      %v1562 = vsel %vm324, %v1558, 0
      %v1565 = vsel %vm324, %v1560, 0
      %1567 = vmatprep.subr.bf16.mxu0 0
      %1568 = vmatpush1.bf16.xpose.msra.mxu0 0
      %1569 = vmatprep.subr.bf16.mxu0 0
      %1570 = vmatpush1.bf16.xpose.msra.mxu0 0
      %1571 = vmatprep.subr.bf16.mxu0 0
      %1572 = vmatpush1.bf16.xpose.msra.mxu0 0
      %1573 = vmatprep.subr.bf16.mxu0 0
      %1574 = vmatpush1.bf16.xpose.msra.mxu0 0
      %1575 = vmatprep.subr.bf16.mxu0 0
      %1576 = vmatpush1.bf16.xpose.msra.mxu0 0
      %1577 = vmatprep.subr.bf16.mxu0 0
      %1578 = vmatpush1.bf16.xpose.msra.mxu0 0
      %1579 = vmatprep.subr.bf16.mxu0 0
      %1580 = vmatpush1.bf16.xpose.msra.mxu0 0
      %1581 = vmatprep.subr.bf16.mxu0 0
      %1582 = vmatpush1.bf16.xpose.msra.mxu0 %v1565
      %1583 = vmatprep.subr.bf16.mxu0 0
      %1584 = vmatpush2.bf16.xpose.msra.mxu0 0
      %1585 = vmatprep.subr.bf16.mxu0 0
      %1586 = vmatpush2.bf16.xpose.msra.mxu0 0
      %1587 = vmatprep.subr.bf16.mxu0 0
      %1588 = vmatpush2.bf16.xpose.msra.mxu0 0
      %1589 = vmatprep.subr.bf16.mxu0 0
      %1590 = vmatpush2.bf16.xpose.msra.mxu0 0
      %1591 = vmatprep.subr.bf16.mxu0 0
      %1592 = vmatpush2.bf16.xpose.msra.mxu0 0
      %1593 = vmatprep.subr.bf16.mxu0 0
      %1594 = vmatpush2.bf16.xpose.msra.mxu0 0
      %1595 = vmatprep.subr.bf16.mxu0 0
      %1596 = vmatpush2.bf16.xpose.msra.mxu0 0
      %1597 = vmatprep.subr.bf16.mxu0 0
      %1598 = vmatpush2.bf16.xpose.msra.mxu0 0
      %1599 = vmatprep.mubr.bf16.mxu0 0
      %1600 = vmatmul.mubr.bf16.gmra.mxu0 %v1562
      %v1601 = vpop.f32.mrf.mxu0
      %v1602 = vadd.f32 0.0, %v1601
      %v1603 = vpop.f32.mrf.mxu0
      %v1604 = vpop.f32.mrf.mxu0
      %v1605 = vadd.f32 0.0, %v1604
      %v1606 = vpop.f32.mrf.mxu0
      %1607 = vdwg.mxu0
      %v1608 = vsel %vm373, %v1602, -2.3819763e+38
      %v1609 = vsel %vm373, %v1605, -2.3819763e+38
      %v1610 = vld [vmem:[#allocation2] sm:$0xff]
      %v1611 = vld [vmem:[#allocation2 + $0x8] sm:$0xff]
      %v1612 = vsel %vm378, %v1608, -inf
      %1613 = vmax.xlane.f32.xlu0 %v1612
      %v1614 = vpop.xlane.xlu0 %1613
      %v1615 = vsel %vm378, %v1609, -inf
      %1616 = vmax.xlane.f32.xlu0 %v1615
      %v1617 = vpop.xlane.xlu0 %1616
      %v1618 = vmax.f32 %v1610, %v1614
      %v1619 = vmax.f32 %v1611, %v1617
      %v1620 = vsub.f32 %v1610, %v1618
      %v1621 = vsub.f32 %v1611, %v1619
      %v1622 = vmul.f32 %v1620, 1.442695
      %v1623 = vpow.pop %v1622
      %v1624 = vmul.f32 %v1621, 1.442695
      %v1625 = vpow.pop %v1624
      %1627 = vset.pattern.permute.xlu0 7
      %1628 = vperm.xlu0 %1627, %v1618
      %v1629 = vpop.permute.xlu0 %1628
      %1632 = vset.pattern.permute.xlu0 7
      %1633 = vperm.xlu0 %1632, %v1619
      %v1634 = vpop.permute.xlu0 %1633
      %v1636 = vsub.f32 %v1608, %v1629
      %v1637 = vsub.f32 %v1609, %v1634
      %v1638 = vmul.f32 %v1636, 1.442695
      %v1639 = vpow.pop %v1638
      %v1640 = vmul.f32 %v1637, 1.442695
      %v1641 = vpow.pop %v1640
      %v1642 = vld [vmem:[#allocation3] sm:$0xff]
      %v1643 = vld [vmem:[#allocation3 + $0x8] sm:$0xff]
      %v1644 = vmul.f32 %v1623, %v1642
      %v1645 = vmul.f32 %v1625, %v1643
      %v1646 = vsel %vm378, %v1639, 0.0
      %1647 = vadd.xlane.f32.xlu0 %v1646
      %v1648 = vpop.xlane.xlu0 %1647
      %v1649 = vsel %vm378, %v1641, 0.0
      %1650 = vadd.xlane.f32.xlu0 %v1649
      %v1651 = vpop.xlane.xlu0 %1650
      %v1652 = vadd.f32 %v1644, %v1648
      %v1653 = vadd.f32 %v1645, %v1651
      %vm1654 = vcmask 64568
      %1655 = vst.msk [vmem:[#allocation3] sm:$0xff] %vm1654, %v1652
      %1656 = vst.msk [vmem:[#allocation3 + $0x8] sm:$0xff] %vm1654, %v1653
      %v1657 = vpack.c.bf16 %v1641, %v1639
      %1658 = vrot.lane.b32.xlu0 %v429, 100
      %v1659 = vpop.permute.xlu0 %1658
      %v1662 = vsel %vm378, %v1657, 0
      %1664 = vmatprep.subr.bf16.mxu0 0
      %1665 = vmatpush1.bf16.msra.mxu0 0
      %1666 = vmatprep.subr.bf16.mxu0 0
      %1667 = vmatpush1.bf16.msra.mxu0 0
      %1668 = vmatprep.subr.bf16.mxu0 0
      %1669 = vmatpush1.bf16.msra.mxu0 0
      %1670 = vmatprep.subr.bf16.mxu0 0
      %1671 = vmatpush1.bf16.msra.mxu0 0
      %1672 = vmatprep.subr.bf16.mxu0 0
      %1673 = vmatpush1.bf16.msra.mxu0 0
      %1674 = vmatprep.subr.bf16.mxu0 0
      %1675 = vmatpush1.bf16.msra.mxu0 0
      %1676 = vmatprep.subr.bf16.mxu0 0
      %1677 = vmatpush1.bf16.msra.mxu0 0
      %1678 = vmatprep.subr.bf16.mxu0 0
      %1679 = vmatpush1.bf16.msra.mxu0 %v1659
      %1680 = vmatprep.subr.bf16.mxu0 0
      %1681 = vmatpush2.bf16.msra.mxu0 0
      %1682 = vmatprep.subr.bf16.mxu0 0
      %1683 = vmatpush2.bf16.msra.mxu0 0
      %1684 = vmatprep.subr.bf16.mxu0 0
      %1685 = vmatpush2.bf16.msra.mxu0 0
      %1686 = vmatprep.subr.bf16.mxu0 0
      %1687 = vmatpush2.bf16.msra.mxu0 0
      %1688 = vmatprep.subr.bf16.mxu0 0
      %1689 = vmatpush2.bf16.msra.mxu0 0
      %1690 = vmatprep.subr.bf16.mxu0 0
      %1691 = vmatpush2.bf16.msra.mxu0 0
      %1692 = vmatprep.subr.bf16.mxu0 0
      %1693 = vmatpush2.bf16.msra.mxu0 0
      %1694 = vmatprep.subr.bf16.mxu0 0
      %1695 = vmatpush2.bf16.msra.mxu0 0
      %1696 = vmatprep.mubr.bf16.mxu0 0
      %1697 = vmatmul.mubr.bf16.gmra.mxu0 %v1662
      %v1698 = vpop.f32.mrf.mxu0
      %v1699 = vadd.f32 0.0, %v1698
      %v1700 = vpop.f32.mrf.mxu0
      %v1701 = vpop.f32.mrf.mxu0
      %v1702 = vadd.f32 0.0, %v1701
      %v1703 = vpop.f32.mrf.mxu0
      %1704 = vdwg.mxu0
      %v1705 = vld [vmem:[#allocation4] sm:$0xff]
      %v1706 = vld [vmem:[#allocation4 + $0x8] sm:$0xff]
      %1708 = vset.pattern.permute.xlu0 7
      %1709 = vperm.xlu0 %1708, %v1623
      %v1710 = vpop.permute.xlu0 %1709
      %1713 = vset.pattern.permute.xlu0 7
      %1714 = vperm.xlu0 %1713, %v1625
      %v1715 = vpop.permute.xlu0 %1714
      %v1717 = vmul.f32 %v1710, %v1705
      %v1718 = vmul.f32 %v1715, %v1706
      %1721 = vrot.lane.b32.xlu0 %v1699, 28
      %v1722 = vpop.permute.xlu0 %1721
      %1723 = vrot.lane.b32.xlu0 %v1702, 28
      %v1724 = vpop.permute.xlu0 %1723
      %v1727 = vadd.f32 %v1717, %v1722
      %v1728 = vadd.f32 %v1718, %v1724
      %vm1729 = vcmask 261344
      %1730 = vst.msk [vmem:[#allocation4] sm:$0xff] %vm1729, %v1727
      %1731 = vst.msk [vmem:[#allocation4 + $0x8] sm:$0xff] %vm1729, %v1728
      %1732 = vst.msk [vmem:[#allocation2] sm:$0xff] %vm1654, %v1618
      %1733 = vst.msk [vmem:[#allocation2 + $0x8] sm:$0xff] %vm1654, %v1619
      // Predicated region
      $region37: #{mem_eff_attention_forward.8} parent=31 // pred_check
        %p1734 = pneg %p290
      $region38: #{mem_eff_attention_forward.8} parent=31 // pred_check_branch
        %1736 = sbr.rel (%p1734) target = $region40
      $region39: #{mem_eff_attention_forward.8} parent=31 // pred_region
        %v1737 = vld [vmem:[#allocation4] sm:$0xff]
        %v1738 = vld [vmem:[#allocation4 + $0x8] sm:$0xff]
        %v1739 = vld [vmem:[#allocation3] sm:$0xff]
        %v1740 = vld [vmem:[#allocation3 + $0x8] sm:$0xff]
        %1742 = vset.pattern.permute.xlu0 0
        %1743 = vperm.xlu0 %1742, %v1739
        %v1744 = vpop.permute.xlu0 %1743
        %1747 = vset.pattern.permute.xlu0 0
        %1748 = vperm.xlu0 %1747, %v1740
        %v1749 = vpop.permute.xlu0 %1748
        %v1751 = vrcp.pop %v1744
        %v1752 = vmul.f32 %v1737, %v1751
        %v1753 = vrcp.pop %v1749
        %v1754 = vmul.f32 %v1738, %v1753
        %v1755 = vpack.c.bf16 %v1754, %v1752
        %v1757 = vunpack.c.l.b16 %v1755
        %v1758 = vunpack.c.h.b16 %v1755
        %v1759 = vpack.c.b16 %v1757, %v1757
        %v1760 = vpack.c.b16 %v1758, %v1758
        %vm1763 = vcmask 27648
        %1764 = vst.msk [vmem:[%s287] sm:$0xf] %vm1763, %v1759
        %1765 = vst.msk [vmem:[%s287 + $0x4] sm:$0xf] %vm1763, %v1760
        %v1766 = vld [vmem:[#allocation4] sm:$0xff]
        %v1767 = vld [vmem:[#allocation4 + $0x8] sm:$0xff]
        %v1768 = vld [vmem:[#allocation3] sm:$0xff]
        %v1769 = vld [vmem:[#allocation3 + $0x8] sm:$0xff]
        %1771 = vset.pattern.permute.xlu0 1
        %1772 = vperm.xlu0 %1771, %v1768
        %v1773 = vpop.permute.xlu0 %1772
        %1776 = vset.pattern.permute.xlu0 1
        %1777 = vperm.xlu0 %1776, %v1769
        %v1778 = vpop.permute.xlu0 %1777
        %v1780 = vrcp.pop %v1773
        %v1781 = vmul.f32 %v1766, %v1780
        %v1782 = vrcp.pop %v1778
        %v1783 = vmul.f32 %v1767, %v1782
        %v1784 = vpack.c.bf16 %v1783, %v1781
        %v1786 = vunpack.c.l.b16 %v1784
        %v1787 = vunpack.c.h.b16 %v1784
        %v1788 = vpack.c.b16 %v1786, %v1786
        %v1789 = vpack.c.b16 %v1787, %v1787
        %vm1792 = vcmask 60448
        %1793 = vst.msk [vmem:[%s287] sm:$0xf] %vm1792, %v1788
        %1794 = vst.msk [vmem:[%s287 + $0x4] sm:$0xf] %vm1792, %v1789
        %v1795 = vld [vmem:[#allocation4] sm:$0xff]
        %v1796 = vld [vmem:[#allocation4 + $0x8] sm:$0xff]
        %v1797 = vld [vmem:[#allocation3] sm:$0xff]
        %v1798 = vld [vmem:[#allocation3 + $0x8] sm:$0xff]
        %1800 = vset.pattern.permute.xlu0 2
        %1801 = vperm.xlu0 %1800, %v1797
        %v1802 = vpop.permute.xlu0 %1801
        %1805 = vset.pattern.permute.xlu0 2
        %1806 = vperm.xlu0 %1805, %v1798
        %v1807 = vpop.permute.xlu0 %1806
        %v1809 = vrcp.pop %v1802
        %v1810 = vmul.f32 %v1795, %v1809
        %v1811 = vrcp.pop %v1807
        %v1812 = vmul.f32 %v1796, %v1811
        %v1813 = vpack.c.bf16 %v1812, %v1810
        %v1815 = vunpack.c.l.b16 %v1813
        %v1816 = vunpack.c.h.b16 %v1813
        %v1817 = vpack.c.b16 %v1815, %v1815
        %v1818 = vpack.c.b16 %v1816, %v1816
        %vm1821 = vcmask 93248
        %1822 = vst.msk [vmem:[%s287] sm:$0xf] %vm1821, %v1817
        %1823 = vst.msk [vmem:[%s287 + $0x4] sm:$0xf] %vm1821, %v1818
        %v1824 = vld [vmem:[#allocation4] sm:$0xff]
        %v1825 = vld [vmem:[#allocation4 + $0x8] sm:$0xff]
        %v1826 = vld [vmem:[#allocation3] sm:$0xff]
        %v1827 = vld [vmem:[#allocation3 + $0x8] sm:$0xff]
        %1829 = vset.pattern.permute.xlu0 3
        %1830 = vperm.xlu0 %1829, %v1826
        %v1831 = vpop.permute.xlu0 %1830
        %1834 = vset.pattern.permute.xlu0 3
        %1835 = vperm.xlu0 %1834, %v1827
        %v1836 = vpop.permute.xlu0 %1835
        %v1838 = vrcp.pop %v1831
        %v1839 = vmul.f32 %v1824, %v1838
        %v1840 = vrcp.pop %v1836
        %v1841 = vmul.f32 %v1825, %v1840
        %v1842 = vpack.c.bf16 %v1841, %v1839
        %v1844 = vunpack.c.l.b16 %v1842
        %v1845 = vunpack.c.h.b16 %v1842
        %v1846 = vpack.c.b16 %v1844, %v1844
        %v1847 = vpack.c.b16 %v1845, %v1845
        %vm1850 = vcmask 126048
        %1851 = vst.msk [vmem:[%s287] sm:$0xf] %vm1850, %v1846
        %1852 = vst.msk [vmem:[%s287 + $0x4] sm:$0xf] %vm1850, %v1847
        %v1853 = vld [vmem:[#allocation4] sm:$0xff]
        %v1854 = vld [vmem:[#allocation4 + $0x8] sm:$0xff]
        %v1855 = vld [vmem:[#allocation3] sm:$0xff]
        %v1856 = vld [vmem:[#allocation3 + $0x8] sm:$0xff]
        %1858 = vset.pattern.permute.xlu0 4
        %1859 = vperm.xlu0 %1858, %v1855
        %v1860 = vpop.permute.xlu0 %1859
        %1863 = vset.pattern.permute.xlu0 4
        %1864 = vperm.xlu0 %1863, %v1856
        %v1865 = vpop.permute.xlu0 %1864
        %v1867 = vrcp.pop %v1860
        %v1868 = vmul.f32 %v1853, %v1867
        %v1869 = vrcp.pop %v1865
        %v1870 = vmul.f32 %v1854, %v1869
        %v1871 = vpack.c.bf16 %v1870, %v1868
        %v1873 = vunpack.c.l.b16 %v1871
        %v1874 = vunpack.c.h.b16 %v1871
        %v1875 = vpack.c.b16 %v1873, %v1873
        %v1876 = vpack.c.b16 %v1874, %v1874
        %vm1879 = vcmask 158848
        %1880 = vst.msk [vmem:[%s287] sm:$0xf] %vm1879, %v1875
        %1881 = vst.msk [vmem:[%s287 + $0x4] sm:$0xf] %vm1879, %v1876
        %v1882 = vld [vmem:[#allocation4] sm:$0xff]
        %v1883 = vld [vmem:[#allocation4 + $0x8] sm:$0xff]
        %v1884 = vld [vmem:[#allocation3] sm:$0xff]
        %v1885 = vld [vmem:[#allocation3 + $0x8] sm:$0xff]
        %1887 = vset.pattern.permute.xlu0 5
        %1888 = vperm.xlu0 %1887, %v1884
        %v1889 = vpop.permute.xlu0 %1888
        %1892 = vset.pattern.permute.xlu0 5
        %1893 = vperm.xlu0 %1892, %v1885
        %v1894 = vpop.permute.xlu0 %1893
        %v1896 = vrcp.pop %v1889
        %v1897 = vmul.f32 %v1882, %v1896
        %v1898 = vrcp.pop %v1894
        %v1899 = vmul.f32 %v1883, %v1898
        %v1900 = vpack.c.bf16 %v1899, %v1897
        %v1902 = vunpack.c.l.b16 %v1900
        %v1903 = vunpack.c.h.b16 %v1900
        %v1904 = vpack.c.b16 %v1902, %v1902
        %v1905 = vpack.c.b16 %v1903, %v1903
        %vm1908 = vcmask 191648
        %1909 = vst.msk [vmem:[%s287] sm:$0xf] %vm1908, %v1904
        %1910 = vst.msk [vmem:[%s287 + $0x4] sm:$0xf] %vm1908, %v1905
        %v1911 = vld [vmem:[#allocation4] sm:$0xff]
        %v1912 = vld [vmem:[#allocation4 + $0x8] sm:$0xff]
        %v1913 = vld [vmem:[#allocation3] sm:$0xff]
        %v1914 = vld [vmem:[#allocation3 + $0x8] sm:$0xff]
        %1916 = vset.pattern.permute.xlu0 6
        %1917 = vperm.xlu0 %1916, %v1913
        %v1918 = vpop.permute.xlu0 %1917
        %1921 = vset.pattern.permute.xlu0 6
        %1922 = vperm.xlu0 %1921, %v1914
        %v1923 = vpop.permute.xlu0 %1922
        %v1925 = vrcp.pop %v1918
        %v1926 = vmul.f32 %v1911, %v1925
        %v1927 = vrcp.pop %v1923
        %v1928 = vmul.f32 %v1912, %v1927
        %v1929 = vpack.c.bf16 %v1928, %v1926
        %v1931 = vunpack.c.l.b16 %v1929
        %v1932 = vunpack.c.h.b16 %v1929
        %v1933 = vpack.c.b16 %v1931, %v1931
        %v1934 = vpack.c.b16 %v1932, %v1932
        %vm1937 = vcmask 224448
        %1938 = vst.msk [vmem:[%s287] sm:$0xf] %vm1937, %v1933
        %1939 = vst.msk [vmem:[%s287 + $0x4] sm:$0xf] %vm1937, %v1934
        %v1940 = vld [vmem:[#allocation4] sm:$0xff]
        %v1941 = vld [vmem:[#allocation4 + $0x8] sm:$0xff]
        %v1942 = vld [vmem:[#allocation3] sm:$0xff]
        %v1943 = vld [vmem:[#allocation3 + $0x8] sm:$0xff]
        %1945 = vset.pattern.permute.xlu0 7
        %1946 = vperm.xlu0 %1945, %v1942
        %v1947 = vpop.permute.xlu0 %1946
        %1950 = vset.pattern.permute.xlu0 7
        %1951 = vperm.xlu0 %1950, %v1943
        %v1952 = vpop.permute.xlu0 %1951
        %v1954 = vrcp.pop %v1947
        %v1955 = vmul.f32 %v1940, %v1954
        %v1956 = vrcp.pop %v1952
        %v1957 = vmul.f32 %v1941, %v1956
        %v1958 = vpack.c.bf16 %v1957, %v1955
        %v1960 = vunpack.c.l.b16 %v1958
        %v1961 = vunpack.c.h.b16 %v1958
        %v1962 = vpack.c.b16 %v1960, %v1960
        %v1963 = vpack.c.b16 %v1961, %v1961
        %vm1966 = vcmask 257248
        %1967 = vst.msk [vmem:[%s287] sm:$0xf] %vm1966, %v1962
        %1968 = vst.msk [vmem:[%s287 + $0x4] sm:$0xf] %vm1966, %v1963
      $region40: #{mem_eff_attention_forward.8} parent=31 // pred_fallthru
        _
      %s1969 = smul.u32 2, %s20
      %p1970 = scmp.lt.s32.totalorder %s19, 1
      %s1971 = scalar_select %p1970, %s19, 1
      %p1972 = scmp.lt.s32.totalorder %s1969, 1
      %s1973 = scalar_select %p1972, %s1969, 1
      %s1974 = smul.addr %s1971, 2
      %s1975 = sadd.s32 %s1973, %s1974
      %s1976 = smul.addr %s1975, 4
      %s1977 = scalar_lea.vmem %s3, %s1976
      // Predicated region
      $region41: #{mem_eff_attention_forward.8} parent=31 // pred_check
        %p1978 = pneg %p137
      $region42: #{mem_eff_attention_forward.8} parent=31 // pred_check_branch
        %1980 = sbr.rel (%p1978) target = $region44
      $region43: #{mem_eff_attention_forward.8} parent=31 // pred_region
        %s1981 = smul.u32 2, %s20
      $region44: #{mem_eff_attention_forward.8} parent=31 // pred_fallthru
        _
    $region32: #{mem_eff_attention_forward.8} parent=5 // pred_fallthru
      _
    %p1982 = scmp.le.s32.totalorder 2, %s9
    // Predicated region
    $region45: #{mem_eff_attention_forward.8} parent=5 // pred_check
      %p1983 = pneg %p1982
    $region46: #{mem_eff_attention_forward.8} parent=5 // pred_check_branch
      %1985 = sbr.rel (%p1983) target = $region48
    $region47: #{mem_eff_attention_forward.8} parent=5 // pred_region
      %s1986 = ssub.s32 %s9, 2
      // Predicated region
      $region49: #{mem_eff_attention_forward.8} parent=47 // pred_check
        %p1987 = pneg %p143
      $region50: #{mem_eff_attention_forward.8} parent=47 // pred_check_branch
        %1989 = sbr.rel (%p1987) target = $region52
      $region51: #{mem_eff_attention_forward.8} parent=47 // pred_region
        %s1990 = smul.u32 2, %s23
        %p1991 = scmp.lt.s32.totalorder %s22, 1
        %s1992 = scalar_select %p1991, %s22, 1
        %p1993 = scmp.lt.s32.totalorder %s1990, 1
        %s1994 = scalar_select %p1993, %s1990, 1
        %s1995 = smul.addr %s1992, 2
        %s1996 = sadd.s32 %s1994, %s1995
        %s1997 = smul.addr %s1996, 4
        %s1998 = scalar_lea.vmem %s3, %s1997
      $region52: #{mem_eff_attention_forward.8} parent=47 // pred_fallthru
        _
    $region48: #{mem_eff_attention_forward.8} parent=5 // pred_fallthru
      _
  $region6: #{mem_eff_attention_forward.8} parent=0 // loop_footer
    %s13 = sadd.s32 1, %s9
  $region7: #{mem_eff_attention_forward.8} parent=0 // loop_footer_branch
    %8 = sbr.rel target = $region3
  $region8: #{mem_eff_attention_forward.8} parent=0 // loop_exit
    _

</llo_original>
